<compile_context>
chip_gen: v6e
topology: v6e:2x2x1
jax: 0.10.0
libtpu: 0.0.40
codegen_flags: <defaults>
</compile_context>

<pallas_src>
import jax
import jax.numpy as jnp
import numpy as np
from jax.experimental import pallas as pl
from jax.experimental.pallas import tpu as pltpu

NEG_SLOPE = 0.01  # F.leaky_relu default


# ---------------------------------------------------------------------------
# Pallas kernels
# ---------------------------------------------------------------------------
def _conv_pool_kernel(pa_ref, pb_ref, pc_ref, pd_ref, w_ref, b_ref, o_ref):
    """Fused conv (im2col matmul) + bias + leaky_relu + 2x2 max-pool.

    pa..pd are the four pool-tap patch matrices, shape (K, M), lane-dense in M.
    o (Cout, M) = leaky_relu(max_t(W @ p_t) + b).  The max commutes with the
    monotone leaky_relu and the per-channel bias, so this equals
    max_pool2d(leaky_relu(conv(x))).  Incremental max keeps <=2 MXU results live.
    """
    w = w_ref[...]
    z = jnp.dot(w, pa_ref[...], preferred_element_type=jnp.float32)
    z = jnp.maximum(z, jnp.dot(w, pb_ref[...], preferred_element_type=jnp.float32))
    z = jnp.maximum(z, jnp.dot(w, pc_ref[...], preferred_element_type=jnp.float32))
    z = jnp.maximum(z, jnp.dot(w, pd_ref[...], preferred_element_type=jnp.float32))
    z = z + b_ref[...]                                   # (Cout,1) broadcast over lanes
    o_ref[...] = jnp.where(z > 0, z, NEG_SLOPE * z)


def _fc_kernel(x_ref, w_ref, b_ref, o_ref):
    """o = leaky_relu(x @ w + b); weight arrives as bf16 (half the HBM DMA) and
    is upcast to f32 in VMEM so the K=2200 accumulation stays f32-accurate."""
    w = w_ref[...].astype(jnp.float32)
    z = jnp.dot(x_ref[...], w, preferred_element_type=jnp.float32) + b_ref[...]
    o_ref[...] = jnp.where(z > 0, z, NEG_SLOPE * z)


# ---------------------------------------------------------------------------
# Pallas wrappers
# ---------------------------------------------------------------------------
def conv_pool_fused(taps, w_mat, b_col):
    """taps: 4 x (K, M) pool-tap patch matrices -> (Cout, M) pooled activation."""
    K, M = taps[0].shape
    cout = w_mat.shape[0]
    return pl.pallas_call(
        _conv_pool_kernel,
        out_shape=jax.ShapeDtypeStruct((cout, M), jnp.float32),
        grid_spec=pl.GridSpec(
            grid=(1,),
            in_specs=[pl.BlockSpec((K, M), lambda i: (0, 0))] * 4
            + [
                pl.BlockSpec((cout, K), lambda i: (0, 0)),
                pl.BlockSpec((cout, 1), lambda i: (0, 0)),
            ],
            out_specs=pl.BlockSpec((cout, M), lambda i: (0, 0)),
        ),
        compiler_params=pltpu.CompilerParams(dimension_semantics=("arbitrary",)),
    )(*taps, w_mat, b_col)


def fc_fused(x, w_mat, b_row):
    """leaky_relu(x @ w + b); single block, no padding of the tiny batch dim."""
    M, K = x.shape
    nout = w_mat.shape[1]
    return pl.pallas_call(
        _fc_kernel,
        out_shape=jax.ShapeDtypeStruct((M, nout), jnp.float32),
        grid_spec=pl.GridSpec(
            grid=(1,),
            in_specs=[
                pl.BlockSpec((M, K), lambda i: (0, 0)),
                pl.BlockSpec((K, nout), lambda i: (0, 0)),
                pl.BlockSpec((1, nout), lambda i: (0, 0)),
            ],
            out_specs=pl.BlockSpec((M, nout), lambda i: (0, 0)),
        ),
        compiler_params=pltpu.CompilerParams(dimension_semantics=("arbitrary",)),
    )(x, w_mat, b_row)


# ---------------------------------------------------------------------------
# Host-side glue (tiny, fused by XLA under jit)
# ---------------------------------------------------------------------------
def pool_tap_patches_t(act, k):
    """act: (N,H,W,C) channels-last.  For a k x k VALID conv followed by a
    2x2/2 max-pool, returns the 4 pool-tap im2col matrices TRANSPOSED, each of
    shape (k*k*C, N*Hp*Wp) with row order (ki, kj, c) and column order
    (n, ph, pw), plus (Hp, Wp)."""
    N, H, W, C = act.shape
    Ho, Wo = H - k + 1, W - k + 1
    Hp, Wp = Ho // 2, Wo // 2
    taps = []
    for di in (0, 1):
        for dj in (0, 1):
            cols = [
                act[:, di + ki: di + ki + 2 * Hp - 1: 2,
                       dj + kj: dj + kj + 2 * Wp - 1: 2, :]
                for ki in range(k) for kj in range(k)
            ]
            p = jnp.concatenate(cols, axis=-1)            # (N, Hp, Wp, k*k*C)
            taps.append(jnp.moveaxis(p, -1, 0).reshape(k * k * C, N * Hp * Wp))
    return taps, (Hp, Wp)


def conv_weight_t(w):
    """PyTorch (Cout,Cin,kh,kw) -> (Cout, kh*kw*Cin), matching tap row order."""
    cout, cin, kh, kw = w.shape
    return jnp.transpose(w, (0, 2, 3, 1)).reshape(cout, kh * kw * cin)


def fc1_weight_to_mat(w):
    """PyTorch fc1 weight (400, C*H*W) with C=50,H=4,W=11 -> (H*W*C, 400) so it
    consumes the (h, w, c)-ordered flatten of the pooled conv2 activation."""
    w4 = w.reshape(400, 50, 4, 11)                        # (out, c, h, w)
    return jnp.transpose(w4, (2, 3, 1, 0)).reshape(4 * 11 * 50, 400)


def prepare_params(params):
    """One-time weight layout prep (hoisted out of the forward)."""
    return dict(
        w1=conv_weight_t(params["conv1_w"]),              # (20, 25)
        b1=params["conv1_b"].reshape(20, 1),
        w2=conv_weight_t(params["conv2_w"]),              # (50, 500)
        b2=params["conv2_b"].reshape(50, 1),
        # fc1 weight stored bf16: halves the dominant HBM DMA; upcast in-kernel.
        wf=fc1_weight_to_mat(params["fc1_w"]).astype(jnp.bfloat16),  # (2200, 400)
        bf=params["fc1_b"].reshape(1, 400),
    )


def lenet_forward(x_nchw, prepared):
    N = x_nchw.shape[0]
    c1 = prepared["w1"].shape[0]                          # 20
    c2 = prepared["w2"].shape[0]                          # 50
    x = jnp.transpose(x_nchw, (0, 2, 3, 1))               # NCHW -> NHWC (N,28,56,1)

    # layer 1: conv1(1->20, 5x5) + leaky + 2x2 max-pool, one fused kernel
    taps1, (hp1, wp1) = pool_tap_patches_t(x, 5)          # 4 x (25, N*12*26)
    y1 = conv_pool_fused(taps1, prepared["w1"], prepared["b1"])   # (20, N*312)
    y1_img = jnp.transpose(y1.reshape(c1, N, hp1, wp1), (1, 2, 3, 0))  # (N,12,26,20)

    # layer 2: conv2(20->50, 5x5) + leaky + 2x2 max-pool, one fused kernel
    taps2, (hp2, wp2) = pool_tap_patches_t(y1_img, 5)     # 4 x (500, N*44)
    y2 = conv_pool_fused(taps2, prepared["w2"], prepared["b2"])   # (50, N*44)

    # fc1 + leaky (weights pre-permuted to the (h, w, c) flatten order)
    flat = jnp.transpose(y2.reshape(c2, N, hp2 * wp2), (1, 2, 0)).reshape(
        N, hp2 * wp2 * c2)                                # (N, 2200)
    return fc_fused(flat, prepared["wf"], prepared["bf"])  # (N, 400)


# ---------------------------------------------------------------------------
# Deterministic parameter init (PyTorch-default-style uniform bounds)
# ---------------------------------------------------------------------------
def init_params(key):
    ks = jax.random.split(key, 6)

    def u(k, shape, fan_in):
        bound = 1.0 / float(np.sqrt(fan_in))
        return jax.random.uniform(k, shape, jnp.float32, -bound, bound)

    return dict(
        conv1_w=u(ks[0], (20, 1, 5, 5), 1 * 5 * 5),
        conv1_b=u(ks[1], (20,), 1 * 5 * 5),
        conv2_w=u(ks[2], (50, 20, 5, 5), 20 * 5 * 5),
        conv2_b=u(ks[3], (50,), 20 * 5 * 5),
        fc1_w=u(ks[4], (400, 4 * 11 * 50), 4 * 11 * 50),
        fc1_b=u(ks[5], (400,), 4 * 11 * 50),
    )


# ---------------------------------------------------------------------------
# Pure-JAX reference (for correctness check)
# ---------------------------------------------------------------------------
def lenet_reference(x, params):
    def conv(v, w, b):
        y = jax.lax.conv_general_dilated(
            v, w, (1, 1), "VALID", dimension_numbers=("NCHW", "OIHW", "NCHW"))
        return y + b[None, :, None, None]

    def leaky(v):
        return jnp.where(v > 0, v, NEG_SLOPE * v)

    def pool(v):
        N, C, H, W = v.shape
        return jnp.max(v.reshape(N, C, H // 2, 2, W // 2, 2), axis=(3, 5))

    y = pool(leaky(conv(x, params["conv1_w"], params["conv1_b"])))
    y = pool(leaky(conv(y, params["conv2_w"], params["conv2_b"])))
    flat = y.reshape(y.shape[0], -1)
    return leaky(flat @ params["fc1_w"].T + params["fc1_b"])


if __name__ == "__main__":
    key = jax.random.PRNGKey(0)
    kx, kp = jax.random.split(key)

    # fc1's in_features = 4*11*50 fixes the input spatial size to 28x56
    # (two side-by-side MNIST digits, as in the mnist_overfit zoo).
    x = jax.random.normal(kx, (2, 1, 28, 56), jnp.float32)
    params = init_params(kp)
    prepared = prepare_params(params)          # weight relayouts / bf16 cast done once

    fwd = jax.jit(lenet_forward)
    out = jax.block_until_ready(fwd(x, prepared))
    assert out.shape == (2, 400), out.shape

    ref = lenet_reference(x, params)
    np.testing.assert_allclose(np.asarray(out), np.asarray(ref),
                               rtol=5e-3, atol=5e-3)
    print("KERNEL_OK")
</pallas_src>

<mosaic_0001>
module attributes {stable_mosaic.version = 11 : i64} {
  func.func @_conv_pool_kernel(%arg0: i32, %arg1: memref<25x624xf32, #tpu.memory_space<vmem>>, %arg2: memref<25x624xf32, #tpu.memory_space<vmem>>, %arg3: memref<25x624xf32, #tpu.memory_space<vmem>>, %arg4: memref<25x624xf32, #tpu.memory_space<vmem>>, %arg5: memref<20x25xf32, #tpu.memory_space<vmem>>, %arg6: memref<20x1xf32, #tpu.memory_space<vmem>>, %arg7: memref<20x624xf32, #tpu.memory_space<vmem>>) attributes {dimension_semantics = [#tpu.dimension_semantics<arbitrary>], iteration_bounds = array<i64: 1>, scalar_prefetch = 0 : i64, scratch_operands = 0 : i64, tpu.core_type = #tpu.core_type<tc>, window_params = [{pipeline_mode = #tpu.pipeline_mode<synchronous>, transform_indices = @transform_0, window_bounds = array<i64: 25, 624>}, {pipeline_mode = #tpu.pipeline_mode<synchronous>, transform_indices = @transform_1, window_bounds = array<i64: 25, 624>}, {pipeline_mode = #tpu.pipeline_mode<synchronous>, transform_indices = @transform_2, window_bounds = array<i64: 25, 624>}, {pipeline_mode = #tpu.pipeline_mode<synchronous>, transform_indices = @transform_3, window_bounds = array<i64: 25, 624>}, {pipeline_mode = #tpu.pipeline_mode<synchronous>, transform_indices = @transform_4, window_bounds = array<i64: 20, 25>}, {pipeline_mode = #tpu.pipeline_mode<synchronous>, transform_indices = @transform_5, window_bounds = array<i64: 20, 1>}, {pipeline_mode = #tpu.pipeline_mode<synchronous>, transform_indices = @transform_6, window_bounds = array<i64: 20, 624>}]} {
    %c0 = arith.constant 0 : index
    %c0_0 = arith.constant 0 : index
    %0 = vector.load %arg5[%c0, %c0_0] : memref<20x25xf32, #tpu.memory_space<vmem>>, vector<20x25xf32>
    %c0_1 = arith.constant 0 : index
    %c0_2 = arith.constant 0 : index
    %1 = vector.load %arg1[%c0_1, %c0_2] : memref<25x624xf32, #tpu.memory_space<vmem>>, vector<25x624xf32>
    %cst = arith.constant dense<0.000000e+00> : vector<20x624xf32>
    %2 = tpu.matmul %0, %1, %cst {dimension_numbers = #tpu.dot_dimension_numbers<[1], [0], [0], [1], [0, 0, 1, 1], [], []>} : vector<20x25xf32>, vector<25x624xf32>, vector<20x624xf32> -> vector<20x624xf32>
    %c0_3 = arith.constant 0 : index
    %c0_4 = arith.constant 0 : index
    %3 = vector.load %arg2[%c0_3, %c0_4] : memref<25x624xf32, #tpu.memory_space<vmem>>, vector<25x624xf32>
    %cst_5 = arith.constant dense<0.000000e+00> : vector<20x624xf32>
    %4 = tpu.matmul %0, %3, %cst_5 {dimension_numbers = #tpu.dot_dimension_numbers<[1], [0], [0], [1], [0, 0, 1, 1], [], []>} : vector<20x25xf32>, vector<25x624xf32>, vector<20x624xf32> -> vector<20x624xf32>
    %5 = arith.maximumf %2, %4 : vector<20x624xf32>
    %c0_6 = arith.constant 0 : index
    %c0_7 = arith.constant 0 : index
    %6 = vector.load %arg3[%c0_6, %c0_7] : memref<25x624xf32, #tpu.memory_space<vmem>>, vector<25x624xf32>
    %cst_8 = arith.constant dense<0.000000e+00> : vector<20x624xf32>
    %7 = tpu.matmul %0, %6, %cst_8 {dimension_numbers = #tpu.dot_dimension_numbers<[1], [0], [0], [1], [0, 0, 1, 1], [], []>} : vector<20x25xf32>, vector<25x624xf32>, vector<20x624xf32> -> vector<20x624xf32>
    %8 = arith.maximumf %5, %7 : vector<20x624xf32>
    %c0_9 = arith.constant 0 : index
    %c0_10 = arith.constant 0 : index
    %9 = vector.load %arg4[%c0_9, %c0_10] : memref<25x624xf32, #tpu.memory_space<vmem>>, vector<25x624xf32>
    %cst_11 = arith.constant dense<0.000000e+00> : vector<20x624xf32>
    %10 = tpu.matmul %0, %9, %cst_11 {dimension_numbers = #tpu.dot_dimension_numbers<[1], [0], [0], [1], [0, 0, 1, 1], [], []>} : vector<20x25xf32>, vector<25x624xf32>, vector<20x624xf32> -> vector<20x624xf32>
    %11 = arith.maximumf %8, %10 : vector<20x624xf32>
    %c0_12 = arith.constant 0 : index
    %c0_13 = arith.constant 0 : index
    %12 = vector.load %arg6[%c0_12, %c0_13] : memref<20x1xf32, #tpu.memory_space<vmem>>, vector<20x1xf32>
    %13 = vector.broadcast %12 : vector<20x1xf32> to vector<20x624xf32>
    %14 = arith.addf %11, %13 : vector<20x624xf32>
    %cst_14 = arith.constant 0.000000e+00 : f32
    %15 = vector.broadcast %cst_14 : f32 to vector<20x624xf32>
    %16 = arith.cmpf ogt, %14, %15 : vector<20x624xf32>
    %cst_15 = arith.constant 0.00999999977 : f32
    %17 = vector.broadcast %cst_15 : f32 to vector<20x624xf32>
    %18 = arith.mulf %17, %14 : vector<20x624xf32>
    %19 = arith.select %16, %14, %18 : vector<20x624xi1>, vector<20x624xf32>
    %c0_16 = arith.constant 0 : index
    %c0_17 = arith.constant 0 : index
    %20 = vector.load %arg7[%c0_16, %c0_17] : memref<20x624xf32, #tpu.memory_space<vmem>>, vector<20x624xf32>
    tpu.vector_store %arg7[%c0_16, %c0_17], %19 {strides = array<i32>} : memref<20x624xf32, #tpu.memory_space<vmem>>, vector<20x624xf32>,
    return
  }
  func.func @transform_0(%arg0: i32) -> (i32, i32) {
    %c0_i32 = arith.constant 0 : i32
    %c0_i32_0 = arith.constant 0 : i32
    %c0_i32_1 = arith.constant 0 : i32
    return %c0_i32, %c0_i32_0 : i32, i32
  }
  func.func @transform_1(%arg0: i32) -> (i32, i32) {
    %c0_i32 = arith.constant 0 : i32
    %c0_i32_0 = arith.constant 0 : i32
    %c0_i32_1 = arith.constant 0 : i32
    return %c0_i32, %c0_i32_0 : i32, i32
  }
  func.func @transform_2(%arg0: i32) -> (i32, i32) {
    %c0_i32 = arith.constant 0 : i32
    %c0_i32_0 = arith.constant 0 : i32
    %c0_i32_1 = arith.constant 0 : i32
    return %c0_i32, %c0_i32_0 : i32, i32
  }
  func.func @transform_3(%arg0: i32) -> (i32, i32) {
    %c0_i32 = arith.constant 0 : i32
    %c0_i32_0 = arith.constant 0 : i32
    %c0_i32_1 = arith.constant 0 : i32
    return %c0_i32, %c0_i32_0 : i32, i32
  }
  func.func @transform_4(%arg0: i32) -> (i32, i32) {
    %c0_i32 = arith.constant 0 : i32
    %c0_i32_0 = arith.constant 0 : i32
    %c0_i32_1 = arith.constant 0 : i32
    return %c0_i32, %c0_i32_0 : i32, i32
  }
  func.func @transform_5(%arg0: i32) -> (i32, i32) {
    %c0_i32 = arith.constant 0 : i32
    %c0_i32_0 = arith.constant 0 : i32
    %c0_i32_1 = arith.constant 0 : i32
    return %c0_i32, %c0_i32_0 : i32, i32
  }
  func.func @transform_6(%arg0: i32) -> (i32, i32) {
    %c0_i32 = arith.constant 0 : i32
    %c0_i32_0 = arith.constant 0 : i32
    %c0_i32_1 = arith.constant 0 : i32
    return %c0_i32, %c0_i32_0 : i32, i32
  }
}

module attributes {stable_mosaic.version = 11 : i64} {
  func.func @_conv_pool_kernel(%arg0: i32, %arg1: memref<500x88xf32, #tpu.memory_space<vmem>>, %arg2: memref<500x88xf32, #tpu.memory_space<vmem>>, %arg3: memref<500x88xf32, #tpu.memory_space<vmem>>, %arg4: memref<500x88xf32, #tpu.memory_space<vmem>>, %arg5: memref<50x500xf32, #tpu.memory_space<vmem>>, %arg6: memref<50x1xf32, #tpu.memory_space<vmem>>, %arg7: memref<50x88xf32, #tpu.memory_space<vmem>>) attributes {dimension_semantics = [#tpu.dimension_semantics<arbitrary>], iteration_bounds = array<i64: 1>, scalar_prefetch = 0 : i64, scratch_operands = 0 : i64, tpu.core_type = #tpu.core_type<tc>, window_params = [{pipeline_mode = #tpu.pipeline_mode<synchronous>, transform_indices = @transform_0, window_bounds = array<i64: 500, 88>}, {pipeline_mode = #tpu.pipeline_mode<synchronous>, transform_indices = @transform_1, window_bounds = array<i64: 500, 88>}, {pipeline_mode = #tpu.pipeline_mode<synchronous>, transform_indices = @transform_2, window_bounds = array<i64: 500, 88>}, {pipeline_mode = #tpu.pipeline_mode<synchronous>, transform_indices = @transform_3, window_bounds = array<i64: 500, 88>}, {pipeline_mode = #tpu.pipeline_mode<synchronous>, transform_indices = @transform_4, window_bounds = array<i64: 50, 500>}, {pipeline_mode = #tpu.pipeline_mode<synchronous>, transform_indices = @transform_5, window_bounds = array<i64: 50, 1>}, {pipeline_mode = #tpu.pipeline_mode<synchronous>, transform_indices = @transform_6, window_bounds = array<i64: 50, 88>}]} {
    %c0 = arith.constant 0 : index
    %c0_0 = arith.constant 0 : index
    %0 = vector.load %arg5[%c0, %c0_0] : memref<50x500xf32, #tpu.memory_space<vmem>>, vector<50x500xf32>
    %c0_1 = arith.constant 0 : index
    %c0_2 = arith.constant 0 : index
    %1 = vector.load %arg1[%c0_1, %c0_2] : memref<500x88xf32, #tpu.memory_space<vmem>>, vector<500x88xf32>
    %cst = arith.constant dense<0.000000e+00> : vector<50x88xf32>
    %2 = tpu.matmul %0, %1, %cst {dimension_numbers = #tpu.dot_dimension_numbers<[1], [0], [0], [1], [0, 0, 1, 1], [], []>} : vector<50x500xf32>, vector<500x88xf32>, vector<50x88xf32> -> vector<50x88xf32>
    %c0_3 = arith.constant 0 : index
    %c0_4 = arith.constant 0 : index
    %3 = vector.load %arg2[%c0_3, %c0_4] : memref<500x88xf32, #tpu.memory_space<vmem>>, vector<500x88xf32>
    %cst_5 = arith.constant dense<0.000000e+00> : vector<50x88xf32>
    %4 = tpu.matmul %0, %3, %cst_5 {dimension_numbers = #tpu.dot_dimension_numbers<[1], [0], [0], [1], [0, 0, 1, 1], [], []>} : vector<50x500xf32>, vector<500x88xf32>, vector<50x88xf32> -> vector<50x88xf32>
    %5 = arith.maximumf %2, %4 : vector<50x88xf32>
    %c0_6 = arith.constant 0 : index
    %c0_7 = arith.constant 0 : index
    %6 = vector.load %arg3[%c0_6, %c0_7] : memref<500x88xf32, #tpu.memory_space<vmem>>, vector<500x88xf32>
    %cst_8 = arith.constant dense<0.000000e+00> : vector<50x88xf32>
    %7 = tpu.matmul %0, %6, %cst_8 {dimension_numbers = #tpu.dot_dimension_numbers<[1], [0], [0], [1], [0, 0, 1, 1], [], []>} : vector<50x500xf32>, vector<500x88xf32>, vector<50x88xf32> -> vector<50x88xf32>
    %8 = arith.maximumf %5, %7 : vector<50x88xf32>
    %c0_9 = arith.constant 0 : index
    %c0_10 = arith.constant 0 : index
    %9 = vector.load %arg4[%c0_9, %c0_10] : memref<500x88xf32, #tpu.memory_space<vmem>>, vector<500x88xf32>
    %cst_11 = arith.constant dense<0.000000e+00> : vector<50x88xf32>
    %10 = tpu.matmul %0, %9, %cst_11 {dimension_numbers = #tpu.dot_dimension_numbers<[1], [0], [0], [1], [0, 0, 1, 1], [], []>} : vector<50x500xf32>, vector<500x88xf32>, vector<50x88xf32> -> vector<50x88xf32>
    %11 = arith.maximumf %8, %10 : vector<50x88xf32>
    %c0_12 = arith.constant 0 : index
    %c0_13 = arith.constant 0 : index
    %12 = vector.load %arg6[%c0_12, %c0_13] : memref<50x1xf32, #tpu.memory_space<vmem>>, vector<50x1xf32>
    %13 = vector.broadcast %12 : vector<50x1xf32> to vector<50x88xf32>
    %14 = arith.addf %11, %13 : vector<50x88xf32>
    %cst_14 = arith.constant 0.000000e+00 : f32
    %15 = vector.broadcast %cst_14 : f32 to vector<50x88xf32>
    %16 = arith.cmpf ogt, %14, %15 : vector<50x88xf32>
    %cst_15 = arith.constant 0.00999999977 : f32
    %17 = vector.broadcast %cst_15 : f32 to vector<50x88xf32>
    %18 = arith.mulf %17, %14 : vector<50x88xf32>
    %19 = arith.select %16, %14, %18 : vector<50x88xi1>, vector<50x88xf32>
    %c0_16 = arith.constant 0 : index
    %c0_17 = arith.constant 0 : index
    %20 = vector.load %arg7[%c0_16, %c0_17] : memref<50x88xf32, #tpu.memory_space<vmem>>, vector<50x88xf32>
    tpu.vector_store %arg7[%c0_16, %c0_17], %19 {strides = array<i32>} : memref<50x88xf32, #tpu.memory_space<vmem>>, vector<50x88xf32>,
    return
  }
  func.func @transform_0(%arg0: i32) -> (i32, i32) {
    %c0_i32 = arith.constant 0 : i32
    %c0_i32_0 = arith.constant 0 : i32
    %c0_i32_1 = arith.constant 0 : i32
    return %c0_i32, %c0_i32_0 : i32, i32
  }
  func.func @transform_1(%arg0: i32) -> (i32, i32) {
    %c0_i32 = arith.constant 0 : i32
    %c0_i32_0 = arith.constant 0 : i32
    %c0_i32_1 = arith.constant 0 : i32
    return %c0_i32, %c0_i32_0 : i32, i32
  }
  func.func @transform_2(%arg0: i32) -> (i32, i32) {
    %c0_i32 = arith.constant 0 : i32
    %c0_i32_0 = arith.constant 0 : i32
    %c0_i32_1 = arith.constant 0 : i32
    return %c0_i32, %c0_i32_0 : i32, i32
  }
  func.func @transform_3(%arg0: i32) -> (i32, i32) {
    %c0_i32 = arith.constant 0 : i32
    %c0_i32_0 = arith.constant 0 : i32
    %c0_i32_1 = arith.constant 0 : i32
    return %c0_i32, %c0_i32_0 : i32, i32
  }
  func.func @transform_4(%arg0: i32) -> (i32, i32) {
    %c0_i32 = arith.constant 0 : i32
    %c0_i32_0 = arith.constant 0 : i32
    %c0_i32_1 = arith.constant 0 : i32
    return %c0_i32, %c0_i32_0 : i32, i32
  }
  func.func @transform_5(%arg0: i32) -> (i32, i32) {
    %c0_i32 = arith.constant 0 : i32
    %c0_i32_0 = arith.constant 0 : i32
    %c0_i32_1 = arith.constant 0 : i32
    return %c0_i32, %c0_i32_0 : i32, i32
  }
  func.func @transform_6(%arg0: i32) -> (i32, i32) {
    %c0_i32 = arith.constant 0 : i32
    %c0_i32_0 = arith.constant 0 : i32
    %c0_i32_1 = arith.constant 0 : i32
    return %c0_i32, %c0_i32_0 : i32, i32
  }
}

module attributes {stable_mosaic.version = 11 : i64} {
  func.func @_fc_kernel(%arg0: i32, %arg1: memref<2x2200xf32, #tpu.memory_space<vmem>>, %arg2: memref<2200x400xbf16, #tpu.memory_space<vmem>>, %arg3: memref<1x400xf32, #tpu.memory_space<vmem>>, %arg4: memref<2x400xf32, #tpu.memory_space<vmem>>) attributes {dimension_semantics = [#tpu.dimension_semantics<arbitrary>], iteration_bounds = array<i64: 1>, scalar_prefetch = 0 : i64, scratch_operands = 0 : i64, tpu.core_type = #tpu.core_type<tc>, window_params = [{pipeline_mode = #tpu.pipeline_mode<synchronous>, transform_indices = @transform_0, window_bounds = array<i64: 2, 2200>}, {pipeline_mode = #tpu.pipeline_mode<synchronous>, transform_indices = @transform_1, window_bounds = array<i64: 2200, 400>}, {pipeline_mode = #tpu.pipeline_mode<synchronous>, transform_indices = @transform_2, window_bounds = array<i64: 1, 400>}, {pipeline_mode = #tpu.pipeline_mode<synchronous>, transform_indices = @transform_3, window_bounds = array<i64: 2, 400>}]} {
    %c0 = arith.constant 0 : index
    %c0_0 = arith.constant 0 : index
    %0 = vector.load %arg2[%c0, %c0_0] : memref<2200x400xbf16, #tpu.memory_space<vmem>>, vector<2200x400xbf16>
    %1 = arith.extf %0 : vector<2200x400xbf16> to vector<2200x400xf32>
    %c0_1 = arith.constant 0 : index
    %c0_2 = arith.constant 0 : index
    %2 = vector.load %arg1[%c0_1, %c0_2] : memref<2x2200xf32, #tpu.memory_space<vmem>>, vector<2x2200xf32>
    %cst = arith.constant dense<0.000000e+00> : vector<2x400xf32>
    %3 = tpu.matmul %2, %1, %cst {dimension_numbers = #tpu.dot_dimension_numbers<[1], [0], [0], [1], [0, 0, 1, 1], [], []>} : vector<2x2200xf32>, vector<2200x400xf32>, vector<2x400xf32> -> vector<2x400xf32>
    %c0_3 = arith.constant 0 : index
    %c0_4 = arith.constant 0 : index
    %4 = vector.load %arg3[%c0_3, %c0_4] : memref<1x400xf32, #tpu.memory_space<vmem>>, vector<1x400xf32>
    %5 = vector.broadcast %4 : vector<1x400xf32> to vector<2x400xf32>
    %6 = arith.addf %3, %5 : vector<2x400xf32>
    %cst_5 = arith.constant 0.000000e+00 : f32
    %7 = vector.broadcast %cst_5 : f32 to vector<2x400xf32>
    %8 = arith.cmpf ogt, %6, %7 : vector<2x400xf32>
    %cst_6 = arith.constant 0.00999999977 : f32
    %9 = vector.broadcast %cst_6 : f32 to vector<2x400xf32>
    %10 = arith.mulf %9, %6 : vector<2x400xf32>
    %11 = arith.select %8, %6, %10 : vector<2x400xi1>, vector<2x400xf32>
    %c0_7 = arith.constant 0 : index
    %c0_8 = arith.constant 0 : index
    %12 = vector.load %arg4[%c0_7, %c0_8] : memref<2x400xf32, #tpu.memory_space<vmem>>, vector<2x400xf32>
    tpu.vector_store %arg4[%c0_7, %c0_8], %11 {strides = array<i32>} : memref<2x400xf32, #tpu.memory_space<vmem>>, vector<2x400xf32>,
    return
  }
  func.func @transform_0(%arg0: i32) -> (i32, i32) {
    %c0_i32 = arith.constant 0 : i32
    %c0_i32_0 = arith.constant 0 : i32
    %c0_i32_1 = arith.constant 0 : i32
    return %c0_i32, %c0_i32_0 : i32, i32
  }
  func.func @transform_1(%arg0: i32) -> (i32, i32) {
    %c0_i32 = arith.constant 0 : i32
    %c0_i32_0 = arith.constant 0 : i32
    %c0_i32_1 = arith.constant 0 : i32
    return %c0_i32, %c0_i32_0 : i32, i32
  }
  func.func @transform_2(%arg0: i32) -> (i32, i32) {
    %c0_i32 = arith.constant 0 : i32
    %c0_i32_0 = arith.constant 0 : i32
    %c0_i32_1 = arith.constant 0 : i32
    return %c0_i32, %c0_i32_0 : i32, i32
  }
  func.func @transform_3(%arg0: i32) -> (i32, i32) {
    %c0_i32 = arith.constant 0 : i32
    %c0_i32_0 = arith.constant 0 : i32
    %c0_i32_1 = arith.constant 0 : i32
    return %c0_i32, %c0_i32_0 : i32, i32
  }
}

</mosaic_0001>

<llo_original>
// kernel: lenet_forward.3
$region0: #{lenet_forward.3}
  #allocation0 [shape = 'u32[]', space=smem, size = 0x4, offset = 0x4, fixed_abs, tag = 'smem constant byte address 0x4 - core index']
  #allocation1 [shape = 'u32[144,128]{1,0:T(1,128)}', space=vmem, size = 0x12000, scoped, tag = 'internal scratch']
  %s0 = inlined_call_operand.vmem [shape: f32[25,624], index: 0, kind: input, shape index: {}]
  %s1 = inlined_call_operand.vmem [shape: f32[25,624], index: 1, kind: input, shape index: {}]
  %s2 = inlined_call_operand.vmem [shape: f32[25,624], index: 2, kind: input, shape index: {}]
  %s3 = inlined_call_operand.vmem [shape: f32[25,624], index: 3, kind: input, shape index: {}]
  %s4 = inlined_call_operand.vmem [shape: f32[20,25], index: 4, kind: input, shape index: {}]
  %s5 = inlined_call_operand.vmem [shape: f32[20,1], index: 5, kind: input, shape index: {}]
  %s6 = inlined_call_operand.vmem [shape: f32[20,624], index: 6, kind: output, shape index: {}]
  %s7 = sld [smem:[#allocation0]]
  $region34: #{lenet_forward.3} parent=0
    _
  %s9 = ssub.s32 1, %s7
  %s10 = scalar_select 0, %s9, %s7
  // Predicated region
  $region2: #{lenet_forward.3} parent=0 // pred_check
    _
  $region3: #{lenet_forward.3} parent=0 // pred_check_branch
    %12 = sbr.rel (0) target = $region5
  $region4: #{lenet_forward.3} parent=0 // pred_region
    _
  $region5: #{lenet_forward.3} parent=0 // pred_fallthru
    _
  // Predicated region
  $region6: #{lenet_forward.3} parent=0 // pred_check
    _
  $region7: #{lenet_forward.3} parent=0 // pred_check_branch
    %14 = sbr.rel (0) target = $region9
  $region8: #{lenet_forward.3} parent=0 // pred_region
    _
  $region9: #{lenet_forward.3} parent=0 // pred_fallthru
    _
  // Predicated region
  $region10: #{lenet_forward.3} parent=0 // pred_check
    _
  $region11: #{lenet_forward.3} parent=0 // pred_check_branch
    %16 = sbr.rel (0) target = $region13
  $region12: #{lenet_forward.3} parent=0 // pred_region
    _
  $region13: #{lenet_forward.3} parent=0 // pred_fallthru
    _
  // Predicated region
  $region14: #{lenet_forward.3} parent=0 // pred_check
    _
  $region15: #{lenet_forward.3} parent=0 // pred_check_branch
    %18 = sbr.rel (0) target = $region17
  $region16: #{lenet_forward.3} parent=0 // pred_region
    _
  $region17: #{lenet_forward.3} parent=0 // pred_fallthru
    _
  // Predicated region
  $region18: #{lenet_forward.3} parent=0 // pred_check
    _
  $region19: #{lenet_forward.3} parent=0 // pred_check_branch
    %20 = sbr.rel (0) target = $region21
  $region20: #{lenet_forward.3} parent=0 // pred_region
    _
  $region21: #{lenet_forward.3} parent=0 // pred_fallthru
    _
  // Predicated region
  $region22: #{lenet_forward.3} parent=0 // pred_check
    _
  $region23: #{lenet_forward.3} parent=0 // pred_check_branch
    %22 = sbr.rel (0) target = $region25
  $region24: #{lenet_forward.3} parent=0 // pred_region
    _
  $region25: #{lenet_forward.3} parent=0 // pred_fallthru
    _
  %v23 = vld [vmem:[%s4] sm:$0xff]
  %v24 = vld [vmem:[%s4 + $0x8] sm:$0xff]
  %v25 = vld [vmem:[%s4 + $0x10] sm:$0xf]
  %v26 = vld [vmem:[%s0] sm:$0xff]
  %v27 = vld [vmem:[%s0 + $0x8] sm:$0xff]
  %v28 = vld [vmem:[%s0 + $0x10] sm:$0xff]
  %v29 = vld [vmem:[%s0 + $0x18] sm:$0xff]
  %v30 = vld [vmem:[%s0 + $0x20] sm:$0xff]
  %v31 = vld [vmem:[%s0 + $0x28] sm:$0xff]
  %v32 = vld [vmem:[%s0 + $0x30] sm:$0xff]
  %v33 = vld [vmem:[%s0 + $0x38] sm:$0xff]
  %v34 = vld [vmem:[%s0 + $0x40] sm:$0xff]
  %v35 = vld [vmem:[%s0 + $0x48] sm:$0xff]
  %v36 = vld [vmem:[%s0 + $0x50] sm:$0xff]
  %v37 = vld [vmem:[%s0 + $0x58] sm:$0xff]
  %v38 = vld [vmem:[%s0 + $0x60] sm:$0xff]
  %v39 = vld [vmem:[%s0 + $0x68] sm:$0xff]
  %v40 = vld [vmem:[%s0 + $0x70] sm:$0xff]
  %v41 = vld [vmem:[%s0 + $0x78] sm:$0x1]
  %v42 = vld [vmem:[%s0 + $0x80] sm:$0x1]
  %v43 = vld [vmem:[%s0 + $0x88] sm:$0x1]
  %v44 = vld [vmem:[%s0 + $0x90] sm:$0x1]
  %v45 = vld [vmem:[%s0 + $0x98] sm:$0x1]
  %vm46 = vcmask 203776
  %v48 = vsel %vm46, %v23, 0
  %v51 = vsel %vm46, %v24, 0
  %v54 = vsel %vm46, %v25, 0
  %vm56 = vcmask 1040384
  %v58 = vsel %vm56, %v41, 0
  %v61 = vsel %vm56, %v42, 0
  %v64 = vsel %vm56, %v43, 0
  %v67 = vsel %vm56, %v44, 0
  %v70 = vsel %vm56, %v45, 0
  %72 = vmatprep.subr.mxu0 0.0
  %73 = vmatpush1.msra.mxu0 0.0
  %74 = vmatprep.subr.mxu0 0.0
  %75 = vmatpush1.msra.mxu0 0.0
  %76 = vmatprep.subr.mxu0 0.0
  %77 = vmatpush1.msra.mxu0 0.0
  %78 = vmatprep.subr.mxu0 0.0
  %79 = vmatpush1.msra.mxu0 0.0
  %80 = vmatprep.subr.mxu0 0.0
  %81 = vmatpush1.msra.mxu0 0.0
  %82 = vmatprep.subr.mxu0 0.0
  %83 = vmatpush1.msra.mxu0 0.0
  %84 = vmatprep.subr.mxu0 0.0
  %85 = vmatpush1.msra.mxu0 0.0
  %86 = vmatprep.subr.mxu0 0.0
  %87 = vmatpush1.msra.mxu0 0.0
  %88 = vmatprep.subr.mxu0 0.0
  %89 = vmatpush1.msra.mxu0 0.0
  %90 = vmatprep.subr.mxu0 0.0
  %91 = vmatpush1.msra.mxu0 0.0
  %92 = vmatprep.subr.mxu0 0.0
  %93 = vmatpush1.msra.mxu0 0.0
  %94 = vmatprep.subr.mxu0 0.0
  %95 = vmatpush1.msra.mxu0 0.0
  %96 = vmatprep.subr.mxu0 %v61
  %97 = vmatpush1.msra.mxu0 %v58
  %98 = vmatprep.subr.mxu0 %v37
  %99 = vmatpush1.msra.mxu0 %v36
  %100 = vmatprep.subr.mxu0 %v32
  %101 = vmatpush1.msra.mxu0 %v31
  %102 = vmatprep.subr.mxu0 %v27
  %103 = vmatpush1.msra.mxu0 %v26
  %104 = vmatprep.subr.mxu0 0.0
  %105 = vmatpush2.msra.mxu0 0.0
  %106 = vmatprep.subr.mxu0 0.0
  %107 = vmatpush2.msra.mxu0 0.0
  %108 = vmatprep.subr.mxu0 0.0
  %109 = vmatpush2.msra.mxu0 0.0
  %110 = vmatprep.subr.mxu0 0.0
  %111 = vmatpush2.msra.mxu0 0.0
  %112 = vmatprep.subr.mxu0 0.0
  %113 = vmatpush2.msra.mxu0 0.0
  %114 = vmatprep.subr.mxu0 0.0
  %115 = vmatpush2.msra.mxu0 0.0
  %116 = vmatprep.subr.mxu0 0.0
  %117 = vmatpush2.msra.mxu0 0.0
  %118 = vmatprep.subr.mxu0 0.0
  %119 = vmatpush2.msra.mxu0 0.0
  %120 = vmatprep.subr.mxu0 0.0
  %121 = vmatpush2.msra.mxu0 0.0
  %122 = vmatprep.subr.mxu0 0.0
  %123 = vmatpush2.msra.mxu0 0.0
  %124 = vmatprep.subr.mxu0 0.0
  %125 = vmatpush2.msra.mxu0 0.0
  %126 = vmatprep.subr.mxu0 0.0
  %127 = vmatpush2.msra.mxu0 0.0
  %128 = vmatprep.subr.mxu0 0.0
  %129 = vmatpush2.msra.mxu0 0.0
  %130 = vmatprep.subr.mxu0 0.0
  %131 = vmatpush2.msra.mxu0 0.0
  %132 = vmatprep.subr.mxu0 0.0
  %133 = vmatpush2.msra.mxu0 0.0
  %134 = vmatprep.subr.mxu0 0.0
  %135 = vmatpush2.msra.mxu0 0.0
  %136 = vmatprep.mubr.f32.mxu0 0.0
  %137 = vmatmul.mubr.f32.gmra.mxu0 %v48
  %v138 = vpop.f32.mrf.mxu0
  %v139 = vadd.f32 0.0, %v138
  %v140 = vpop.f32.mrf.mxu0
  %v141 = vadd.f32 0.0, %v140
  %142 = vmatprep.mubr.f32.mxu0 0.0
  %143 = vmatmul.mubr.f32.gmra.mxu0 %v51
  %v144 = vpop.f32.mrf.mxu0
  %v145 = vadd.f32 0.0, %v144
  %v146 = vpop.f32.mrf.mxu0
  %v147 = vadd.f32 0.0, %v146
  %148 = vmatprep.mubr.f32.mxu0 0.0
  %149 = vmatmul.mubr.f32.gmra.mxu0 %v54
  %v150 = vpop.f32.mrf.mxu0
  %v151 = vadd.f32 0.0, %v150
  %v152 = vpop.f32.mrf.mxu0
  %v153 = vadd.f32 0.0, %v152
  %154 = vdwg.mxu0
  %155 = vmatprep.subr.mxu0 0.0
  %156 = vmatpush1.msra.mxu0 0.0
  %157 = vmatprep.subr.mxu0 0.0
  %158 = vmatpush1.msra.mxu0 0.0
  %159 = vmatprep.subr.mxu0 0.0
  %160 = vmatpush1.msra.mxu0 0.0
  %161 = vmatprep.subr.mxu0 0.0
  %162 = vmatpush1.msra.mxu0 0.0
  %163 = vmatprep.subr.mxu0 0.0
  %164 = vmatpush1.msra.mxu0 0.0
  %165 = vmatprep.subr.mxu0 0.0
  %166 = vmatpush1.msra.mxu0 0.0
  %167 = vmatprep.subr.mxu0 0.0
  %168 = vmatpush1.msra.mxu0 0.0
  %169 = vmatprep.subr.mxu0 0.0
  %170 = vmatpush1.msra.mxu0 0.0
  %171 = vmatprep.subr.mxu0 0.0
  %172 = vmatpush1.msra.mxu0 0.0
  %173 = vmatprep.subr.mxu0 0.0
  %174 = vmatpush1.msra.mxu0 0.0
  %175 = vmatprep.subr.mxu0 0.0
  %176 = vmatpush1.msra.mxu0 0.0
  %177 = vmatprep.subr.mxu0 0.0
  %178 = vmatpush1.msra.mxu0 0.0
  %179 = vmatprep.subr.mxu0 %v67
  %180 = vmatpush1.msra.mxu0 %v64
  %181 = vmatprep.subr.mxu0 %v39
  %182 = vmatpush1.msra.mxu0 %v38
  %183 = vmatprep.subr.mxu0 %v34
  %184 = vmatpush1.msra.mxu0 %v33
  %185 = vmatprep.subr.mxu0 %v29
  %186 = vmatpush1.msra.mxu0 %v28
  %187 = vmatprep.subr.mxu0 0.0
  %188 = vmatpush2.msra.mxu0 0.0
  %189 = vmatprep.subr.mxu0 0.0
  %190 = vmatpush2.msra.mxu0 0.0
  %191 = vmatprep.subr.mxu0 0.0
  %192 = vmatpush2.msra.mxu0 0.0
  %193 = vmatprep.subr.mxu0 0.0
  %194 = vmatpush2.msra.mxu0 0.0
  %195 = vmatprep.subr.mxu0 0.0
  %196 = vmatpush2.msra.mxu0 0.0
  %197 = vmatprep.subr.mxu0 0.0
  %198 = vmatpush2.msra.mxu0 0.0
  %199 = vmatprep.subr.mxu0 0.0
  %200 = vmatpush2.msra.mxu0 0.0
  %201 = vmatprep.subr.mxu0 0.0
  %202 = vmatpush2.msra.mxu0 0.0
  %203 = vmatprep.subr.mxu0 0.0
  %204 = vmatpush2.msra.mxu0 0.0
  %205 = vmatprep.subr.mxu0 0.0
  %206 = vmatpush2.msra.mxu0 0.0
  %207 = vmatprep.subr.mxu0 0.0
  %208 = vmatpush2.msra.mxu0 0.0
  %209 = vmatprep.subr.mxu0 0.0
  %210 = vmatpush2.msra.mxu0 0.0
  %211 = vmatprep.subr.mxu0 0.0
  %212 = vmatpush2.msra.mxu0 0.0
  %213 = vmatprep.subr.mxu0 0.0
  %214 = vmatpush2.msra.mxu0 0.0
  %215 = vmatprep.subr.mxu0 0.0
  %216 = vmatpush2.msra.mxu0 0.0
  %217 = vmatprep.subr.mxu0 0.0
  %218 = vmatpush2.msra.mxu0 0.0
  %219 = vmatprep.mubr.f32.mxu0 0.0
  %220 = vmatmul.mubr.f32.gmra.mxu0 %v48
  %v221 = vpop.f32.mrf.mxu0
  %v222 = vadd.f32 0.0, %v221
  %v223 = vpop.f32.mrf.mxu0
  %v224 = vadd.f32 0.0, %v223
  %225 = vmatprep.mubr.f32.mxu0 0.0
  %226 = vmatmul.mubr.f32.gmra.mxu0 %v51
  %v227 = vpop.f32.mrf.mxu0
  %v228 = vadd.f32 0.0, %v227
  %v229 = vpop.f32.mrf.mxu0
  %v230 = vadd.f32 0.0, %v229
  %231 = vmatprep.mubr.f32.mxu0 0.0
  %232 = vmatmul.mubr.f32.gmra.mxu0 %v54
  %v233 = vpop.f32.mrf.mxu0
  %v234 = vadd.f32 0.0, %v233
  %v235 = vpop.f32.mrf.mxu0
  %v236 = vadd.f32 0.0, %v235
  %237 = vdwg.mxu0
  %238 = vmatprep.subr.mxu0 0.0
  %239 = vmatpush1.msra.mxu0 0.0
  %240 = vmatprep.subr.mxu0 0.0
  %241 = vmatpush1.msra.mxu0 0.0
  %242 = vmatprep.subr.mxu0 0.0
  %243 = vmatpush1.msra.mxu0 0.0
  %244 = vmatprep.subr.mxu0 0.0
  %245 = vmatpush1.msra.mxu0 0.0
  %246 = vmatprep.subr.mxu0 0.0
  %247 = vmatpush1.msra.mxu0 0.0
  %248 = vmatprep.subr.mxu0 0.0
  %249 = vmatpush1.msra.mxu0 0.0
  %250 = vmatprep.subr.mxu0 0.0
  %251 = vmatpush1.msra.mxu0 0.0
  %252 = vmatprep.subr.mxu0 0.0
  %253 = vmatpush1.msra.mxu0 0.0
  %254 = vmatprep.subr.mxu0 0.0
  %255 = vmatpush1.msra.mxu0 0.0
  %256 = vmatprep.subr.mxu0 0.0
  %257 = vmatpush1.msra.mxu0 0.0
  %258 = vmatprep.subr.mxu0 0.0
  %259 = vmatpush1.msra.mxu0 0.0
  %260 = vmatprep.subr.mxu0 0.0
  %261 = vmatpush1.msra.mxu0 0.0
  %262 = vmatprep.subr.mxu0 0.0
  %263 = vmatpush1.msra.mxu0 %v70
  %264 = vmatprep.subr.mxu0 0.0
  %265 = vmatpush1.msra.mxu0 %v40
  %266 = vmatprep.subr.mxu0 0.0
  %267 = vmatpush1.msra.mxu0 %v35
  %268 = vmatprep.subr.mxu0 0.0
  %269 = vmatpush1.msra.mxu0 %v30
  %270 = vmatprep.subr.mxu0 0.0
  %271 = vmatpush2.msra.mxu0 0.0
  %272 = vmatprep.subr.mxu0 0.0
  %273 = vmatpush2.msra.mxu0 0.0
  %274 = vmatprep.subr.mxu0 0.0
  %275 = vmatpush2.msra.mxu0 0.0
  %276 = vmatprep.subr.mxu0 0.0
  %277 = vmatpush2.msra.mxu0 0.0
  %278 = vmatprep.subr.mxu0 0.0
  %279 = vmatpush2.msra.mxu0 0.0
  %280 = vmatprep.subr.mxu0 0.0
  %281 = vmatpush2.msra.mxu0 0.0
  %282 = vmatprep.subr.mxu0 0.0
  %283 = vmatpush2.msra.mxu0 0.0
  %284 = vmatprep.subr.mxu0 0.0
  %285 = vmatpush2.msra.mxu0 0.0
  %286 = vmatprep.subr.mxu0 0.0
  %287 = vmatpush2.msra.mxu0 0.0
  %288 = vmatprep.subr.mxu0 0.0
  %289 = vmatpush2.msra.mxu0 0.0
  %290 = vmatprep.subr.mxu0 0.0
  %291 = vmatpush2.msra.mxu0 0.0
  %292 = vmatprep.subr.mxu0 0.0
  %293 = vmatpush2.msra.mxu0 0.0
  %294 = vmatprep.subr.mxu0 0.0
  %295 = vmatpush2.msra.mxu0 0.0
  %296 = vmatprep.subr.mxu0 0.0
  %297 = vmatpush2.msra.mxu0 0.0
  %298 = vmatprep.subr.mxu0 0.0
  %299 = vmatpush2.msra.mxu0 0.0
  %300 = vmatprep.subr.mxu0 0.0
  %301 = vmatpush2.msra.mxu0 0.0
  %302 = vmatprep.mubr.f32.mxu0 0.0
  %303 = vmatmul.mubr.f32.gmra.mxu0 %v48
  %v304 = vpop.f32.mrf.mxu0
  %v305 = vadd.f32 0.0, %v304
  %v306 = vpop.f32.mrf.mxu0
  %307 = vmatprep.mubr.f32.mxu0 0.0
  %308 = vmatmul.mubr.f32.gmra.mxu0 %v51
  %v309 = vpop.f32.mrf.mxu0
  %v310 = vadd.f32 0.0, %v309
  %v311 = vpop.f32.mrf.mxu0
  %312 = vmatprep.mubr.f32.mxu0 0.0
  %313 = vmatmul.mubr.f32.gmra.mxu0 %v54
  %v314 = vpop.f32.mrf.mxu0
  %v315 = vadd.f32 0.0, %v314
  %v316 = vpop.f32.mrf.mxu0
  %317 = vdwg.mxu0
  %v318 = vld [vmem:[%s1] sm:$0xff]
  %v319 = vld [vmem:[%s1 + $0x8] sm:$0xff]
  %v320 = vld [vmem:[%s1 + $0x10] sm:$0xff]
  %v321 = vld [vmem:[%s1 + $0x18] sm:$0xff]
  %v322 = vld [vmem:[%s1 + $0x20] sm:$0xff]
  %v323 = vld [vmem:[%s1 + $0x28] sm:$0xff]
  %v324 = vld [vmem:[%s1 + $0x30] sm:$0xff]
  %v325 = vld [vmem:[%s1 + $0x38] sm:$0xff]
  %v326 = vld [vmem:[%s1 + $0x40] sm:$0xff]
  %v327 = vld [vmem:[%s1 + $0x48] sm:$0xff]
  %v328 = vld [vmem:[%s1 + $0x50] sm:$0xff]
  %v329 = vld [vmem:[%s1 + $0x58] sm:$0xff]
  %v330 = vld [vmem:[%s1 + $0x60] sm:$0xff]
  %v331 = vld [vmem:[%s1 + $0x68] sm:$0xff]
  %v332 = vld [vmem:[%s1 + $0x70] sm:$0xff]
  %v333 = vld [vmem:[%s1 + $0x78] sm:$0x1]
  %v334 = vld [vmem:[%s1 + $0x80] sm:$0x1]
  %v335 = vld [vmem:[%s1 + $0x88] sm:$0x1]
  %v336 = vld [vmem:[%s1 + $0x90] sm:$0x1]
  %v337 = vld [vmem:[%s1 + $0x98] sm:$0x1]
  %v339 = vsel %vm56, %v333, 0
  %v342 = vsel %vm56, %v334, 0
  %v345 = vsel %vm56, %v335, 0
  %v348 = vsel %vm56, %v336, 0
  %v351 = vsel %vm56, %v337, 0
  %353 = vmatprep.subr.mxu0 0.0
  %354 = vmatpush1.msra.mxu0 0.0
  %355 = vmatprep.subr.mxu0 0.0
  %356 = vmatpush1.msra.mxu0 0.0
  %357 = vmatprep.subr.mxu0 0.0
  %358 = vmatpush1.msra.mxu0 0.0
  %359 = vmatprep.subr.mxu0 0.0
  %360 = vmatpush1.msra.mxu0 0.0
  %361 = vmatprep.subr.mxu0 0.0
  %362 = vmatpush1.msra.mxu0 0.0
  %363 = vmatprep.subr.mxu0 0.0
  %364 = vmatpush1.msra.mxu0 0.0
  %365 = vmatprep.subr.mxu0 0.0
  %366 = vmatpush1.msra.mxu0 0.0
  %367 = vmatprep.subr.mxu0 0.0
  %368 = vmatpush1.msra.mxu0 0.0
  %369 = vmatprep.subr.mxu0 0.0
  %370 = vmatpush1.msra.mxu0 0.0
  %371 = vmatprep.subr.mxu0 0.0
  %372 = vmatpush1.msra.mxu0 0.0
  %373 = vmatprep.subr.mxu0 0.0
  %374 = vmatpush1.msra.mxu0 0.0
  %375 = vmatprep.subr.mxu0 0.0
  %376 = vmatpush1.msra.mxu0 0.0
  %377 = vmatprep.subr.mxu0 %v342
  %378 = vmatpush1.msra.mxu0 %v339
  %379 = vmatprep.subr.mxu0 %v329
  %380 = vmatpush1.msra.mxu0 %v328
  %381 = vmatprep.subr.mxu0 %v324
  %382 = vmatpush1.msra.mxu0 %v323
  %383 = vmatprep.subr.mxu0 %v319
  %384 = vmatpush1.msra.mxu0 %v318
  %385 = vmatprep.subr.mxu0 0.0
  %386 = vmatpush2.msra.mxu0 0.0
  %387 = vmatprep.subr.mxu0 0.0
  %388 = vmatpush2.msra.mxu0 0.0
  %389 = vmatprep.subr.mxu0 0.0
  %390 = vmatpush2.msra.mxu0 0.0
  %391 = vmatprep.subr.mxu0 0.0
  %392 = vmatpush2.msra.mxu0 0.0
  %393 = vmatprep.subr.mxu0 0.0
  %394 = vmatpush2.msra.mxu0 0.0
  %395 = vmatprep.subr.mxu0 0.0
  %396 = vmatpush2.msra.mxu0 0.0
  %397 = vmatprep.subr.mxu0 0.0
  %398 = vmatpush2.msra.mxu0 0.0
  %399 = vmatprep.subr.mxu0 0.0
  %400 = vmatpush2.msra.mxu0 0.0
  %401 = vmatprep.subr.mxu0 0.0
  %402 = vmatpush2.msra.mxu0 0.0
  %403 = vmatprep.subr.mxu0 0.0
  %404 = vmatpush2.msra.mxu0 0.0
  %405 = vmatprep.subr.mxu0 0.0
  %406 = vmatpush2.msra.mxu0 0.0
  %407 = vmatprep.subr.mxu0 0.0
  %408 = vmatpush2.msra.mxu0 0.0
  %409 = vmatprep.subr.mxu0 0.0
  %410 = vmatpush2.msra.mxu0 0.0
  %411 = vmatprep.subr.mxu0 0.0
  %412 = vmatpush2.msra.mxu0 0.0
  %413 = vmatprep.subr.mxu0 0.0
  %414 = vmatpush2.msra.mxu0 0.0
  %415 = vmatprep.subr.mxu0 0.0
  %416 = vmatpush2.msra.mxu0 0.0
  %417 = vmatprep.mubr.f32.mxu0 0.0
  %418 = vmatmul.mubr.f32.gmra.mxu0 %v48
  %v419 = vpop.f32.mrf.mxu0
  %v420 = vadd.f32 0.0, %v419
  %v421 = vpop.f32.mrf.mxu0
  %v422 = vadd.f32 0.0, %v421
  %423 = vmatprep.mubr.f32.mxu0 0.0
  %424 = vmatmul.mubr.f32.gmra.mxu0 %v51
  %v425 = vpop.f32.mrf.mxu0
  %v426 = vadd.f32 0.0, %v425
  %v427 = vpop.f32.mrf.mxu0
  %v428 = vadd.f32 0.0, %v427
  %429 = vmatprep.mubr.f32.mxu0 0.0
  %430 = vmatmul.mubr.f32.gmra.mxu0 %v54
  %v431 = vpop.f32.mrf.mxu0
  %v432 = vadd.f32 0.0, %v431
  %v433 = vpop.f32.mrf.mxu0
  %v434 = vadd.f32 0.0, %v433
  %435 = vdwg.mxu0
  %436 = vmatprep.subr.mxu0 0.0
  %437 = vmatpush1.msra.mxu0 0.0
  %438 = vmatprep.subr.mxu0 0.0
  %439 = vmatpush1.msra.mxu0 0.0
  %440 = vmatprep.subr.mxu0 0.0
  %441 = vmatpush1.msra.mxu0 0.0
  %442 = vmatprep.subr.mxu0 0.0
  %443 = vmatpush1.msra.mxu0 0.0
  %444 = vmatprep.subr.mxu0 0.0
  %445 = vmatpush1.msra.mxu0 0.0
  %446 = vmatprep.subr.mxu0 0.0
  %447 = vmatpush1.msra.mxu0 0.0
  %448 = vmatprep.subr.mxu0 0.0
  %449 = vmatpush1.msra.mxu0 0.0
  %450 = vmatprep.subr.mxu0 0.0
  %451 = vmatpush1.msra.mxu0 0.0
  %452 = vmatprep.subr.mxu0 0.0
  %453 = vmatpush1.msra.mxu0 0.0
  %454 = vmatprep.subr.mxu0 0.0
  %455 = vmatpush1.msra.mxu0 0.0
  %456 = vmatprep.subr.mxu0 0.0
  %457 = vmatpush1.msra.mxu0 0.0
  %458 = vmatprep.subr.mxu0 0.0
  %459 = vmatpush1.msra.mxu0 0.0
  %460 = vmatprep.subr.mxu0 %v348
  %461 = vmatpush1.msra.mxu0 %v345
  %462 = vmatprep.subr.mxu0 %v331
  %463 = vmatpush1.msra.mxu0 %v330
  %464 = vmatprep.subr.mxu0 %v326
  %465 = vmatpush1.msra.mxu0 %v325
  %466 = vmatprep.subr.mxu0 %v321
  %467 = vmatpush1.msra.mxu0 %v320
  %468 = vmatprep.subr.mxu0 0.0
  %469 = vmatpush2.msra.mxu0 0.0
  %470 = vmatprep.subr.mxu0 0.0
  %471 = vmatpush2.msra.mxu0 0.0
  %472 = vmatprep.subr.mxu0 0.0
  %473 = vmatpush2.msra.mxu0 0.0
  %474 = vmatprep.subr.mxu0 0.0
  %475 = vmatpush2.msra.mxu0 0.0
  %476 = vmatprep.subr.mxu0 0.0
  %477 = vmatpush2.msra.mxu0 0.0
  %478 = vmatprep.subr.mxu0 0.0
  %479 = vmatpush2.msra.mxu0 0.0
  %480 = vmatprep.subr.mxu0 0.0
  %481 = vmatpush2.msra.mxu0 0.0
  %482 = vmatprep.subr.mxu0 0.0
  %483 = vmatpush2.msra.mxu0 0.0
  %484 = vmatprep.subr.mxu0 0.0
  %485 = vmatpush2.msra.mxu0 0.0
  %486 = vmatprep.subr.mxu0 0.0
  %487 = vmatpush2.msra.mxu0 0.0
  %488 = vmatprep.subr.mxu0 0.0
  %489 = vmatpush2.msra.mxu0 0.0
  %490 = vmatprep.subr.mxu0 0.0
  %491 = vmatpush2.msra.mxu0 0.0
  %492 = vmatprep.subr.mxu0 0.0
  %493 = vmatpush2.msra.mxu0 0.0
  %494 = vmatprep.subr.mxu0 0.0
  %495 = vmatpush2.msra.mxu0 0.0
  %496 = vmatprep.subr.mxu0 0.0
  %497 = vmatpush2.msra.mxu0 0.0
  %498 = vmatprep.subr.mxu0 0.0
  %499 = vmatpush2.msra.mxu0 0.0
  %500 = vmatprep.mubr.f32.mxu0 0.0
  %501 = vmatmul.mubr.f32.gmra.mxu0 %v48
  %v502 = vpop.f32.mrf.mxu0
  %v503 = vadd.f32 0.0, %v502
  %v504 = vpop.f32.mrf.mxu0
  %v505 = vadd.f32 0.0, %v504
  %506 = vmatprep.mubr.f32.mxu0 0.0
  %507 = vmatmul.mubr.f32.gmra.mxu0 %v51
  %v508 = vpop.f32.mrf.mxu0
  %v509 = vadd.f32 0.0, %v508
  %v510 = vpop.f32.mrf.mxu0
  %v511 = vadd.f32 0.0, %v510
  %512 = vmatprep.mubr.f32.mxu0 0.0
  %513 = vmatmul.mubr.f32.gmra.mxu0 %v54
  %v514 = vpop.f32.mrf.mxu0
  %v515 = vadd.f32 0.0, %v514
  %v516 = vpop.f32.mrf.mxu0
  %v517 = vadd.f32 0.0, %v516
  %518 = vdwg.mxu0
  %519 = vmatprep.subr.mxu0 0.0
  %520 = vmatpush1.msra.mxu0 0.0
  %521 = vmatprep.subr.mxu0 0.0
  %522 = vmatpush1.msra.mxu0 0.0
  %523 = vmatprep.subr.mxu0 0.0
  %524 = vmatpush1.msra.mxu0 0.0
  %525 = vmatprep.subr.mxu0 0.0
  %526 = vmatpush1.msra.mxu0 0.0
  %527 = vmatprep.subr.mxu0 0.0
  %528 = vmatpush1.msra.mxu0 0.0
  %529 = vmatprep.subr.mxu0 0.0
  %530 = vmatpush1.msra.mxu0 0.0
  %531 = vmatprep.subr.mxu0 0.0
  %532 = vmatpush1.msra.mxu0 0.0
  %533 = vmatprep.subr.mxu0 0.0
  %534 = vmatpush1.msra.mxu0 0.0
  %535 = vmatprep.subr.mxu0 0.0
  %536 = vmatpush1.msra.mxu0 0.0
  %537 = vmatprep.subr.mxu0 0.0
  %538 = vmatpush1.msra.mxu0 0.0
  %539 = vmatprep.subr.mxu0 0.0
  %540 = vmatpush1.msra.mxu0 0.0
  %541 = vmatprep.subr.mxu0 0.0
  %542 = vmatpush1.msra.mxu0 0.0
  %543 = vmatprep.subr.mxu0 0.0
  %544 = vmatpush1.msra.mxu0 %v351
  %545 = vmatprep.subr.mxu0 0.0
  %546 = vmatpush1.msra.mxu0 %v332
  %547 = vmatprep.subr.mxu0 0.0
  %548 = vmatpush1.msra.mxu0 %v327
  %549 = vmatprep.subr.mxu0 0.0
  %550 = vmatpush1.msra.mxu0 %v322
  %551 = vmatprep.subr.mxu0 0.0
  %552 = vmatpush2.msra.mxu0 0.0
  %553 = vmatprep.subr.mxu0 0.0
  %554 = vmatpush2.msra.mxu0 0.0
  %555 = vmatprep.subr.mxu0 0.0
  %556 = vmatpush2.msra.mxu0 0.0
  %557 = vmatprep.subr.mxu0 0.0
  %558 = vmatpush2.msra.mxu0 0.0
  %559 = vmatprep.subr.mxu0 0.0
  %560 = vmatpush2.msra.mxu0 0.0
  %561 = vmatprep.subr.mxu0 0.0
  %562 = vmatpush2.msra.mxu0 0.0
  %563 = vmatprep.subr.mxu0 0.0
  %564 = vmatpush2.msra.mxu0 0.0
  %565 = vmatprep.subr.mxu0 0.0
  %566 = vmatpush2.msra.mxu0 0.0
  %567 = vmatprep.subr.mxu0 0.0
  %568 = vmatpush2.msra.mxu0 0.0
  %569 = vmatprep.subr.mxu0 0.0
  %570 = vmatpush2.msra.mxu0 0.0
  %571 = vmatprep.subr.mxu0 0.0
  %572 = vmatpush2.msra.mxu0 0.0
  %573 = vmatprep.subr.mxu0 0.0
  %574 = vmatpush2.msra.mxu0 0.0
  %575 = vmatprep.subr.mxu0 0.0
  %576 = vmatpush2.msra.mxu0 0.0
  %577 = vmatprep.subr.mxu0 0.0
  %578 = vmatpush2.msra.mxu0 0.0
  %579 = vmatprep.subr.mxu0 0.0
  %580 = vmatpush2.msra.mxu0 0.0
  %581 = vmatprep.subr.mxu0 0.0
  %582 = vmatpush2.msra.mxu0 0.0
  %583 = vmatprep.mubr.f32.mxu0 0.0
  %584 = vmatmul.mubr.f32.gmra.mxu0 %v48
  %v585 = vpop.f32.mrf.mxu0
  %v586 = vadd.f32 0.0, %v585
  %v587 = vpop.f32.mrf.mxu0
  %588 = vmatprep.mubr.f32.mxu0 0.0
  %589 = vmatmul.mubr.f32.gmra.mxu0 %v51
  %v590 = vpop.f32.mrf.mxu0
  %v591 = vadd.f32 0.0, %v590
  %v592 = vpop.f32.mrf.mxu0
  %593 = vmatprep.mubr.f32.mxu0 0.0
  %594 = vmatmul.mubr.f32.gmra.mxu0 %v54
  %v595 = vpop.f32.mrf.mxu0
  %v596 = vadd.f32 0.0, %v595
  %v597 = vpop.f32.mrf.mxu0
  %598 = vdwg.mxu0
  %v599 = vmax.f32 %v139, %v420
  %v600 = vmax.f32 %v141, %v422
  %v601 = vmax.f32 %v222, %v503
  %v602 = vmax.f32 %v224, %v505
  %v603 = vmax.f32 %v305, %v586
  %v604 = vmax.f32 %v145, %v426
  %v605 = vmax.f32 %v147, %v428
  %v606 = vmax.f32 %v228, %v509
  %v607 = vmax.f32 %v230, %v511
  %v608 = vmax.f32 %v310, %v591
  %v609 = vmax.f32 %v151, %v432
  %v610 = vmax.f32 %v153, %v434
  %v611 = vmax.f32 %v234, %v515
  %v612 = vmax.f32 %v236, %v517
  %v613 = vmax.f32 %v315, %v596
  %v614 = vld [vmem:[%s2] sm:$0xff]
  %v615 = vld [vmem:[%s2 + $0x8] sm:$0xff]
  %v616 = vld [vmem:[%s2 + $0x10] sm:$0xff]
  %v617 = vld [vmem:[%s2 + $0x18] sm:$0xff]
  %v618 = vld [vmem:[%s2 + $0x20] sm:$0xff]
  %v619 = vld [vmem:[%s2 + $0x28] sm:$0xff]
  %v620 = vld [vmem:[%s2 + $0x30] sm:$0xff]
  %v621 = vld [vmem:[%s2 + $0x38] sm:$0xff]
  %v622 = vld [vmem:[%s2 + $0x40] sm:$0xff]
  %v623 = vld [vmem:[%s2 + $0x48] sm:$0xff]
  %v624 = vld [vmem:[%s2 + $0x50] sm:$0xff]
  %v625 = vld [vmem:[%s2 + $0x58] sm:$0xff]
  %v626 = vld [vmem:[%s2 + $0x60] sm:$0xff]
  %v627 = vld [vmem:[%s2 + $0x68] sm:$0xff]
  %v628 = vld [vmem:[%s2 + $0x70] sm:$0xff]
  %v629 = vld [vmem:[%s2 + $0x78] sm:$0x1]
  %v630 = vld [vmem:[%s2 + $0x80] sm:$0x1]
  %v631 = vld [vmem:[%s2 + $0x88] sm:$0x1]
  %v632 = vld [vmem:[%s2 + $0x90] sm:$0x1]
  %v633 = vld [vmem:[%s2 + $0x98] sm:$0x1]
  %v635 = vsel %vm56, %v629, 0
  %v638 = vsel %vm56, %v630, 0
  %v641 = vsel %vm56, %v631, 0
  %v644 = vsel %vm56, %v632, 0
  %v647 = vsel %vm56, %v633, 0
  %649 = vmatprep.subr.mxu0 0.0
  %650 = vmatpush1.msra.mxu0 0.0
  %651 = vmatprep.subr.mxu0 0.0
  %652 = vmatpush1.msra.mxu0 0.0
  %653 = vmatprep.subr.mxu0 0.0
  %654 = vmatpush1.msra.mxu0 0.0
  %655 = vmatprep.subr.mxu0 0.0
  %656 = vmatpush1.msra.mxu0 0.0
  %657 = vmatprep.subr.mxu0 0.0
  %658 = vmatpush1.msra.mxu0 0.0
  %659 = vmatprep.subr.mxu0 0.0
  %660 = vmatpush1.msra.mxu0 0.0
  %661 = vmatprep.subr.mxu0 0.0
  %662 = vmatpush1.msra.mxu0 0.0
  %663 = vmatprep.subr.mxu0 0.0
  %664 = vmatpush1.msra.mxu0 0.0
  %665 = vmatprep.subr.mxu0 0.0
  %666 = vmatpush1.msra.mxu0 0.0
  %667 = vmatprep.subr.mxu0 0.0
  %668 = vmatpush1.msra.mxu0 0.0
  %669 = vmatprep.subr.mxu0 0.0
  %670 = vmatpush1.msra.mxu0 0.0
  %671 = vmatprep.subr.mxu0 0.0
  %672 = vmatpush1.msra.mxu0 0.0
  %673 = vmatprep.subr.mxu0 %v638
  %674 = vmatpush1.msra.mxu0 %v635
  %675 = vmatprep.subr.mxu0 %v625
  %676 = vmatpush1.msra.mxu0 %v624
  %677 = vmatprep.subr.mxu0 %v620
  %678 = vmatpush1.msra.mxu0 %v619
  %679 = vmatprep.subr.mxu0 %v615
  %680 = vmatpush1.msra.mxu0 %v614
  %681 = vmatprep.subr.mxu0 0.0
  %682 = vmatpush2.msra.mxu0 0.0
  %683 = vmatprep.subr.mxu0 0.0
  %684 = vmatpush2.msra.mxu0 0.0
  %685 = vmatprep.subr.mxu0 0.0
  %686 = vmatpush2.msra.mxu0 0.0
  %687 = vmatprep.subr.mxu0 0.0
  %688 = vmatpush2.msra.mxu0 0.0
  %689 = vmatprep.subr.mxu0 0.0
  %690 = vmatpush2.msra.mxu0 0.0
  %691 = vmatprep.subr.mxu0 0.0
  %692 = vmatpush2.msra.mxu0 0.0
  %693 = vmatprep.subr.mxu0 0.0
  %694 = vmatpush2.msra.mxu0 0.0
  %695 = vmatprep.subr.mxu0 0.0
  %696 = vmatpush2.msra.mxu0 0.0
  %697 = vmatprep.subr.mxu0 0.0
  %698 = vmatpush2.msra.mxu0 0.0
  %699 = vmatprep.subr.mxu0 0.0
  %700 = vmatpush2.msra.mxu0 0.0
  %701 = vmatprep.subr.mxu0 0.0
  %702 = vmatpush2.msra.mxu0 0.0
  %703 = vmatprep.subr.mxu0 0.0
  %704 = vmatpush2.msra.mxu0 0.0
  %705 = vmatprep.subr.mxu0 0.0
  %706 = vmatpush2.msra.mxu0 0.0
  %707 = vmatprep.subr.mxu0 0.0
  %708 = vmatpush2.msra.mxu0 0.0
  %709 = vmatprep.subr.mxu0 0.0
  %710 = vmatpush2.msra.mxu0 0.0
  %711 = vmatprep.subr.mxu0 0.0
  %712 = vmatpush2.msra.mxu0 0.0
  %713 = vmatprep.mubr.f32.mxu0 0.0
  %714 = vmatmul.mubr.f32.gmra.mxu0 %v48
  %v715 = vpop.f32.mrf.mxu0
  %v716 = vadd.f32 0.0, %v715
  %v717 = vpop.f32.mrf.mxu0
  %v718 = vadd.f32 0.0, %v717
  %719 = vmatprep.mubr.f32.mxu0 0.0
  %720 = vmatmul.mubr.f32.gmra.mxu0 %v51
  %v721 = vpop.f32.mrf.mxu0
  %v722 = vadd.f32 0.0, %v721
  %v723 = vpop.f32.mrf.mxu0
  %v724 = vadd.f32 0.0, %v723
  %725 = vmatprep.mubr.f32.mxu0 0.0
  %726 = vmatmul.mubr.f32.gmra.mxu0 %v54
  %v727 = vpop.f32.mrf.mxu0
  %v728 = vadd.f32 0.0, %v727
  %v729 = vpop.f32.mrf.mxu0
  %v730 = vadd.f32 0.0, %v729
  %731 = vdwg.mxu0
  %732 = vmatprep.subr.mxu0 0.0
  %733 = vmatpush1.msra.mxu0 0.0
  %734 = vmatprep.subr.mxu0 0.0
  %735 = vmatpush1.msra.mxu0 0.0
  %736 = vmatprep.subr.mxu0 0.0
  %737 = vmatpush1.msra.mxu0 0.0
  %738 = vmatprep.subr.mxu0 0.0
  %739 = vmatpush1.msra.mxu0 0.0
  %740 = vmatprep.subr.mxu0 0.0
  %741 = vmatpush1.msra.mxu0 0.0
  %742 = vmatprep.subr.mxu0 0.0
  %743 = vmatpush1.msra.mxu0 0.0
  %744 = vmatprep.subr.mxu0 0.0
  %745 = vmatpush1.msra.mxu0 0.0
  %746 = vmatprep.subr.mxu0 0.0
  %747 = vmatpush1.msra.mxu0 0.0
  %748 = vmatprep.subr.mxu0 0.0
  %749 = vmatpush1.msra.mxu0 0.0
  %750 = vmatprep.subr.mxu0 0.0
  %751 = vmatpush1.msra.mxu0 0.0
  %752 = vmatprep.subr.mxu0 0.0
  %753 = vmatpush1.msra.mxu0 0.0
  %754 = vmatprep.subr.mxu0 0.0
  %755 = vmatpush1.msra.mxu0 0.0
  %756 = vmatprep.subr.mxu0 %v644
  %757 = vmatpush1.msra.mxu0 %v641
  %758 = vmatprep.subr.mxu0 %v627
  %759 = vmatpush1.msra.mxu0 %v626
  %760 = vmatprep.subr.mxu0 %v622
  %761 = vmatpush1.msra.mxu0 %v621
  %762 = vmatprep.subr.mxu0 %v617
  %763 = vmatpush1.msra.mxu0 %v616
  %764 = vmatprep.subr.mxu0 0.0
  %765 = vmatpush2.msra.mxu0 0.0
  %766 = vmatprep.subr.mxu0 0.0
  %767 = vmatpush2.msra.mxu0 0.0
  %768 = vmatprep.subr.mxu0 0.0
  %769 = vmatpush2.msra.mxu0 0.0
  %770 = vmatprep.subr.mxu0 0.0
  %771 = vmatpush2.msra.mxu0 0.0
  %772 = vmatprep.subr.mxu0 0.0
  %773 = vmatpush2.msra.mxu0 0.0
  %774 = vmatprep.subr.mxu0 0.0
  %775 = vmatpush2.msra.mxu0 0.0
  %776 = vmatprep.subr.mxu0 0.0
  %777 = vmatpush2.msra.mxu0 0.0
  %778 = vmatprep.subr.mxu0 0.0
  %779 = vmatpush2.msra.mxu0 0.0
  %780 = vmatprep.subr.mxu0 0.0
  %781 = vmatpush2.msra.mxu0 0.0
  %782 = vmatprep.subr.mxu0 0.0
  %783 = vmatpush2.msra.mxu0 0.0
  %784 = vmatprep.subr.mxu0 0.0
  %785 = vmatpush2.msra.mxu0 0.0
  %786 = vmatprep.subr.mxu0 0.0
  %787 = vmatpush2.msra.mxu0 0.0
  %788 = vmatprep.subr.mxu0 0.0
  %789 = vmatpush2.msra.mxu0 0.0
  %790 = vmatprep.subr.mxu0 0.0
  %791 = vmatpush2.msra.mxu0 0.0
  %792 = vmatprep.subr.mxu0 0.0
  %793 = vmatpush2.msra.mxu0 0.0
  %794 = vmatprep.subr.mxu0 0.0
  %795 = vmatpush2.msra.mxu0 0.0
  %796 = vmatprep.mubr.f32.mxu0 0.0
  %797 = vmatmul.mubr.f32.gmra.mxu0 %v48
  %v798 = vpop.f32.mrf.mxu0
  %v799 = vadd.f32 0.0, %v798
  %v800 = vpop.f32.mrf.mxu0
  %v801 = vadd.f32 0.0, %v800
  %802 = vmatprep.mubr.f32.mxu0 0.0
  %803 = vmatmul.mubr.f32.gmra.mxu0 %v51
  %v804 = vpop.f32.mrf.mxu0
  %v805 = vadd.f32 0.0, %v804
  %v806 = vpop.f32.mrf.mxu0
  %v807 = vadd.f32 0.0, %v806
  %808 = vmatprep.mubr.f32.mxu0 0.0
  %809 = vmatmul.mubr.f32.gmra.mxu0 %v54
  %v810 = vpop.f32.mrf.mxu0
  %v811 = vadd.f32 0.0, %v810
  %v812 = vpop.f32.mrf.mxu0
  %v813 = vadd.f32 0.0, %v812
  %814 = vdwg.mxu0
  %815 = vmatprep.subr.mxu0 0.0
  %816 = vmatpush1.msra.mxu0 0.0
  %817 = vmatprep.subr.mxu0 0.0
  %818 = vmatpush1.msra.mxu0 0.0
  %819 = vmatprep.subr.mxu0 0.0
  %820 = vmatpush1.msra.mxu0 0.0
  %821 = vmatprep.subr.mxu0 0.0
  %822 = vmatpush1.msra.mxu0 0.0
  %823 = vmatprep.subr.mxu0 0.0
  %824 = vmatpush1.msra.mxu0 0.0
  %825 = vmatprep.subr.mxu0 0.0
  %826 = vmatpush1.msra.mxu0 0.0
  %827 = vmatprep.subr.mxu0 0.0
  %828 = vmatpush1.msra.mxu0 0.0
  %829 = vmatprep.subr.mxu0 0.0
  %830 = vmatpush1.msra.mxu0 0.0
  %831 = vmatprep.subr.mxu0 0.0
  %832 = vmatpush1.msra.mxu0 0.0
  %833 = vmatprep.subr.mxu0 0.0
  %834 = vmatpush1.msra.mxu0 0.0
  %835 = vmatprep.subr.mxu0 0.0
  %836 = vmatpush1.msra.mxu0 0.0
  %837 = vmatprep.subr.mxu0 0.0
  %838 = vmatpush1.msra.mxu0 0.0
  %839 = vmatprep.subr.mxu0 0.0
  %840 = vmatpush1.msra.mxu0 %v647
  %841 = vmatprep.subr.mxu0 0.0
  %842 = vmatpush1.msra.mxu0 %v628
  %843 = vmatprep.subr.mxu0 0.0
  %844 = vmatpush1.msra.mxu0 %v623
  %845 = vmatprep.subr.mxu0 0.0
  %846 = vmatpush1.msra.mxu0 %v618
  %847 = vmatprep.subr.mxu0 0.0
  %848 = vmatpush2.msra.mxu0 0.0
  %849 = vmatprep.subr.mxu0 0.0
  %850 = vmatpush2.msra.mxu0 0.0
  %851 = vmatprep.subr.mxu0 0.0
  %852 = vmatpush2.msra.mxu0 0.0
  %853 = vmatprep.subr.mxu0 0.0
  %854 = vmatpush2.msra.mxu0 0.0
  %855 = vmatprep.subr.mxu0 0.0
  %856 = vmatpush2.msra.mxu0 0.0
  %857 = vmatprep.subr.mxu0 0.0
  %858 = vmatpush2.msra.mxu0 0.0
  %859 = vmatprep.subr.mxu0 0.0
  %860 = vmatpush2.msra.mxu0 0.0
  %861 = vmatprep.subr.mxu0 0.0
  %862 = vmatpush2.msra.mxu0 0.0
  %863 = vmatprep.subr.mxu0 0.0
  %864 = vmatpush2.msra.mxu0 0.0
  %865 = vmatprep.subr.mxu0 0.0
  %866 = vmatpush2.msra.mxu0 0.0
  %867 = vmatprep.subr.mxu0 0.0
  %868 = vmatpush2.msra.mxu0 0.0
  %869 = vmatprep.subr.mxu0 0.0
  %870 = vmatpush2.msra.mxu0 0.0
  %871 = vmatprep.subr.mxu0 0.0
  %872 = vmatpush2.msra.mxu0 0.0
  %873 = vmatprep.subr.mxu0 0.0
  %874 = vmatpush2.msra.mxu0 0.0
  %875 = vmatprep.subr.mxu0 0.0
  %876 = vmatpush2.msra.mxu0 0.0
  %877 = vmatprep.subr.mxu0 0.0
  %878 = vmatpush2.msra.mxu0 0.0
  %879 = vmatprep.mubr.f32.mxu0 0.0
  %880 = vmatmul.mubr.f32.gmra.mxu0 %v48
  %v881 = vpop.f32.mrf.mxu0
  %v882 = vadd.f32 0.0, %v881
  %v883 = vpop.f32.mrf.mxu0
  %884 = vmatprep.mubr.f32.mxu0 0.0
  %885 = vmatmul.mubr.f32.gmra.mxu0 %v51
  %v886 = vpop.f32.mrf.mxu0
  %v887 = vadd.f32 0.0, %v886
  %v888 = vpop.f32.mrf.mxu0
  %889 = vmatprep.mubr.f32.mxu0 0.0
  %890 = vmatmul.mubr.f32.gmra.mxu0 %v54
  %v891 = vpop.f32.mrf.mxu0
  %v892 = vadd.f32 0.0, %v891
  %v893 = vpop.f32.mrf.mxu0
  %894 = vdwg.mxu0
  %v895 = vmax.f32 %v599, %v716
  %v896 = vmax.f32 %v600, %v718
  %v897 = vmax.f32 %v601, %v799
  %v898 = vmax.f32 %v602, %v801
  %v899 = vmax.f32 %v603, %v882
  %v900 = vmax.f32 %v604, %v722
  %v901 = vmax.f32 %v605, %v724
  %v902 = vmax.f32 %v606, %v805
  %v903 = vmax.f32 %v607, %v807
  %v904 = vmax.f32 %v608, %v887
  %v905 = vmax.f32 %v609, %v728
  %v906 = vmax.f32 %v610, %v730
  %v907 = vmax.f32 %v611, %v811
  %v908 = vmax.f32 %v612, %v813
  %v909 = vmax.f32 %v613, %v892
  %v910 = vld [vmem:[%s3] sm:$0xff]
  %v911 = vld [vmem:[%s3 + $0x8] sm:$0xff]
  %v912 = vld [vmem:[%s3 + $0x10] sm:$0xff]
  %v913 = vld [vmem:[%s3 + $0x18] sm:$0xff]
  %v914 = vld [vmem:[%s3 + $0x20] sm:$0xff]
  %v915 = vld [vmem:[%s3 + $0x28] sm:$0xff]
  %v916 = vld [vmem:[%s3 + $0x30] sm:$0xff]
  %v917 = vld [vmem:[%s3 + $0x38] sm:$0xff]
  %v918 = vld [vmem:[%s3 + $0x40] sm:$0xff]
  %v919 = vld [vmem:[%s3 + $0x48] sm:$0xff]
  %v920 = vld [vmem:[%s3 + $0x50] sm:$0xff]
  %v921 = vld [vmem:[%s3 + $0x58] sm:$0xff]
  %v922 = vld [vmem:[%s3 + $0x60] sm:$0xff]
  %v923 = vld [vmem:[%s3 + $0x68] sm:$0xff]
  %v924 = vld [vmem:[%s3 + $0x70] sm:$0xff]
  %v925 = vld [vmem:[%s3 + $0x78] sm:$0x1]
  %v926 = vld [vmem:[%s3 + $0x80] sm:$0x1]
  %v927 = vld [vmem:[%s3 + $0x88] sm:$0x1]
  %v928 = vld [vmem:[%s3 + $0x90] sm:$0x1]
  %v929 = vld [vmem:[%s3 + $0x98] sm:$0x1]
  %v931 = vsel %vm56, %v925, 0
  %v934 = vsel %vm56, %v926, 0
  %v937 = vsel %vm56, %v927, 0
  %v940 = vsel %vm56, %v928, 0
  %v943 = vsel %vm56, %v929, 0
  %945 = vmatprep.subr.mxu0 0.0
  %946 = vmatpush1.msra.mxu0 0.0
  %947 = vmatprep.subr.mxu0 0.0
  %948 = vmatpush1.msra.mxu0 0.0
  %949 = vmatprep.subr.mxu0 0.0
  %950 = vmatpush1.msra.mxu0 0.0
  %951 = vmatprep.subr.mxu0 0.0
  %952 = vmatpush1.msra.mxu0 0.0
  %953 = vmatprep.subr.mxu0 0.0
  %954 = vmatpush1.msra.mxu0 0.0
  %955 = vmatprep.subr.mxu0 0.0
  %956 = vmatpush1.msra.mxu0 0.0
  %957 = vmatprep.subr.mxu0 0.0
  %958 = vmatpush1.msra.mxu0 0.0
  %959 = vmatprep.subr.mxu0 0.0
  %960 = vmatpush1.msra.mxu0 0.0
  %961 = vmatprep.subr.mxu0 0.0
  %962 = vmatpush1.msra.mxu0 0.0
  %963 = vmatprep.subr.mxu0 0.0
  %964 = vmatpush1.msra.mxu0 0.0
  %965 = vmatprep.subr.mxu0 0.0
  %966 = vmatpush1.msra.mxu0 0.0
  %967 = vmatprep.subr.mxu0 0.0
  %968 = vmatpush1.msra.mxu0 0.0
  %969 = vmatprep.subr.mxu0 %v934
  %970 = vmatpush1.msra.mxu0 %v931
  %971 = vmatprep.subr.mxu0 %v921
  %972 = vmatpush1.msra.mxu0 %v920
  %973 = vmatprep.subr.mxu0 %v916
  %974 = vmatpush1.msra.mxu0 %v915
  %975 = vmatprep.subr.mxu0 %v911
  %976 = vmatpush1.msra.mxu0 %v910
  %977 = vmatprep.subr.mxu0 0.0
  %978 = vmatpush2.msra.mxu0 0.0
  %979 = vmatprep.subr.mxu0 0.0
  %980 = vmatpush2.msra.mxu0 0.0
  %981 = vmatprep.subr.mxu0 0.0
  %982 = vmatpush2.msra.mxu0 0.0
  %983 = vmatprep.subr.mxu0 0.0
  %984 = vmatpush2.msra.mxu0 0.0
  %985 = vmatprep.subr.mxu0 0.0
  %986 = vmatpush2.msra.mxu0 0.0
  %987 = vmatprep.subr.mxu0 0.0
  %988 = vmatpush2.msra.mxu0 0.0
  %989 = vmatprep.subr.mxu0 0.0
  %990 = vmatpush2.msra.mxu0 0.0
  %991 = vmatprep.subr.mxu0 0.0
  %992 = vmatpush2.msra.mxu0 0.0
  %993 = vmatprep.subr.mxu0 0.0
  %994 = vmatpush2.msra.mxu0 0.0
  %995 = vmatprep.subr.mxu0 0.0
  %996 = vmatpush2.msra.mxu0 0.0
  %997 = vmatprep.subr.mxu0 0.0
  %998 = vmatpush2.msra.mxu0 0.0
  %999 = vmatprep.subr.mxu0 0.0
  %1000 = vmatpush2.msra.mxu0 0.0
  %1001 = vmatprep.subr.mxu0 0.0
  %1002 = vmatpush2.msra.mxu0 0.0
  %1003 = vmatprep.subr.mxu0 0.0
  %1004 = vmatpush2.msra.mxu0 0.0
  %1005 = vmatprep.subr.mxu0 0.0
  %1006 = vmatpush2.msra.mxu0 0.0
  %1007 = vmatprep.subr.mxu0 0.0
  %1008 = vmatpush2.msra.mxu0 0.0
  %1009 = vmatprep.mubr.f32.mxu0 0.0
  %1010 = vmatmul.mubr.f32.gmra.mxu0 %v48
  %v1011 = vpop.f32.mrf.mxu0
  %v1012 = vadd.f32 0.0, %v1011
  %v1013 = vpop.f32.mrf.mxu0
  %v1014 = vadd.f32 0.0, %v1013
  %1015 = vmatprep.mubr.f32.mxu0 0.0
  %1016 = vmatmul.mubr.f32.gmra.mxu0 %v51
  %v1017 = vpop.f32.mrf.mxu0
  %v1018 = vadd.f32 0.0, %v1017
  %v1019 = vpop.f32.mrf.mxu0
  %v1020 = vadd.f32 0.0, %v1019
  %1021 = vmatprep.mubr.f32.mxu0 0.0
  %1022 = vmatmul.mubr.f32.gmra.mxu0 %v54
  %v1023 = vpop.f32.mrf.mxu0
  %v1024 = vadd.f32 0.0, %v1023
  %v1025 = vpop.f32.mrf.mxu0
  %v1026 = vadd.f32 0.0, %v1025
  %1027 = vdwg.mxu0
  %1028 = vmatprep.subr.mxu0 0.0
  %1029 = vmatpush1.msra.mxu0 0.0
  %1030 = vmatprep.subr.mxu0 0.0
  %1031 = vmatpush1.msra.mxu0 0.0
  %1032 = vmatprep.subr.mxu0 0.0
  %1033 = vmatpush1.msra.mxu0 0.0
  %1034 = vmatprep.subr.mxu0 0.0
  %1035 = vmatpush1.msra.mxu0 0.0
  %1036 = vmatprep.subr.mxu0 0.0
  %1037 = vmatpush1.msra.mxu0 0.0
  %1038 = vmatprep.subr.mxu0 0.0
  %1039 = vmatpush1.msra.mxu0 0.0
  %1040 = vmatprep.subr.mxu0 0.0
  %1041 = vmatpush1.msra.mxu0 0.0
  %1042 = vmatprep.subr.mxu0 0.0
  %1043 = vmatpush1.msra.mxu0 0.0
  %1044 = vmatprep.subr.mxu0 0.0
  %1045 = vmatpush1.msra.mxu0 0.0
  %1046 = vmatprep.subr.mxu0 0.0
  %1047 = vmatpush1.msra.mxu0 0.0
  %1048 = vmatprep.subr.mxu0 0.0
  %1049 = vmatpush1.msra.mxu0 0.0
  %1050 = vmatprep.subr.mxu0 0.0
  %1051 = vmatpush1.msra.mxu0 0.0
  %1052 = vmatprep.subr.mxu0 %v940
  %1053 = vmatpush1.msra.mxu0 %v937
  %1054 = vmatprep.subr.mxu0 %v923
  %1055 = vmatpush1.msra.mxu0 %v922
  %1056 = vmatprep.subr.mxu0 %v918
  %1057 = vmatpush1.msra.mxu0 %v917
  %1058 = vmatprep.subr.mxu0 %v913
  %1059 = vmatpush1.msra.mxu0 %v912
  %1060 = vmatprep.subr.mxu0 0.0
  %1061 = vmatpush2.msra.mxu0 0.0
  %1062 = vmatprep.subr.mxu0 0.0
  %1063 = vmatpush2.msra.mxu0 0.0
  %1064 = vmatprep.subr.mxu0 0.0
  %1065 = vmatpush2.msra.mxu0 0.0
  %1066 = vmatprep.subr.mxu0 0.0
  %1067 = vmatpush2.msra.mxu0 0.0
  %1068 = vmatprep.subr.mxu0 0.0
  %1069 = vmatpush2.msra.mxu0 0.0
  %1070 = vmatprep.subr.mxu0 0.0
  %1071 = vmatpush2.msra.mxu0 0.0
  %1072 = vmatprep.subr.mxu0 0.0
  %1073 = vmatpush2.msra.mxu0 0.0
  %1074 = vmatprep.subr.mxu0 0.0
  %1075 = vmatpush2.msra.mxu0 0.0
  %1076 = vmatprep.subr.mxu0 0.0
  %1077 = vmatpush2.msra.mxu0 0.0
  %1078 = vmatprep.subr.mxu0 0.0
  %1079 = vmatpush2.msra.mxu0 0.0
  %1080 = vmatprep.subr.mxu0 0.0
  %1081 = vmatpush2.msra.mxu0 0.0
  %1082 = vmatprep.subr.mxu0 0.0
  %1083 = vmatpush2.msra.mxu0 0.0
  %1084 = vmatprep.subr.mxu0 0.0
  %1085 = vmatpush2.msra.mxu0 0.0
  %1086 = vmatprep.subr.mxu0 0.0
  %1087 = vmatpush2.msra.mxu0 0.0
  %1088 = vmatprep.subr.mxu0 0.0
  %1089 = vmatpush2.msra.mxu0 0.0
  %1090 = vmatprep.subr.mxu0 0.0
  %1091 = vmatpush2.msra.mxu0 0.0
  %1092 = vmatprep.mubr.f32.mxu0 0.0
  %1093 = vmatmul.mubr.f32.gmra.mxu0 %v48
  %v1094 = vpop.f32.mrf.mxu0
  %v1095 = vadd.f32 0.0, %v1094
  %v1096 = vpop.f32.mrf.mxu0
  %v1097 = vadd.f32 0.0, %v1096
  %1098 = vmatprep.mubr.f32.mxu0 0.0
  %1099 = vmatmul.mubr.f32.gmra.mxu0 %v51
  %v1100 = vpop.f32.mrf.mxu0
  %v1101 = vadd.f32 0.0, %v1100
  %v1102 = vpop.f32.mrf.mxu0
  %v1103 = vadd.f32 0.0, %v1102
  %1104 = vmatprep.mubr.f32.mxu0 0.0
  %1105 = vmatmul.mubr.f32.gmra.mxu0 %v54
  %v1106 = vpop.f32.mrf.mxu0
  %v1107 = vadd.f32 0.0, %v1106
  %v1108 = vpop.f32.mrf.mxu0
  %v1109 = vadd.f32 0.0, %v1108
  %1110 = vdwg.mxu0
  %1111 = vmatprep.subr.mxu0 0.0
  %1112 = vmatpush1.msra.mxu0 0.0
  %1113 = vmatprep.subr.mxu0 0.0
  %1114 = vmatpush1.msra.mxu0 0.0
  %1115 = vmatprep.subr.mxu0 0.0
  %1116 = vmatpush1.msra.mxu0 0.0
  %1117 = vmatprep.subr.mxu0 0.0
  %1118 = vmatpush1.msra.mxu0 0.0
  %1119 = vmatprep.subr.mxu0 0.0
  %1120 = vmatpush1.msra.mxu0 0.0
  %1121 = vmatprep.subr.mxu0 0.0
  %1122 = vmatpush1.msra.mxu0 0.0
  %1123 = vmatprep.subr.mxu0 0.0
  %1124 = vmatpush1.msra.mxu0 0.0
  %1125 = vmatprep.subr.mxu0 0.0
  %1126 = vmatpush1.msra.mxu0 0.0
  %1127 = vmatprep.subr.mxu0 0.0
  %1128 = vmatpush1.msra.mxu0 0.0
  %1129 = vmatprep.subr.mxu0 0.0
  %1130 = vmatpush1.msra.mxu0 0.0
  %1131 = vmatprep.subr.mxu0 0.0
  %1132 = vmatpush1.msra.mxu0 0.0
  %1133 = vmatprep.subr.mxu0 0.0
  %1134 = vmatpush1.msra.mxu0 0.0
  %1135 = vmatprep.subr.mxu0 0.0
  %1136 = vmatpush1.msra.mxu0 %v943
  %1137 = vmatprep.subr.mxu0 0.0
  %1138 = vmatpush1.msra.mxu0 %v924
  %1139 = vmatprep.subr.mxu0 0.0
  %1140 = vmatpush1.msra.mxu0 %v919
  %1141 = vmatprep.subr.mxu0 0.0
  %1142 = vmatpush1.msra.mxu0 %v914
  %1143 = vmatprep.subr.mxu0 0.0
  %1144 = vmatpush2.msra.mxu0 0.0
  %1145 = vmatprep.subr.mxu0 0.0
  %1146 = vmatpush2.msra.mxu0 0.0
  %1147 = vmatprep.subr.mxu0 0.0
  %1148 = vmatpush2.msra.mxu0 0.0
  %1149 = vmatprep.subr.mxu0 0.0
  %1150 = vmatpush2.msra.mxu0 0.0
  %1151 = vmatprep.subr.mxu0 0.0
  %1152 = vmatpush2.msra.mxu0 0.0
  %1153 = vmatprep.subr.mxu0 0.0
  %1154 = vmatpush2.msra.mxu0 0.0
  %1155 = vmatprep.subr.mxu0 0.0
  %1156 = vmatpush2.msra.mxu0 0.0
  %1157 = vmatprep.subr.mxu0 0.0
  %1158 = vmatpush2.msra.mxu0 0.0
  %1159 = vmatprep.subr.mxu0 0.0
  %1160 = vmatpush2.msra.mxu0 0.0
  %1161 = vmatprep.subr.mxu0 0.0
  %1162 = vmatpush2.msra.mxu0 0.0
  %1163 = vmatprep.subr.mxu0 0.0
  %1164 = vmatpush2.msra.mxu0 0.0
  %1165 = vmatprep.subr.mxu0 0.0
  %1166 = vmatpush2.msra.mxu0 0.0
  %1167 = vmatprep.subr.mxu0 0.0
  %1168 = vmatpush2.msra.mxu0 0.0
  %1169 = vmatprep.subr.mxu0 0.0
  %1170 = vmatpush2.msra.mxu0 0.0
  %1171 = vmatprep.subr.mxu0 0.0
  %1172 = vmatpush2.msra.mxu0 0.0
  %1173 = vmatprep.subr.mxu0 0.0
  %1174 = vmatpush2.msra.mxu0 0.0
  %1175 = vmatprep.mubr.f32.mxu0 0.0
  %1176 = vmatmul.mubr.f32.gmra.mxu0 %v48
  %v1177 = vpop.f32.mrf.mxu0
  %v1178 = vadd.f32 0.0, %v1177
  %v1179 = vpop.f32.mrf.mxu0
  %1180 = vmatprep.mubr.f32.mxu0 0.0
  %1181 = vmatmul.mubr.f32.gmra.mxu0 %v51
  %v1182 = vpop.f32.mrf.mxu0
  %v1183 = vadd.f32 0.0, %v1182
  %v1184 = vpop.f32.mrf.mxu0
  %1185 = vmatprep.mubr.f32.mxu0 0.0
  %1186 = vmatmul.mubr.f32.gmra.mxu0 %v54
  %v1187 = vpop.f32.mrf.mxu0
  %v1188 = vadd.f32 0.0, %v1187
  %v1189 = vpop.f32.mrf.mxu0
  %1190 = vdwg.mxu0
  %v1191 = vmax.f32 %v895, %v1012
  %v1192 = vmax.f32 %v896, %v1014
  %v1193 = vmax.f32 %v897, %v1095
  %v1194 = vmax.f32 %v898, %v1097
  %v1195 = vmax.f32 %v899, %v1178
  %v1196 = vmax.f32 %v900, %v1018
  %v1197 = vmax.f32 %v901, %v1020
  %v1198 = vmax.f32 %v902, %v1101
  %v1199 = vmax.f32 %v903, %v1103
  %v1200 = vmax.f32 %v904, %v1183
  %v1201 = vmax.f32 %v905, %v1024
  %v1202 = vmax.f32 %v906, %v1026
  %v1203 = vmax.f32 %v907, %v1107
  %v1204 = vmax.f32 %v908, %v1109
  %v1205 = vmax.f32 %v909, %v1188
  %v1206 = vld [vmem:[%s5] sm:$0xff]
  %v1207 = vld [vmem:[%s5 + $0x8] sm:$0xff]
  %v1208 = vld [vmem:[%s5 + $0x10] sm:$0xf]
  %1210 = vset.pattern.permute.xlu0 0
  %1211 = vperm.xlu0 %1210, %v1206
  %v1212 = vpop.permute.xlu0 %1211
  %1215 = vset.pattern.permute.xlu0 0
  %1216 = vperm.xlu0 %1215, %v1207
  %v1217 = vpop.permute.xlu0 %1216
  %1220 = vset.pattern.permute.xlu0 0
  %1221 = vperm.xlu0 %1220, %v1208
  %v1222 = vpop.permute.xlu0 %1221
  %v1224 = vadd.f32 %v1191, %v1212
  %v1225 = vadd.f32 %v1192, %v1212
  %v1226 = vadd.f32 %v1193, %v1212
  %v1227 = vadd.f32 %v1194, %v1212
  %v1228 = vadd.f32 %v1195, %v1212
  %v1229 = vadd.f32 %v1196, %v1217
  %v1230 = vadd.f32 %v1197, %v1217
  %v1231 = vadd.f32 %v1198, %v1217
  %v1232 = vadd.f32 %v1199, %v1217
  %v1233 = vadd.f32 %v1200, %v1217
  %v1234 = vadd.f32 %v1201, %v1222
  %v1235 = vadd.f32 %v1202, %v1222
  %v1236 = vadd.f32 %v1203, %v1222
  %v1237 = vadd.f32 %v1204, %v1222
  %v1238 = vadd.f32 %v1205, %v1222
  %vm1239 = vcmp.gt.f32.partialorder %v1224, 0.0
  %vm1240 = vcmp.gt.f32.partialorder %v1225, 0.0
  %vm1241 = vcmp.gt.f32.partialorder %v1226, 0.0
  %vm1242 = vcmp.gt.f32.partialorder %v1227, 0.0
  %vm1243 = vcmp.gt.f32.partialorder %v1228, 0.0
  %vm1244 = vcmp.gt.f32.partialorder %v1229, 0.0
  %vm1245 = vcmp.gt.f32.partialorder %v1230, 0.0
  %vm1246 = vcmp.gt.f32.partialorder %v1231, 0.0
  %vm1247 = vcmp.gt.f32.partialorder %v1232, 0.0
  %vm1248 = vcmp.gt.f32.partialorder %v1233, 0.0
  %vm1249 = vcmp.gt.f32.partialorder %v1234, 0.0
  %vm1250 = vcmp.gt.f32.partialorder %v1235, 0.0
  %vm1251 = vcmp.gt.f32.partialorder %v1236, 0.0
  %vm1252 = vcmp.gt.f32.partialorder %v1237, 0.0
  %vm1253 = vcmp.gt.f32.partialorder %v1238, 0.0
  %v1254 = vmul.f32 %v1224, 0.01
  %v1255 = vmul.f32 %v1225, 0.01
  %v1256 = vmul.f32 %v1226, 0.01
  %v1257 = vmul.f32 %v1227, 0.01
  %v1258 = vmul.f32 %v1228, 0.01
  %v1259 = vmul.f32 %v1229, 0.01
  %v1260 = vmul.f32 %v1230, 0.01
  %v1261 = vmul.f32 %v1231, 0.01
  %v1262 = vmul.f32 %v1232, 0.01
  %v1263 = vmul.f32 %v1233, 0.01
  %v1264 = vmul.f32 %v1234, 0.01
  %v1265 = vmul.f32 %v1235, 0.01
  %v1266 = vmul.f32 %v1236, 0.01
  %v1267 = vmul.f32 %v1237, 0.01
  %v1268 = vmul.f32 %v1238, 0.01
  %v1269 = vsel %vm1239, %v1224, %v1254
  %v1270 = vsel %vm1240, %v1225, %v1255
  %v1271 = vsel %vm1241, %v1226, %v1256
  %v1272 = vsel %vm1242, %v1227, %v1257
  %v1273 = vsel %vm1243, %v1228, %v1258
  %v1274 = vsel %vm1244, %v1229, %v1259
  %v1275 = vsel %vm1245, %v1230, %v1260
  %v1276 = vsel %vm1246, %v1231, %v1261
  %v1277 = vsel %vm1247, %v1232, %v1262
  %v1278 = vsel %vm1248, %v1233, %v1263
  %v1279 = vsel %vm1249, %v1234, %v1264
  %v1280 = vsel %vm1250, %v1235, %v1265
  %v1281 = vsel %vm1251, %v1236, %v1266
  %v1282 = vsel %vm1252, %v1237, %v1267
  %v1283 = vsel %vm1253, %v1238, %v1268
  %1284 = vst [vmem:[%s6] sm:$0xff] %v1269
  %1285 = vst [vmem:[%s6 + $0x8] sm:$0xff] %v1270
  %1286 = vst [vmem:[%s6 + $0x10] sm:$0xff] %v1271
  %1287 = vst [vmem:[%s6 + $0x18] sm:$0xff] %v1272
  %vm1288 = vcmask 916480
  %1289 = vst.msk [vmem:[%s6 + $0x20] sm:$0xff] %vm1288, %v1273
  %1290 = vst [vmem:[%s6 + $0x28] sm:$0xff] %v1274
  %1291 = vst [vmem:[%s6 + $0x30] sm:$0xff] %v1275
  %1292 = vst [vmem:[%s6 + $0x38] sm:$0xff] %v1276
  %1293 = vst [vmem:[%s6 + $0x40] sm:$0xff] %v1277
  %1294 = vst.msk [vmem:[%s6 + $0x48] sm:$0xff] %vm1288, %v1278
  %1295 = vst [vmem:[%s6 + $0x50] sm:$0xf] %v1279
  %1296 = vst [vmem:[%s6 + $0x58] sm:$0xf] %v1280
  %1297 = vst [vmem:[%s6 + $0x60] sm:$0xf] %v1281
  %1298 = vst [vmem:[%s6 + $0x68] sm:$0xf] %v1282
  %vm1299 = vcmask 912384
  %1300 = vst.msk [vmem:[%s6 + $0x70] sm:$0xf] %vm1299, %v1283
  // Predicated region
  $region26: #{lenet_forward.3} parent=0 // pred_check
    _
  $region27: #{lenet_forward.3} parent=0 // pred_check_branch
    %1302 = sbr.rel (0) target = $region29
  $region28: #{lenet_forward.3} parent=0 // pred_region
    _
  $region29: #{lenet_forward.3} parent=0 // pred_fallthru
    _
  // Predicated region
  $region30: #{lenet_forward.3} parent=0 // pred_check
    _
  $region31: #{lenet_forward.3} parent=0 // pred_check_branch
    %1304 = sbr.rel (0) target = $region33
  $region32: #{lenet_forward.3} parent=0 // pred_region
    _
  $region33: #{lenet_forward.3} parent=0 // pred_fallthru
    _

// kernel: lenet_forward.4
$region0: #{lenet_forward.4}
  #allocation0 [shape = 'u32[]', space=smem, size = 0x4, offset = 0x4, fixed_abs, tag = 'smem constant byte address 0x4 - core index']
  #allocation1 [shape = 'u32[144,128]{1,0:T(1,128)}', space=vmem, size = 0x12000, scoped, tag = 'internal scratch']
  %s0 = inlined_call_operand.vmem [shape: f32[500,88], index: 0, kind: input, shape index: {}]
  %s1 = inlined_call_operand.vmem [shape: f32[500,88], index: 1, kind: input, shape index: {}]
  %s2 = inlined_call_operand.vmem [shape: f32[500,88], index: 2, kind: input, shape index: {}]
  %s3 = inlined_call_operand.vmem [shape: f32[500,88], index: 3, kind: input, shape index: {}]
  %s4 = inlined_call_operand.vmem [shape: f32[50,500], index: 4, kind: input, shape index: {}]
  %s5 = inlined_call_operand.vmem [shape: f32[50,1], index: 5, kind: input, shape index: {}]
  %s6 = inlined_call_operand.vmem [shape: f32[50,88], index: 6, kind: output, shape index: {}]
  %s7 = sld [smem:[#allocation0]]
  $region34: #{lenet_forward.4} parent=0
    _
  %s9 = ssub.s32 1, %s7
  %s10 = scalar_select 0, %s9, %s7
  // Predicated region
  $region2: #{lenet_forward.4} parent=0 // pred_check
    _
  $region3: #{lenet_forward.4} parent=0 // pred_check_branch
    %12 = sbr.rel (0) target = $region5
  $region4: #{lenet_forward.4} parent=0 // pred_region
    _
  $region5: #{lenet_forward.4} parent=0 // pred_fallthru
    _
  // Predicated region
  $region6: #{lenet_forward.4} parent=0 // pred_check
    _
  $region7: #{lenet_forward.4} parent=0 // pred_check_branch
    %14 = sbr.rel (0) target = $region9
  $region8: #{lenet_forward.4} parent=0 // pred_region
    _
  $region9: #{lenet_forward.4} parent=0 // pred_fallthru
    _
  // Predicated region
  $region10: #{lenet_forward.4} parent=0 // pred_check
    _
  $region11: #{lenet_forward.4} parent=0 // pred_check_branch
    %16 = sbr.rel (0) target = $region13
  $region12: #{lenet_forward.4} parent=0 // pred_region
    _
  $region13: #{lenet_forward.4} parent=0 // pred_fallthru
    _
  // Predicated region
  $region14: #{lenet_forward.4} parent=0 // pred_check
    _
  $region15: #{lenet_forward.4} parent=0 // pred_check_branch
    %18 = sbr.rel (0) target = $region17
  $region16: #{lenet_forward.4} parent=0 // pred_region
    _
  $region17: #{lenet_forward.4} parent=0 // pred_fallthru
    _
  // Predicated region
  $region18: #{lenet_forward.4} parent=0 // pred_check
    _
  $region19: #{lenet_forward.4} parent=0 // pred_check_branch
    %20 = sbr.rel (0) target = $region21
  $region20: #{lenet_forward.4} parent=0 // pred_region
    _
  $region21: #{lenet_forward.4} parent=0 // pred_fallthru
    _
  // Predicated region
  $region22: #{lenet_forward.4} parent=0 // pred_check
    _
  $region23: #{lenet_forward.4} parent=0 // pred_check_branch
    %22 = sbr.rel (0) target = $region25
  $region24: #{lenet_forward.4} parent=0 // pred_region
    _
  $region25: #{lenet_forward.4} parent=0 // pred_fallthru
    _
  %v23 = vld [vmem:[%s4] sm:$0xff]
  %v24 = vld [vmem:[%s4 + $0x8] sm:$0xff]
  %v25 = vld [vmem:[%s4 + $0x10] sm:$0xff]
  %v26 = vld [vmem:[%s4 + $0x18] sm:$0xff]
  %v27 = vld [vmem:[%s4 + $0x20] sm:$0xff]
  %v28 = vld [vmem:[%s4 + $0x28] sm:$0xff]
  %v29 = vld [vmem:[%s4 + $0x30] sm:$0xff]
  %v30 = vld [vmem:[%s4 + $0x38] sm:$0xff]
  %v31 = vld [vmem:[%s4 + $0x40] sm:$0xff]
  %v32 = vld [vmem:[%s4 + $0x48] sm:$0xff]
  %v33 = vld [vmem:[%s4 + $0x50] sm:$0xff]
  %v34 = vld [vmem:[%s4 + $0x58] sm:$0xff]
  %v35 = vld [vmem:[%s4 + $0x60] sm:$0xff]
  %v36 = vld [vmem:[%s4 + $0x68] sm:$0xff]
  %v37 = vld [vmem:[%s4 + $0x70] sm:$0xff]
  %v38 = vld [vmem:[%s4 + $0x78] sm:$0xff]
  %v39 = vld [vmem:[%s4 + $0x80] sm:$0xff]
  %v40 = vld [vmem:[%s4 + $0x88] sm:$0xff]
  %v41 = vld [vmem:[%s4 + $0x90] sm:$0xff]
  %v42 = vld [vmem:[%s4 + $0x98] sm:$0xff]
  %v43 = vld [vmem:[%s4 + $0xa0] sm:$0xff]
  %v44 = vld [vmem:[%s4 + $0xa8] sm:$0xff]
  %v45 = vld [vmem:[%s4 + $0xb0] sm:$0xff]
  %v46 = vld [vmem:[%s4 + $0xb8] sm:$0xff]
  %v47 = vld [vmem:[%s4 + $0xc0] sm:$0x3]
  %v48 = vld [vmem:[%s4 + $0xc8] sm:$0x3]
  %v49 = vld [vmem:[%s4 + $0xd0] sm:$0x3]
  %v50 = vld [vmem:[%s4 + $0xd8] sm:$0x3]
  %v51 = vld [vmem:[%s0] sm:$0xff]
  %v52 = vld [vmem:[%s0 + $0x8] sm:$0xff]
  %v53 = vld [vmem:[%s0 + $0x10] sm:$0xff]
  %v54 = vld [vmem:[%s0 + $0x18] sm:$0xff]
  %v55 = vld [vmem:[%s0 + $0x20] sm:$0xff]
  %v56 = vld [vmem:[%s0 + $0x28] sm:$0xff]
  %v57 = vld [vmem:[%s0 + $0x30] sm:$0xff]
  %v58 = vld [vmem:[%s0 + $0x38] sm:$0xff]
  %v59 = vld [vmem:[%s0 + $0x40] sm:$0xff]
  %v60 = vld [vmem:[%s0 + $0x48] sm:$0xff]
  %v61 = vld [vmem:[%s0 + $0x50] sm:$0xff]
  %v62 = vld [vmem:[%s0 + $0x58] sm:$0xff]
  %v63 = vld [vmem:[%s0 + $0x60] sm:$0xff]
  %v64 = vld [vmem:[%s0 + $0x68] sm:$0xff]
  %v65 = vld [vmem:[%s0 + $0x70] sm:$0xff]
  %v66 = vld [vmem:[%s0 + $0x78] sm:$0xff]
  %v67 = vld [vmem:[%s0 + $0x80] sm:$0xff]
  %v68 = vld [vmem:[%s0 + $0x88] sm:$0xff]
  %v69 = vld [vmem:[%s0 + $0x90] sm:$0xff]
  %v70 = vld [vmem:[%s0 + $0x98] sm:$0xff]
  %v71 = vld [vmem:[%s0 + $0xa0] sm:$0xff]
  %v72 = vld [vmem:[%s0 + $0xa8] sm:$0xff]
  %v73 = vld [vmem:[%s0 + $0xb0] sm:$0xff]
  %v74 = vld [vmem:[%s0 + $0xb8] sm:$0xff]
  %v75 = vld [vmem:[%s0 + $0xc0] sm:$0xff]
  %v76 = vld [vmem:[%s0 + $0xc8] sm:$0xff]
  %v77 = vld [vmem:[%s0 + $0xd0] sm:$0xff]
  %v78 = vld [vmem:[%s0 + $0xd8] sm:$0xff]
  %v79 = vld [vmem:[%s0 + $0xe0] sm:$0xff]
  %v80 = vld [vmem:[%s0 + $0xe8] sm:$0xff]
  %v81 = vld [vmem:[%s0 + $0xf0] sm:$0xff]
  %v82 = vld [vmem:[%s0 + $0xf8] sm:$0xff]
  %v83 = vld [vmem:[%s0 + $0x100] sm:$0xff]
  %v84 = vld [vmem:[%s0 + $0x108] sm:$0xff]
  %v85 = vld [vmem:[%s0 + $0x110] sm:$0xff]
  %v86 = vld [vmem:[%s0 + $0x118] sm:$0xff]
  %v87 = vld [vmem:[%s0 + $0x120] sm:$0xff]
  %v88 = vld [vmem:[%s0 + $0x128] sm:$0xff]
  %v89 = vld [vmem:[%s0 + $0x130] sm:$0xff]
  %v90 = vld [vmem:[%s0 + $0x138] sm:$0xff]
  %v91 = vld [vmem:[%s0 + $0x140] sm:$0xff]
  %v92 = vld [vmem:[%s0 + $0x148] sm:$0xff]
  %v93 = vld [vmem:[%s0 + $0x150] sm:$0xff]
  %v94 = vld [vmem:[%s0 + $0x158] sm:$0xff]
  %v95 = vld [vmem:[%s0 + $0x160] sm:$0xff]
  %v96 = vld [vmem:[%s0 + $0x168] sm:$0xff]
  %v97 = vld [vmem:[%s0 + $0x170] sm:$0xff]
  %v98 = vld [vmem:[%s0 + $0x178] sm:$0xff]
  %v99 = vld [vmem:[%s0 + $0x180] sm:$0xff]
  %v100 = vld [vmem:[%s0 + $0x188] sm:$0xff]
  %v101 = vld [vmem:[%s0 + $0x190] sm:$0xff]
  %v102 = vld [vmem:[%s0 + $0x198] sm:$0xff]
  %v103 = vld [vmem:[%s0 + $0x1a0] sm:$0xff]
  %v104 = vld [vmem:[%s0 + $0x1a8] sm:$0xff]
  %v105 = vld [vmem:[%s0 + $0x1b0] sm:$0xff]
  %v106 = vld [vmem:[%s0 + $0x1b8] sm:$0xff]
  %v107 = vld [vmem:[%s0 + $0x1c0] sm:$0xff]
  %v108 = vld [vmem:[%s0 + $0x1c8] sm:$0xff]
  %v109 = vld [vmem:[%s0 + $0x1d0] sm:$0xff]
  %v110 = vld [vmem:[%s0 + $0x1d8] sm:$0xff]
  %v111 = vld [vmem:[%s0 + $0x1e0] sm:$0xff]
  %v112 = vld [vmem:[%s0 + $0x1e8] sm:$0xff]
  %v113 = vld [vmem:[%s0 + $0x1f0] sm:$0xf]
  %vm114 = vcmask 949248
  %v116 = vsel %vm114, %v26, 0
  %v119 = vsel %vm114, %v30, 0
  %v122 = vsel %vm114, %v34, 0
  %v125 = vsel %vm114, %v38, 0
  %v128 = vsel %vm114, %v42, 0
  %v131 = vsel %vm114, %v46, 0
  %v134 = vsel %vm114, %v50, 0
  %vm136 = vcmask 1043456
  %v138 = vsel %vm136, %v113, 0
  %140 = vmatprep.subr.mxu0 0.0
  %141 = vmatpush1.msra.mxu0 %v66
  %142 = vmatprep.subr.mxu0 0.0
  %143 = vmatpush1.msra.mxu0 %v65
  %144 = vmatprep.subr.mxu0 0.0
  %145 = vmatpush1.msra.mxu0 %v64
  %146 = vmatprep.subr.mxu0 0.0
  %147 = vmatpush1.msra.mxu0 %v63
  %148 = vmatprep.subr.mxu0 0.0
  %149 = vmatpush1.msra.mxu0 %v62
  %150 = vmatprep.subr.mxu0 0.0
  %151 = vmatpush1.msra.mxu0 %v61
  %152 = vmatprep.subr.mxu0 0.0
  %153 = vmatpush1.msra.mxu0 %v60
  %154 = vmatprep.subr.mxu0 0.0
  %155 = vmatpush1.msra.mxu0 %v59
  %156 = vmatprep.subr.mxu0 0.0
  %157 = vmatpush1.msra.mxu0 %v58
  %158 = vmatprep.subr.mxu0 0.0
  %159 = vmatpush1.msra.mxu0 %v57
  %160 = vmatprep.subr.mxu0 0.0
  %161 = vmatpush1.msra.mxu0 %v56
  %162 = vmatprep.subr.mxu0 0.0
  %163 = vmatpush1.msra.mxu0 %v55
  %164 = vmatprep.subr.mxu0 0.0
  %165 = vmatpush1.msra.mxu0 %v54
  %166 = vmatprep.subr.mxu0 0.0
  %167 = vmatpush1.msra.mxu0 %v53
  %168 = vmatprep.subr.mxu0 0.0
  %169 = vmatpush1.msra.mxu0 %v52
  %170 = vmatprep.subr.mxu0 0.0
  %171 = vmatpush1.msra.mxu0 %v51
  %172 = vmatprep.subr.mxu0 0.0
  %173 = vmatpush2.msra.mxu0 %v82
  %174 = vmatprep.subr.mxu0 0.0
  %175 = vmatpush2.msra.mxu0 %v81
  %176 = vmatprep.subr.mxu0 0.0
  %177 = vmatpush2.msra.mxu0 %v80
  %178 = vmatprep.subr.mxu0 0.0
  %179 = vmatpush2.msra.mxu0 %v79
  %180 = vmatprep.subr.mxu0 0.0
  %181 = vmatpush2.msra.mxu0 %v78
  %182 = vmatprep.subr.mxu0 0.0
  %183 = vmatpush2.msra.mxu0 %v77
  %184 = vmatprep.subr.mxu0 0.0
  %185 = vmatpush2.msra.mxu0 %v76
  %186 = vmatprep.subr.mxu0 0.0
  %187 = vmatpush2.msra.mxu0 %v75
  %188 = vmatprep.subr.mxu0 0.0
  %189 = vmatpush2.msra.mxu0 %v74
  %190 = vmatprep.subr.mxu0 0.0
  %191 = vmatpush2.msra.mxu0 %v73
  %192 = vmatprep.subr.mxu0 0.0
  %193 = vmatpush2.msra.mxu0 %v72
  %194 = vmatprep.subr.mxu0 0.0
  %195 = vmatpush2.msra.mxu0 %v71
  %196 = vmatprep.subr.mxu0 0.0
  %197 = vmatpush2.msra.mxu0 %v70
  %198 = vmatprep.subr.mxu0 0.0
  %199 = vmatpush2.msra.mxu0 %v69
  %200 = vmatprep.subr.mxu0 0.0
  %201 = vmatpush2.msra.mxu0 %v68
  %202 = vmatprep.subr.mxu0 0.0
  %203 = vmatpush2.msra.mxu0 %v67
  %204 = vmatprep.mubr.f32.mxu0 %v24
  %205 = vmatmul.mubr.f32.gmra.mxu0 %v23
  %v206 = vpop.f32.mrf.mxu0
  %v207 = vadd.f32 0.0, %v206
  %v208 = vpop.f32.mrf.mxu0
  %209 = vmatprep.mubr.f32.mxu0 %v28
  %210 = vmatmul.mubr.f32.gmra.mxu0 %v27
  %v211 = vpop.f32.mrf.mxu0
  %v212 = vadd.f32 0.0, %v211
  %v213 = vpop.f32.mrf.mxu0
  %214 = vmatprep.mubr.f32.mxu0 %v32
  %215 = vmatmul.mubr.f32.gmra.mxu0 %v31
  %v216 = vpop.f32.mrf.mxu0
  %v217 = vadd.f32 0.0, %v216
  %v218 = vpop.f32.mrf.mxu0
  %219 = vmatprep.mubr.f32.mxu0 %v36
  %220 = vmatmul.mubr.f32.gmra.mxu0 %v35
  %v221 = vpop.f32.mrf.mxu0
  %v222 = vadd.f32 0.0, %v221
  %v223 = vpop.f32.mrf.mxu0
  %224 = vmatprep.mubr.f32.mxu0 %v40
  %225 = vmatmul.mubr.f32.gmra.mxu0 %v39
  %v226 = vpop.f32.mrf.mxu0
  %v227 = vadd.f32 0.0, %v226
  %v228 = vpop.f32.mrf.mxu0
  %229 = vmatprep.mubr.f32.mxu0 %v44
  %230 = vmatmul.mubr.f32.gmra.mxu0 %v43
  %v231 = vpop.f32.mrf.mxu0
  %v232 = vadd.f32 0.0, %v231
  %v233 = vpop.f32.mrf.mxu0
  %234 = vmatprep.mubr.f32.mxu0 %v48
  %235 = vmatmul.mubr.f32.gmra.mxu0 %v47
  %v236 = vpop.f32.mrf.mxu0
  %v237 = vadd.f32 0.0, %v236
  %v238 = vpop.f32.mrf.mxu0
  %239 = vdwg.mxu0
  %240 = vmatprep.subr.mxu0 0.0
  %241 = vmatpush1.msra.mxu0 %v98
  %242 = vmatprep.subr.mxu0 0.0
  %243 = vmatpush1.msra.mxu0 %v97
  %244 = vmatprep.subr.mxu0 0.0
  %245 = vmatpush1.msra.mxu0 %v96
  %246 = vmatprep.subr.mxu0 0.0
  %247 = vmatpush1.msra.mxu0 %v95
  %248 = vmatprep.subr.mxu0 0.0
  %249 = vmatpush1.msra.mxu0 %v94
  %250 = vmatprep.subr.mxu0 0.0
  %251 = vmatpush1.msra.mxu0 %v93
  %252 = vmatprep.subr.mxu0 0.0
  %253 = vmatpush1.msra.mxu0 %v92
  %254 = vmatprep.subr.mxu0 0.0
  %255 = vmatpush1.msra.mxu0 %v91
  %256 = vmatprep.subr.mxu0 0.0
  %257 = vmatpush1.msra.mxu0 %v90
  %258 = vmatprep.subr.mxu0 0.0
  %259 = vmatpush1.msra.mxu0 %v89
  %260 = vmatprep.subr.mxu0 0.0
  %261 = vmatpush1.msra.mxu0 %v88
  %262 = vmatprep.subr.mxu0 0.0
  %263 = vmatpush1.msra.mxu0 %v87
  %264 = vmatprep.subr.mxu0 0.0
  %265 = vmatpush1.msra.mxu0 %v86
  %266 = vmatprep.subr.mxu0 0.0
  %267 = vmatpush1.msra.mxu0 %v85
  %268 = vmatprep.subr.mxu0 0.0
  %269 = vmatpush1.msra.mxu0 %v84
  %270 = vmatprep.subr.mxu0 0.0
  %271 = vmatpush1.msra.mxu0 %v83
  %272 = vmatprep.subr.mxu0 0.0
  %273 = vmatpush2.msra.mxu0 0.0
  %274 = vmatprep.subr.mxu0 0.0
  %275 = vmatpush2.msra.mxu0 %v138
  %276 = vmatprep.subr.mxu0 0.0
  %277 = vmatpush2.msra.mxu0 %v112
  %278 = vmatprep.subr.mxu0 0.0
  %279 = vmatpush2.msra.mxu0 %v111
  %280 = vmatprep.subr.mxu0 0.0
  %281 = vmatpush2.msra.mxu0 %v110
  %282 = vmatprep.subr.mxu0 0.0
  %283 = vmatpush2.msra.mxu0 %v109
  %284 = vmatprep.subr.mxu0 0.0
  %285 = vmatpush2.msra.mxu0 %v108
  %286 = vmatprep.subr.mxu0 0.0
  %287 = vmatpush2.msra.mxu0 %v107
  %288 = vmatprep.subr.mxu0 0.0
  %289 = vmatpush2.msra.mxu0 %v106
  %290 = vmatprep.subr.mxu0 0.0
  %291 = vmatpush2.msra.mxu0 %v105
  %292 = vmatprep.subr.mxu0 0.0
  %293 = vmatpush2.msra.mxu0 %v104
  %294 = vmatprep.subr.mxu0 0.0
  %295 = vmatpush2.msra.mxu0 %v103
  %296 = vmatprep.subr.mxu0 0.0
  %297 = vmatpush2.msra.mxu0 %v102
  %298 = vmatprep.subr.mxu0 0.0
  %299 = vmatpush2.msra.mxu0 %v101
  %300 = vmatprep.subr.mxu0 0.0
  %301 = vmatpush2.msra.mxu0 %v100
  %302 = vmatprep.subr.mxu0 0.0
  %303 = vmatpush2.msra.mxu0 %v99
  %304 = vmatprep.mubr.f32.mxu0 %v116
  %305 = vmatmul.mubr.f32.gmra.mxu0 %v25
  %v306 = vpop.f32.mrf.mxu0
  %v307 = vadd.f32 %v207, %v306
  %v308 = vpop.f32.mrf.mxu0
  %309 = vmatprep.mubr.f32.mxu0 %v119
  %310 = vmatmul.mubr.f32.gmra.mxu0 %v29
  %v311 = vpop.f32.mrf.mxu0
  %v312 = vadd.f32 %v212, %v311
  %v313 = vpop.f32.mrf.mxu0
  %314 = vmatprep.mubr.f32.mxu0 %v122
  %315 = vmatmul.mubr.f32.gmra.mxu0 %v33
  %v316 = vpop.f32.mrf.mxu0
  %v317 = vadd.f32 %v217, %v316
  %v318 = vpop.f32.mrf.mxu0
  %319 = vmatprep.mubr.f32.mxu0 %v125
  %320 = vmatmul.mubr.f32.gmra.mxu0 %v37
  %v321 = vpop.f32.mrf.mxu0
  %v322 = vadd.f32 %v222, %v321
  %v323 = vpop.f32.mrf.mxu0
  %324 = vmatprep.mubr.f32.mxu0 %v128
  %325 = vmatmul.mubr.f32.gmra.mxu0 %v41
  %v326 = vpop.f32.mrf.mxu0
  %v327 = vadd.f32 %v227, %v326
  %v328 = vpop.f32.mrf.mxu0
  %329 = vmatprep.mubr.f32.mxu0 %v131
  %330 = vmatmul.mubr.f32.gmra.mxu0 %v45
  %v331 = vpop.f32.mrf.mxu0
  %v332 = vadd.f32 %v232, %v331
  %v333 = vpop.f32.mrf.mxu0
  %334 = vmatprep.mubr.f32.mxu0 %v134
  %335 = vmatmul.mubr.f32.gmra.mxu0 %v49
  %v336 = vpop.f32.mrf.mxu0
  %v337 = vadd.f32 %v237, %v336
  %v338 = vpop.f32.mrf.mxu0
  %339 = vdwg.mxu0
  %v340 = vld [vmem:[%s1] sm:$0xff]
  %v341 = vld [vmem:[%s1 + $0x8] sm:$0xff]
  %v342 = vld [vmem:[%s1 + $0x10] sm:$0xff]
  %v343 = vld [vmem:[%s1 + $0x18] sm:$0xff]
  %v344 = vld [vmem:[%s1 + $0x20] sm:$0xff]
  %v345 = vld [vmem:[%s1 + $0x28] sm:$0xff]
  %v346 = vld [vmem:[%s1 + $0x30] sm:$0xff]
  %v347 = vld [vmem:[%s1 + $0x38] sm:$0xff]
  %v348 = vld [vmem:[%s1 + $0x40] sm:$0xff]
  %v349 = vld [vmem:[%s1 + $0x48] sm:$0xff]
  %v350 = vld [vmem:[%s1 + $0x50] sm:$0xff]
  %v351 = vld [vmem:[%s1 + $0x58] sm:$0xff]
  %v352 = vld [vmem:[%s1 + $0x60] sm:$0xff]
  %v353 = vld [vmem:[%s1 + $0x68] sm:$0xff]
  %v354 = vld [vmem:[%s1 + $0x70] sm:$0xff]
  %v355 = vld [vmem:[%s1 + $0x78] sm:$0xff]
  %v356 = vld [vmem:[%s1 + $0x80] sm:$0xff]
  %v357 = vld [vmem:[%s1 + $0x88] sm:$0xff]
  %v358 = vld [vmem:[%s1 + $0x90] sm:$0xff]
  %v359 = vld [vmem:[%s1 + $0x98] sm:$0xff]
  %v360 = vld [vmem:[%s1 + $0xa0] sm:$0xff]
  %v361 = vld [vmem:[%s1 + $0xa8] sm:$0xff]
  %v362 = vld [vmem:[%s1 + $0xb0] sm:$0xff]
  %v363 = vld [vmem:[%s1 + $0xb8] sm:$0xff]
  %v364 = vld [vmem:[%s1 + $0xc0] sm:$0xff]
  %v365 = vld [vmem:[%s1 + $0xc8] sm:$0xff]
  %v366 = vld [vmem:[%s1 + $0xd0] sm:$0xff]
  %v367 = vld [vmem:[%s1 + $0xd8] sm:$0xff]
  %v368 = vld [vmem:[%s1 + $0xe0] sm:$0xff]
  %v369 = vld [vmem:[%s1 + $0xe8] sm:$0xff]
  %v370 = vld [vmem:[%s1 + $0xf0] sm:$0xff]
  %v371 = vld [vmem:[%s1 + $0xf8] sm:$0xff]
  %v372 = vld [vmem:[%s1 + $0x100] sm:$0xff]
  %v373 = vld [vmem:[%s1 + $0x108] sm:$0xff]
  %v374 = vld [vmem:[%s1 + $0x110] sm:$0xff]
  %v375 = vld [vmem:[%s1 + $0x118] sm:$0xff]
  %v376 = vld [vmem:[%s1 + $0x120] sm:$0xff]
  %v377 = vld [vmem:[%s1 + $0x128] sm:$0xff]
  %v378 = vld [vmem:[%s1 + $0x130] sm:$0xff]
  %v379 = vld [vmem:[%s1 + $0x138] sm:$0xff]
  %v380 = vld [vmem:[%s1 + $0x140] sm:$0xff]
  %v381 = vld [vmem:[%s1 + $0x148] sm:$0xff]
  %v382 = vld [vmem:[%s1 + $0x150] sm:$0xff]
  %v383 = vld [vmem:[%s1 + $0x158] sm:$0xff]
  %v384 = vld [vmem:[%s1 + $0x160] sm:$0xff]
  %v385 = vld [vmem:[%s1 + $0x168] sm:$0xff]
  %v386 = vld [vmem:[%s1 + $0x170] sm:$0xff]
  %v387 = vld [vmem:[%s1 + $0x178] sm:$0xff]
  %v388 = vld [vmem:[%s1 + $0x180] sm:$0xff]
  %v389 = vld [vmem:[%s1 + $0x188] sm:$0xff]
  %v390 = vld [vmem:[%s1 + $0x190] sm:$0xff]
  %v391 = vld [vmem:[%s1 + $0x198] sm:$0xff]
  %v392 = vld [vmem:[%s1 + $0x1a0] sm:$0xff]
  %v393 = vld [vmem:[%s1 + $0x1a8] sm:$0xff]
  %v394 = vld [vmem:[%s1 + $0x1b0] sm:$0xff]
  %v395 = vld [vmem:[%s1 + $0x1b8] sm:$0xff]
  %v396 = vld [vmem:[%s1 + $0x1c0] sm:$0xff]
  %v397 = vld [vmem:[%s1 + $0x1c8] sm:$0xff]
  %v398 = vld [vmem:[%s1 + $0x1d0] sm:$0xff]
  %v399 = vld [vmem:[%s1 + $0x1d8] sm:$0xff]
  %v400 = vld [vmem:[%s1 + $0x1e0] sm:$0xff]
  %v401 = vld [vmem:[%s1 + $0x1e8] sm:$0xff]
  %v402 = vld [vmem:[%s1 + $0x1f0] sm:$0xf]
  %v404 = vsel %vm136, %v402, 0
  %406 = vmatprep.subr.mxu0 0.0
  %407 = vmatpush1.msra.mxu0 %v355
  %408 = vmatprep.subr.mxu0 0.0
  %409 = vmatpush1.msra.mxu0 %v354
  %410 = vmatprep.subr.mxu0 0.0
  %411 = vmatpush1.msra.mxu0 %v353
  %412 = vmatprep.subr.mxu0 0.0
  %413 = vmatpush1.msra.mxu0 %v352
  %414 = vmatprep.subr.mxu0 0.0
  %415 = vmatpush1.msra.mxu0 %v351
  %416 = vmatprep.subr.mxu0 0.0
  %417 = vmatpush1.msra.mxu0 %v350
  %418 = vmatprep.subr.mxu0 0.0
  %419 = vmatpush1.msra.mxu0 %v349
  %420 = vmatprep.subr.mxu0 0.0
  %421 = vmatpush1.msra.mxu0 %v348
  %422 = vmatprep.subr.mxu0 0.0
  %423 = vmatpush1.msra.mxu0 %v347
  %424 = vmatprep.subr.mxu0 0.0
  %425 = vmatpush1.msra.mxu0 %v346
  %426 = vmatprep.subr.mxu0 0.0
  %427 = vmatpush1.msra.mxu0 %v345
  %428 = vmatprep.subr.mxu0 0.0
  %429 = vmatpush1.msra.mxu0 %v344
  %430 = vmatprep.subr.mxu0 0.0
  %431 = vmatpush1.msra.mxu0 %v343
  %432 = vmatprep.subr.mxu0 0.0
  %433 = vmatpush1.msra.mxu0 %v342
  %434 = vmatprep.subr.mxu0 0.0
  %435 = vmatpush1.msra.mxu0 %v341
  %436 = vmatprep.subr.mxu0 0.0
  %437 = vmatpush1.msra.mxu0 %v340
  %438 = vmatprep.subr.mxu0 0.0
  %439 = vmatpush2.msra.mxu0 %v371
  %440 = vmatprep.subr.mxu0 0.0
  %441 = vmatpush2.msra.mxu0 %v370
  %442 = vmatprep.subr.mxu0 0.0
  %443 = vmatpush2.msra.mxu0 %v369
  %444 = vmatprep.subr.mxu0 0.0
  %445 = vmatpush2.msra.mxu0 %v368
  %446 = vmatprep.subr.mxu0 0.0
  %447 = vmatpush2.msra.mxu0 %v367
  %448 = vmatprep.subr.mxu0 0.0
  %449 = vmatpush2.msra.mxu0 %v366
  %450 = vmatprep.subr.mxu0 0.0
  %451 = vmatpush2.msra.mxu0 %v365
  %452 = vmatprep.subr.mxu0 0.0
  %453 = vmatpush2.msra.mxu0 %v364
  %454 = vmatprep.subr.mxu0 0.0
  %455 = vmatpush2.msra.mxu0 %v363
  %456 = vmatprep.subr.mxu0 0.0
  %457 = vmatpush2.msra.mxu0 %v362
  %458 = vmatprep.subr.mxu0 0.0
  %459 = vmatpush2.msra.mxu0 %v361
  %460 = vmatprep.subr.mxu0 0.0
  %461 = vmatpush2.msra.mxu0 %v360
  %462 = vmatprep.subr.mxu0 0.0
  %463 = vmatpush2.msra.mxu0 %v359
  %464 = vmatprep.subr.mxu0 0.0
  %465 = vmatpush2.msra.mxu0 %v358
  %466 = vmatprep.subr.mxu0 0.0
  %467 = vmatpush2.msra.mxu0 %v357
  %468 = vmatprep.subr.mxu0 0.0
  %469 = vmatpush2.msra.mxu0 %v356
  %470 = vmatprep.mubr.f32.mxu0 %v24
  %471 = vmatmul.mubr.f32.gmra.mxu0 %v23
  %v472 = vpop.f32.mrf.mxu0
  %v473 = vadd.f32 0.0, %v472
  %v474 = vpop.f32.mrf.mxu0
  %475 = vmatprep.mubr.f32.mxu0 %v28
  %476 = vmatmul.mubr.f32.gmra.mxu0 %v27
  %v477 = vpop.f32.mrf.mxu0
  %v478 = vadd.f32 0.0, %v477
  %v479 = vpop.f32.mrf.mxu0
  %480 = vmatprep.mubr.f32.mxu0 %v32
  %481 = vmatmul.mubr.f32.gmra.mxu0 %v31
  %v482 = vpop.f32.mrf.mxu0
  %v483 = vadd.f32 0.0, %v482
  %v484 = vpop.f32.mrf.mxu0
  %485 = vmatprep.mubr.f32.mxu0 %v36
  %486 = vmatmul.mubr.f32.gmra.mxu0 %v35
  %v487 = vpop.f32.mrf.mxu0
  %v488 = vadd.f32 0.0, %v487
  %v489 = vpop.f32.mrf.mxu0
  %490 = vmatprep.mubr.f32.mxu0 %v40
  %491 = vmatmul.mubr.f32.gmra.mxu0 %v39
  %v492 = vpop.f32.mrf.mxu0
  %v493 = vadd.f32 0.0, %v492
  %v494 = vpop.f32.mrf.mxu0
  %495 = vmatprep.mubr.f32.mxu0 %v44
  %496 = vmatmul.mubr.f32.gmra.mxu0 %v43
  %v497 = vpop.f32.mrf.mxu0
  %v498 = vadd.f32 0.0, %v497
  %v499 = vpop.f32.mrf.mxu0
  %500 = vmatprep.mubr.f32.mxu0 %v48
  %501 = vmatmul.mubr.f32.gmra.mxu0 %v47
  %v502 = vpop.f32.mrf.mxu0
  %v503 = vadd.f32 0.0, %v502
  %v504 = vpop.f32.mrf.mxu0
  %505 = vdwg.mxu0
  %506 = vmatprep.subr.mxu0 0.0
  %507 = vmatpush1.msra.mxu0 %v387
  %508 = vmatprep.subr.mxu0 0.0
  %509 = vmatpush1.msra.mxu0 %v386
  %510 = vmatprep.subr.mxu0 0.0
  %511 = vmatpush1.msra.mxu0 %v385
  %512 = vmatprep.subr.mxu0 0.0
  %513 = vmatpush1.msra.mxu0 %v384
  %514 = vmatprep.subr.mxu0 0.0
  %515 = vmatpush1.msra.mxu0 %v383
  %516 = vmatprep.subr.mxu0 0.0
  %517 = vmatpush1.msra.mxu0 %v382
  %518 = vmatprep.subr.mxu0 0.0
  %519 = vmatpush1.msra.mxu0 %v381
  %520 = vmatprep.subr.mxu0 0.0
  %521 = vmatpush1.msra.mxu0 %v380
  %522 = vmatprep.subr.mxu0 0.0
  %523 = vmatpush1.msra.mxu0 %v379
  %524 = vmatprep.subr.mxu0 0.0
  %525 = vmatpush1.msra.mxu0 %v378
  %526 = vmatprep.subr.mxu0 0.0
  %527 = vmatpush1.msra.mxu0 %v377
  %528 = vmatprep.subr.mxu0 0.0
  %529 = vmatpush1.msra.mxu0 %v376
  %530 = vmatprep.subr.mxu0 0.0
  %531 = vmatpush1.msra.mxu0 %v375
  %532 = vmatprep.subr.mxu0 0.0
  %533 = vmatpush1.msra.mxu0 %v374
  %534 = vmatprep.subr.mxu0 0.0
  %535 = vmatpush1.msra.mxu0 %v373
  %536 = vmatprep.subr.mxu0 0.0
  %537 = vmatpush1.msra.mxu0 %v372
  %538 = vmatprep.subr.mxu0 0.0
  %539 = vmatpush2.msra.mxu0 0.0
  %540 = vmatprep.subr.mxu0 0.0
  %541 = vmatpush2.msra.mxu0 %v404
  %542 = vmatprep.subr.mxu0 0.0
  %543 = vmatpush2.msra.mxu0 %v401
  %544 = vmatprep.subr.mxu0 0.0
  %545 = vmatpush2.msra.mxu0 %v400
  %546 = vmatprep.subr.mxu0 0.0
  %547 = vmatpush2.msra.mxu0 %v399
  %548 = vmatprep.subr.mxu0 0.0
  %549 = vmatpush2.msra.mxu0 %v398
  %550 = vmatprep.subr.mxu0 0.0
  %551 = vmatpush2.msra.mxu0 %v397
  %552 = vmatprep.subr.mxu0 0.0
  %553 = vmatpush2.msra.mxu0 %v396
  %554 = vmatprep.subr.mxu0 0.0
  %555 = vmatpush2.msra.mxu0 %v395
  %556 = vmatprep.subr.mxu0 0.0
  %557 = vmatpush2.msra.mxu0 %v394
  %558 = vmatprep.subr.mxu0 0.0
  %559 = vmatpush2.msra.mxu0 %v393
  %560 = vmatprep.subr.mxu0 0.0
  %561 = vmatpush2.msra.mxu0 %v392
  %562 = vmatprep.subr.mxu0 0.0
  %563 = vmatpush2.msra.mxu0 %v391
  %564 = vmatprep.subr.mxu0 0.0
  %565 = vmatpush2.msra.mxu0 %v390
  %566 = vmatprep.subr.mxu0 0.0
  %567 = vmatpush2.msra.mxu0 %v389
  %568 = vmatprep.subr.mxu0 0.0
  %569 = vmatpush2.msra.mxu0 %v388
  %570 = vmatprep.mubr.f32.mxu0 %v116
  %571 = vmatmul.mubr.f32.gmra.mxu0 %v25
  %v572 = vpop.f32.mrf.mxu0
  %v573 = vadd.f32 %v473, %v572
  %v574 = vpop.f32.mrf.mxu0
  %575 = vmatprep.mubr.f32.mxu0 %v119
  %576 = vmatmul.mubr.f32.gmra.mxu0 %v29
  %v577 = vpop.f32.mrf.mxu0
  %v578 = vadd.f32 %v478, %v577
  %v579 = vpop.f32.mrf.mxu0
  %580 = vmatprep.mubr.f32.mxu0 %v122
  %581 = vmatmul.mubr.f32.gmra.mxu0 %v33
  %v582 = vpop.f32.mrf.mxu0
  %v583 = vadd.f32 %v483, %v582
  %v584 = vpop.f32.mrf.mxu0
  %585 = vmatprep.mubr.f32.mxu0 %v125
  %586 = vmatmul.mubr.f32.gmra.mxu0 %v37
  %v587 = vpop.f32.mrf.mxu0
  %v588 = vadd.f32 %v488, %v587
  %v589 = vpop.f32.mrf.mxu0
  %590 = vmatprep.mubr.f32.mxu0 %v128
  %591 = vmatmul.mubr.f32.gmra.mxu0 %v41
  %v592 = vpop.f32.mrf.mxu0
  %v593 = vadd.f32 %v493, %v592
  %v594 = vpop.f32.mrf.mxu0
  %595 = vmatprep.mubr.f32.mxu0 %v131
  %596 = vmatmul.mubr.f32.gmra.mxu0 %v45
  %v597 = vpop.f32.mrf.mxu0
  %v598 = vadd.f32 %v498, %v597
  %v599 = vpop.f32.mrf.mxu0
  %600 = vmatprep.mubr.f32.mxu0 %v134
  %601 = vmatmul.mubr.f32.gmra.mxu0 %v49
  %v602 = vpop.f32.mrf.mxu0
  %v603 = vadd.f32 %v503, %v602
  %v604 = vpop.f32.mrf.mxu0
  %605 = vdwg.mxu0
  %v606 = vmax.f32 %v307, %v573
  %v607 = vmax.f32 %v312, %v578
  %v608 = vmax.f32 %v317, %v583
  %v609 = vmax.f32 %v322, %v588
  %v610 = vmax.f32 %v327, %v593
  %v611 = vmax.f32 %v332, %v598
  %v612 = vmax.f32 %v337, %v603
  %v613 = vld [vmem:[%s2] sm:$0xff]
  %v614 = vld [vmem:[%s2 + $0x8] sm:$0xff]
  %v615 = vld [vmem:[%s2 + $0x10] sm:$0xff]
  %v616 = vld [vmem:[%s2 + $0x18] sm:$0xff]
  %v617 = vld [vmem:[%s2 + $0x20] sm:$0xff]
  %v618 = vld [vmem:[%s2 + $0x28] sm:$0xff]
  %v619 = vld [vmem:[%s2 + $0x30] sm:$0xff]
  %v620 = vld [vmem:[%s2 + $0x38] sm:$0xff]
  %v621 = vld [vmem:[%s2 + $0x40] sm:$0xff]
  %v622 = vld [vmem:[%s2 + $0x48] sm:$0xff]
  %v623 = vld [vmem:[%s2 + $0x50] sm:$0xff]
  %v624 = vld [vmem:[%s2 + $0x58] sm:$0xff]
  %v625 = vld [vmem:[%s2 + $0x60] sm:$0xff]
  %v626 = vld [vmem:[%s2 + $0x68] sm:$0xff]
  %v627 = vld [vmem:[%s2 + $0x70] sm:$0xff]
  %v628 = vld [vmem:[%s2 + $0x78] sm:$0xff]
  %v629 = vld [vmem:[%s2 + $0x80] sm:$0xff]
  %v630 = vld [vmem:[%s2 + $0x88] sm:$0xff]
  %v631 = vld [vmem:[%s2 + $0x90] sm:$0xff]
  %v632 = vld [vmem:[%s2 + $0x98] sm:$0xff]
  %v633 = vld [vmem:[%s2 + $0xa0] sm:$0xff]
  %v634 = vld [vmem:[%s2 + $0xa8] sm:$0xff]
  %v635 = vld [vmem:[%s2 + $0xb0] sm:$0xff]
  %v636 = vld [vmem:[%s2 + $0xb8] sm:$0xff]
  %v637 = vld [vmem:[%s2 + $0xc0] sm:$0xff]
  %v638 = vld [vmem:[%s2 + $0xc8] sm:$0xff]
  %v639 = vld [vmem:[%s2 + $0xd0] sm:$0xff]
  %v640 = vld [vmem:[%s2 + $0xd8] sm:$0xff]
  %v641 = vld [vmem:[%s2 + $0xe0] sm:$0xff]
  %v642 = vld [vmem:[%s2 + $0xe8] sm:$0xff]
  %v643 = vld [vmem:[%s2 + $0xf0] sm:$0xff]
  %v644 = vld [vmem:[%s2 + $0xf8] sm:$0xff]
  %v645 = vld [vmem:[%s2 + $0x100] sm:$0xff]
  %v646 = vld [vmem:[%s2 + $0x108] sm:$0xff]
  %v647 = vld [vmem:[%s2 + $0x110] sm:$0xff]
  %v648 = vld [vmem:[%s2 + $0x118] sm:$0xff]
  %v649 = vld [vmem:[%s2 + $0x120] sm:$0xff]
  %v650 = vld [vmem:[%s2 + $0x128] sm:$0xff]
  %v651 = vld [vmem:[%s2 + $0x130] sm:$0xff]
  %v652 = vld [vmem:[%s2 + $0x138] sm:$0xff]
  %v653 = vld [vmem:[%s2 + $0x140] sm:$0xff]
  %v654 = vld [vmem:[%s2 + $0x148] sm:$0xff]
  %v655 = vld [vmem:[%s2 + $0x150] sm:$0xff]
  %v656 = vld [vmem:[%s2 + $0x158] sm:$0xff]
  %v657 = vld [vmem:[%s2 + $0x160] sm:$0xff]
  %v658 = vld [vmem:[%s2 + $0x168] sm:$0xff]
  %v659 = vld [vmem:[%s2 + $0x170] sm:$0xff]
  %v660 = vld [vmem:[%s2 + $0x178] sm:$0xff]
  %v661 = vld [vmem:[%s2 + $0x180] sm:$0xff]
  %v662 = vld [vmem:[%s2 + $0x188] sm:$0xff]
  %v663 = vld [vmem:[%s2 + $0x190] sm:$0xff]
  %v664 = vld [vmem:[%s2 + $0x198] sm:$0xff]
  %v665 = vld [vmem:[%s2 + $0x1a0] sm:$0xff]
  %v666 = vld [vmem:[%s2 + $0x1a8] sm:$0xff]
  %v667 = vld [vmem:[%s2 + $0x1b0] sm:$0xff]
  %v668 = vld [vmem:[%s2 + $0x1b8] sm:$0xff]
  %v669 = vld [vmem:[%s2 + $0x1c0] sm:$0xff]
  %v670 = vld [vmem:[%s2 + $0x1c8] sm:$0xff]
  %v671 = vld [vmem:[%s2 + $0x1d0] sm:$0xff]
  %v672 = vld [vmem:[%s2 + $0x1d8] sm:$0xff]
  %v673 = vld [vmem:[%s2 + $0x1e0] sm:$0xff]
  %v674 = vld [vmem:[%s2 + $0x1e8] sm:$0xff]
  %v675 = vld [vmem:[%s2 + $0x1f0] sm:$0xf]
  %v677 = vsel %vm136, %v675, 0
  %679 = vmatprep.subr.mxu0 0.0
  %680 = vmatpush1.msra.mxu0 %v628
  %681 = vmatprep.subr.mxu0 0.0
  %682 = vmatpush1.msra.mxu0 %v627
  %683 = vmatprep.subr.mxu0 0.0
  %684 = vmatpush1.msra.mxu0 %v626
  %685 = vmatprep.subr.mxu0 0.0
  %686 = vmatpush1.msra.mxu0 %v625
  %687 = vmatprep.subr.mxu0 0.0
  %688 = vmatpush1.msra.mxu0 %v624
  %689 = vmatprep.subr.mxu0 0.0
  %690 = vmatpush1.msra.mxu0 %v623
  %691 = vmatprep.subr.mxu0 0.0
  %692 = vmatpush1.msra.mxu0 %v622
  %693 = vmatprep.subr.mxu0 0.0
  %694 = vmatpush1.msra.mxu0 %v621
  %695 = vmatprep.subr.mxu0 0.0
  %696 = vmatpush1.msra.mxu0 %v620
  %697 = vmatprep.subr.mxu0 0.0
  %698 = vmatpush1.msra.mxu0 %v619
  %699 = vmatprep.subr.mxu0 0.0
  %700 = vmatpush1.msra.mxu0 %v618
  %701 = vmatprep.subr.mxu0 0.0
  %702 = vmatpush1.msra.mxu0 %v617
  %703 = vmatprep.subr.mxu0 0.0
  %704 = vmatpush1.msra.mxu0 %v616
  %705 = vmatprep.subr.mxu0 0.0
  %706 = vmatpush1.msra.mxu0 %v615
  %707 = vmatprep.subr.mxu0 0.0
  %708 = vmatpush1.msra.mxu0 %v614
  %709 = vmatprep.subr.mxu0 0.0
  %710 = vmatpush1.msra.mxu0 %v613
  %711 = vmatprep.subr.mxu0 0.0
  %712 = vmatpush2.msra.mxu0 %v644
  %713 = vmatprep.subr.mxu0 0.0
  %714 = vmatpush2.msra.mxu0 %v643
  %715 = vmatprep.subr.mxu0 0.0
  %716 = vmatpush2.msra.mxu0 %v642
  %717 = vmatprep.subr.mxu0 0.0
  %718 = vmatpush2.msra.mxu0 %v641
  %719 = vmatprep.subr.mxu0 0.0
  %720 = vmatpush2.msra.mxu0 %v640
  %721 = vmatprep.subr.mxu0 0.0
  %722 = vmatpush2.msra.mxu0 %v639
  %723 = vmatprep.subr.mxu0 0.0
  %724 = vmatpush2.msra.mxu0 %v638
  %725 = vmatprep.subr.mxu0 0.0
  %726 = vmatpush2.msra.mxu0 %v637
  %727 = vmatprep.subr.mxu0 0.0
  %728 = vmatpush2.msra.mxu0 %v636
  %729 = vmatprep.subr.mxu0 0.0
  %730 = vmatpush2.msra.mxu0 %v635
  %731 = vmatprep.subr.mxu0 0.0
  %732 = vmatpush2.msra.mxu0 %v634
  %733 = vmatprep.subr.mxu0 0.0
  %734 = vmatpush2.msra.mxu0 %v633
  %735 = vmatprep.subr.mxu0 0.0
  %736 = vmatpush2.msra.mxu0 %v632
  %737 = vmatprep.subr.mxu0 0.0
  %738 = vmatpush2.msra.mxu0 %v631
  %739 = vmatprep.subr.mxu0 0.0
  %740 = vmatpush2.msra.mxu0 %v630
  %741 = vmatprep.subr.mxu0 0.0
  %742 = vmatpush2.msra.mxu0 %v629
  %743 = vmatprep.mubr.f32.mxu0 %v24
  %744 = vmatmul.mubr.f32.gmra.mxu0 %v23
  %v745 = vpop.f32.mrf.mxu0
  %v746 = vadd.f32 0.0, %v745
  %v747 = vpop.f32.mrf.mxu0
  %748 = vmatprep.mubr.f32.mxu0 %v28
  %749 = vmatmul.mubr.f32.gmra.mxu0 %v27
  %v750 = vpop.f32.mrf.mxu0
  %v751 = vadd.f32 0.0, %v750
  %v752 = vpop.f32.mrf.mxu0
  %753 = vmatprep.mubr.f32.mxu0 %v32
  %754 = vmatmul.mubr.f32.gmra.mxu0 %v31
  %v755 = vpop.f32.mrf.mxu0
  %v756 = vadd.f32 0.0, %v755
  %v757 = vpop.f32.mrf.mxu0
  %758 = vmatprep.mubr.f32.mxu0 %v36
  %759 = vmatmul.mubr.f32.gmra.mxu0 %v35
  %v760 = vpop.f32.mrf.mxu0
  %v761 = vadd.f32 0.0, %v760
  %v762 = vpop.f32.mrf.mxu0
  %763 = vmatprep.mubr.f32.mxu0 %v40
  %764 = vmatmul.mubr.f32.gmra.mxu0 %v39
  %v765 = vpop.f32.mrf.mxu0
  %v766 = vadd.f32 0.0, %v765
  %v767 = vpop.f32.mrf.mxu0
  %768 = vmatprep.mubr.f32.mxu0 %v44
  %769 = vmatmul.mubr.f32.gmra.mxu0 %v43
  %v770 = vpop.f32.mrf.mxu0
  %v771 = vadd.f32 0.0, %v770
  %v772 = vpop.f32.mrf.mxu0
  %773 = vmatprep.mubr.f32.mxu0 %v48
  %774 = vmatmul.mubr.f32.gmra.mxu0 %v47
  %v775 = vpop.f32.mrf.mxu0
  %v776 = vadd.f32 0.0, %v775
  %v777 = vpop.f32.mrf.mxu0
  %778 = vdwg.mxu0
  %779 = vmatprep.subr.mxu0 0.0
  %780 = vmatpush1.msra.mxu0 %v660
  %781 = vmatprep.subr.mxu0 0.0
  %782 = vmatpush1.msra.mxu0 %v659
  %783 = vmatprep.subr.mxu0 0.0
  %784 = vmatpush1.msra.mxu0 %v658
  %785 = vmatprep.subr.mxu0 0.0
  %786 = vmatpush1.msra.mxu0 %v657
  %787 = vmatprep.subr.mxu0 0.0
  %788 = vmatpush1.msra.mxu0 %v656
  %789 = vmatprep.subr.mxu0 0.0
  %790 = vmatpush1.msra.mxu0 %v655
  %791 = vmatprep.subr.mxu0 0.0
  %792 = vmatpush1.msra.mxu0 %v654
  %793 = vmatprep.subr.mxu0 0.0
  %794 = vmatpush1.msra.mxu0 %v653
  %795 = vmatprep.subr.mxu0 0.0
  %796 = vmatpush1.msra.mxu0 %v652
  %797 = vmatprep.subr.mxu0 0.0
  %798 = vmatpush1.msra.mxu0 %v651
  %799 = vmatprep.subr.mxu0 0.0
  %800 = vmatpush1.msra.mxu0 %v650
  %801 = vmatprep.subr.mxu0 0.0
  %802 = vmatpush1.msra.mxu0 %v649
  %803 = vmatprep.subr.mxu0 0.0
  %804 = vmatpush1.msra.mxu0 %v648
  %805 = vmatprep.subr.mxu0 0.0
  %806 = vmatpush1.msra.mxu0 %v647
  %807 = vmatprep.subr.mxu0 0.0
  %808 = vmatpush1.msra.mxu0 %v646
  %809 = vmatprep.subr.mxu0 0.0
  %810 = vmatpush1.msra.mxu0 %v645
  %811 = vmatprep.subr.mxu0 0.0
  %812 = vmatpush2.msra.mxu0 0.0
  %813 = vmatprep.subr.mxu0 0.0
  %814 = vmatpush2.msra.mxu0 %v677
  %815 = vmatprep.subr.mxu0 0.0
  %816 = vmatpush2.msra.mxu0 %v674
  %817 = vmatprep.subr.mxu0 0.0
  %818 = vmatpush2.msra.mxu0 %v673
  %819 = vmatprep.subr.mxu0 0.0
  %820 = vmatpush2.msra.mxu0 %v672
  %821 = vmatprep.subr.mxu0 0.0
  %822 = vmatpush2.msra.mxu0 %v671
  %823 = vmatprep.subr.mxu0 0.0
  %824 = vmatpush2.msra.mxu0 %v670
  %825 = vmatprep.subr.mxu0 0.0
  %826 = vmatpush2.msra.mxu0 %v669
  %827 = vmatprep.subr.mxu0 0.0
  %828 = vmatpush2.msra.mxu0 %v668
  %829 = vmatprep.subr.mxu0 0.0
  %830 = vmatpush2.msra.mxu0 %v667
  %831 = vmatprep.subr.mxu0 0.0
  %832 = vmatpush2.msra.mxu0 %v666
  %833 = vmatprep.subr.mxu0 0.0
  %834 = vmatpush2.msra.mxu0 %v665
  %835 = vmatprep.subr.mxu0 0.0
  %836 = vmatpush2.msra.mxu0 %v664
  %837 = vmatprep.subr.mxu0 0.0
  %838 = vmatpush2.msra.mxu0 %v663
  %839 = vmatprep.subr.mxu0 0.0
  %840 = vmatpush2.msra.mxu0 %v662
  %841 = vmatprep.subr.mxu0 0.0
  %842 = vmatpush2.msra.mxu0 %v661
  %843 = vmatprep.mubr.f32.mxu0 %v116
  %844 = vmatmul.mubr.f32.gmra.mxu0 %v25
  %v845 = vpop.f32.mrf.mxu0
  %v846 = vadd.f32 %v746, %v845
  %v847 = vpop.f32.mrf.mxu0
  %848 = vmatprep.mubr.f32.mxu0 %v119
  %849 = vmatmul.mubr.f32.gmra.mxu0 %v29
  %v850 = vpop.f32.mrf.mxu0
  %v851 = vadd.f32 %v751, %v850
  %v852 = vpop.f32.mrf.mxu0
  %853 = vmatprep.mubr.f32.mxu0 %v122
  %854 = vmatmul.mubr.f32.gmra.mxu0 %v33
  %v855 = vpop.f32.mrf.mxu0
  %v856 = vadd.f32 %v756, %v855
  %v857 = vpop.f32.mrf.mxu0
  %858 = vmatprep.mubr.f32.mxu0 %v125
  %859 = vmatmul.mubr.f32.gmra.mxu0 %v37
  %v860 = vpop.f32.mrf.mxu0
  %v861 = vadd.f32 %v761, %v860
  %v862 = vpop.f32.mrf.mxu0
  %863 = vmatprep.mubr.f32.mxu0 %v128
  %864 = vmatmul.mubr.f32.gmra.mxu0 %v41
  %v865 = vpop.f32.mrf.mxu0
  %v866 = vadd.f32 %v766, %v865
  %v867 = vpop.f32.mrf.mxu0
  %868 = vmatprep.mubr.f32.mxu0 %v131
  %869 = vmatmul.mubr.f32.gmra.mxu0 %v45
  %v870 = vpop.f32.mrf.mxu0
  %v871 = vadd.f32 %v771, %v870
  %v872 = vpop.f32.mrf.mxu0
  %873 = vmatprep.mubr.f32.mxu0 %v134
  %874 = vmatmul.mubr.f32.gmra.mxu0 %v49
  %v875 = vpop.f32.mrf.mxu0
  %v876 = vadd.f32 %v776, %v875
  %v877 = vpop.f32.mrf.mxu0
  %878 = vdwg.mxu0
  %v879 = vmax.f32 %v606, %v846
  %v880 = vmax.f32 %v607, %v851
  %v881 = vmax.f32 %v608, %v856
  %v882 = vmax.f32 %v609, %v861
  %v883 = vmax.f32 %v610, %v866
  %v884 = vmax.f32 %v611, %v871
  %v885 = vmax.f32 %v612, %v876
  %v886 = vld [vmem:[%s3] sm:$0xff]
  %v887 = vld [vmem:[%s3 + $0x8] sm:$0xff]
  %v888 = vld [vmem:[%s3 + $0x10] sm:$0xff]
  %v889 = vld [vmem:[%s3 + $0x18] sm:$0xff]
  %v890 = vld [vmem:[%s3 + $0x20] sm:$0xff]
  %v891 = vld [vmem:[%s3 + $0x28] sm:$0xff]
  %v892 = vld [vmem:[%s3 + $0x30] sm:$0xff]
  %v893 = vld [vmem:[%s3 + $0x38] sm:$0xff]
  %v894 = vld [vmem:[%s3 + $0x40] sm:$0xff]
  %v895 = vld [vmem:[%s3 + $0x48] sm:$0xff]
  %v896 = vld [vmem:[%s3 + $0x50] sm:$0xff]
  %v897 = vld [vmem:[%s3 + $0x58] sm:$0xff]
  %v898 = vld [vmem:[%s3 + $0x60] sm:$0xff]
  %v899 = vld [vmem:[%s3 + $0x68] sm:$0xff]
  %v900 = vld [vmem:[%s3 + $0x70] sm:$0xff]
  %v901 = vld [vmem:[%s3 + $0x78] sm:$0xff]
  %v902 = vld [vmem:[%s3 + $0x80] sm:$0xff]
  %v903 = vld [vmem:[%s3 + $0x88] sm:$0xff]
  %v904 = vld [vmem:[%s3 + $0x90] sm:$0xff]
  %v905 = vld [vmem:[%s3 + $0x98] sm:$0xff]
  %v906 = vld [vmem:[%s3 + $0xa0] sm:$0xff]
  %v907 = vld [vmem:[%s3 + $0xa8] sm:$0xff]
  %v908 = vld [vmem:[%s3 + $0xb0] sm:$0xff]
  %v909 = vld [vmem:[%s3 + $0xb8] sm:$0xff]
  %v910 = vld [vmem:[%s3 + $0xc0] sm:$0xff]
  %v911 = vld [vmem:[%s3 + $0xc8] sm:$0xff]
  %v912 = vld [vmem:[%s3 + $0xd0] sm:$0xff]
  %v913 = vld [vmem:[%s3 + $0xd8] sm:$0xff]
  %v914 = vld [vmem:[%s3 + $0xe0] sm:$0xff]
  %v915 = vld [vmem:[%s3 + $0xe8] sm:$0xff]
  %v916 = vld [vmem:[%s3 + $0xf0] sm:$0xff]
  %v917 = vld [vmem:[%s3 + $0xf8] sm:$0xff]
  %v918 = vld [vmem:[%s3 + $0x100] sm:$0xff]
  %v919 = vld [vmem:[%s3 + $0x108] sm:$0xff]
  %v920 = vld [vmem:[%s3 + $0x110] sm:$0xff]
  %v921 = vld [vmem:[%s3 + $0x118] sm:$0xff]
  %v922 = vld [vmem:[%s3 + $0x120] sm:$0xff]
  %v923 = vld [vmem:[%s3 + $0x128] sm:$0xff]
  %v924 = vld [vmem:[%s3 + $0x130] sm:$0xff]
  %v925 = vld [vmem:[%s3 + $0x138] sm:$0xff]
  %v926 = vld [vmem:[%s3 + $0x140] sm:$0xff]
  %v927 = vld [vmem:[%s3 + $0x148] sm:$0xff]
  %v928 = vld [vmem:[%s3 + $0x150] sm:$0xff]
  %v929 = vld [vmem:[%s3 + $0x158] sm:$0xff]
  %v930 = vld [vmem:[%s3 + $0x160] sm:$0xff]
  %v931 = vld [vmem:[%s3 + $0x168] sm:$0xff]
  %v932 = vld [vmem:[%s3 + $0x170] sm:$0xff]
  %v933 = vld [vmem:[%s3 + $0x178] sm:$0xff]
  %v934 = vld [vmem:[%s3 + $0x180] sm:$0xff]
  %v935 = vld [vmem:[%s3 + $0x188] sm:$0xff]
  %v936 = vld [vmem:[%s3 + $0x190] sm:$0xff]
  %v937 = vld [vmem:[%s3 + $0x198] sm:$0xff]
  %v938 = vld [vmem:[%s3 + $0x1a0] sm:$0xff]
  %v939 = vld [vmem:[%s3 + $0x1a8] sm:$0xff]
  %v940 = vld [vmem:[%s3 + $0x1b0] sm:$0xff]
  %v941 = vld [vmem:[%s3 + $0x1b8] sm:$0xff]
  %v942 = vld [vmem:[%s3 + $0x1c0] sm:$0xff]
  %v943 = vld [vmem:[%s3 + $0x1c8] sm:$0xff]
  %v944 = vld [vmem:[%s3 + $0x1d0] sm:$0xff]
  %v945 = vld [vmem:[%s3 + $0x1d8] sm:$0xff]
  %v946 = vld [vmem:[%s3 + $0x1e0] sm:$0xff]
  %v947 = vld [vmem:[%s3 + $0x1e8] sm:$0xff]
  %v948 = vld [vmem:[%s3 + $0x1f0] sm:$0xf]
  %v950 = vsel %vm136, %v948, 0
  %952 = vmatprep.subr.mxu0 0.0
  %953 = vmatpush1.msra.mxu0 %v901
  %954 = vmatprep.subr.mxu0 0.0
  %955 = vmatpush1.msra.mxu0 %v900
  %956 = vmatprep.subr.mxu0 0.0
  %957 = vmatpush1.msra.mxu0 %v899
  %958 = vmatprep.subr.mxu0 0.0
  %959 = vmatpush1.msra.mxu0 %v898
  %960 = vmatprep.subr.mxu0 0.0
  %961 = vmatpush1.msra.mxu0 %v897
  %962 = vmatprep.subr.mxu0 0.0
  %963 = vmatpush1.msra.mxu0 %v896
  %964 = vmatprep.subr.mxu0 0.0
  %965 = vmatpush1.msra.mxu0 %v895
  %966 = vmatprep.subr.mxu0 0.0
  %967 = vmatpush1.msra.mxu0 %v894
  %968 = vmatprep.subr.mxu0 0.0
  %969 = vmatpush1.msra.mxu0 %v893
  %970 = vmatprep.subr.mxu0 0.0
  %971 = vmatpush1.msra.mxu0 %v892
  %972 = vmatprep.subr.mxu0 0.0
  %973 = vmatpush1.msra.mxu0 %v891
  %974 = vmatprep.subr.mxu0 0.0
  %975 = vmatpush1.msra.mxu0 %v890
  %976 = vmatprep.subr.mxu0 0.0
  %977 = vmatpush1.msra.mxu0 %v889
  %978 = vmatprep.subr.mxu0 0.0
  %979 = vmatpush1.msra.mxu0 %v888
  %980 = vmatprep.subr.mxu0 0.0
  %981 = vmatpush1.msra.mxu0 %v887
  %982 = vmatprep.subr.mxu0 0.0
  %983 = vmatpush1.msra.mxu0 %v886
  %984 = vmatprep.subr.mxu0 0.0
  %985 = vmatpush2.msra.mxu0 %v917
  %986 = vmatprep.subr.mxu0 0.0
  %987 = vmatpush2.msra.mxu0 %v916
  %988 = vmatprep.subr.mxu0 0.0
  %989 = vmatpush2.msra.mxu0 %v915
  %990 = vmatprep.subr.mxu0 0.0
  %991 = vmatpush2.msra.mxu0 %v914
  %992 = vmatprep.subr.mxu0 0.0
  %993 = vmatpush2.msra.mxu0 %v913
  %994 = vmatprep.subr.mxu0 0.0
  %995 = vmatpush2.msra.mxu0 %v912
  %996 = vmatprep.subr.mxu0 0.0
  %997 = vmatpush2.msra.mxu0 %v911
  %998 = vmatprep.subr.mxu0 0.0
  %999 = vmatpush2.msra.mxu0 %v910
  %1000 = vmatprep.subr.mxu0 0.0
  %1001 = vmatpush2.msra.mxu0 %v909
  %1002 = vmatprep.subr.mxu0 0.0
  %1003 = vmatpush2.msra.mxu0 %v908
  %1004 = vmatprep.subr.mxu0 0.0
  %1005 = vmatpush2.msra.mxu0 %v907
  %1006 = vmatprep.subr.mxu0 0.0
  %1007 = vmatpush2.msra.mxu0 %v906
  %1008 = vmatprep.subr.mxu0 0.0
  %1009 = vmatpush2.msra.mxu0 %v905
  %1010 = vmatprep.subr.mxu0 0.0
  %1011 = vmatpush2.msra.mxu0 %v904
  %1012 = vmatprep.subr.mxu0 0.0
  %1013 = vmatpush2.msra.mxu0 %v903
  %1014 = vmatprep.subr.mxu0 0.0
  %1015 = vmatpush2.msra.mxu0 %v902
  %1016 = vmatprep.mubr.f32.mxu0 %v24
  %1017 = vmatmul.mubr.f32.gmra.mxu0 %v23
  %v1018 = vpop.f32.mrf.mxu0
  %v1019 = vadd.f32 0.0, %v1018
  %v1020 = vpop.f32.mrf.mxu0
  %1021 = vmatprep.mubr.f32.mxu0 %v28
  %1022 = vmatmul.mubr.f32.gmra.mxu0 %v27
  %v1023 = vpop.f32.mrf.mxu0
  %v1024 = vadd.f32 0.0, %v1023
  %v1025 = vpop.f32.mrf.mxu0
  %1026 = vmatprep.mubr.f32.mxu0 %v32
  %1027 = vmatmul.mubr.f32.gmra.mxu0 %v31
  %v1028 = vpop.f32.mrf.mxu0
  %v1029 = vadd.f32 0.0, %v1028
  %v1030 = vpop.f32.mrf.mxu0
  %1031 = vmatprep.mubr.f32.mxu0 %v36
  %1032 = vmatmul.mubr.f32.gmra.mxu0 %v35
  %v1033 = vpop.f32.mrf.mxu0
  %v1034 = vadd.f32 0.0, %v1033
  %v1035 = vpop.f32.mrf.mxu0
  %1036 = vmatprep.mubr.f32.mxu0 %v40
  %1037 = vmatmul.mubr.f32.gmra.mxu0 %v39
  %v1038 = vpop.f32.mrf.mxu0
  %v1039 = vadd.f32 0.0, %v1038
  %v1040 = vpop.f32.mrf.mxu0
  %1041 = vmatprep.mubr.f32.mxu0 %v44
  %1042 = vmatmul.mubr.f32.gmra.mxu0 %v43
  %v1043 = vpop.f32.mrf.mxu0
  %v1044 = vadd.f32 0.0, %v1043
  %v1045 = vpop.f32.mrf.mxu0
  %1046 = vmatprep.mubr.f32.mxu0 %v48
  %1047 = vmatmul.mubr.f32.gmra.mxu0 %v47
  %v1048 = vpop.f32.mrf.mxu0
  %v1049 = vadd.f32 0.0, %v1048
  %v1050 = vpop.f32.mrf.mxu0
  %1051 = vdwg.mxu0
  %1052 = vmatprep.subr.mxu0 0.0
  %1053 = vmatpush1.msra.mxu0 %v933
  %1054 = vmatprep.subr.mxu0 0.0
  %1055 = vmatpush1.msra.mxu0 %v932
  %1056 = vmatprep.subr.mxu0 0.0
  %1057 = vmatpush1.msra.mxu0 %v931
  %1058 = vmatprep.subr.mxu0 0.0
  %1059 = vmatpush1.msra.mxu0 %v930
  %1060 = vmatprep.subr.mxu0 0.0
  %1061 = vmatpush1.msra.mxu0 %v929
  %1062 = vmatprep.subr.mxu0 0.0
  %1063 = vmatpush1.msra.mxu0 %v928
  %1064 = vmatprep.subr.mxu0 0.0
  %1065 = vmatpush1.msra.mxu0 %v927
  %1066 = vmatprep.subr.mxu0 0.0
  %1067 = vmatpush1.msra.mxu0 %v926
  %1068 = vmatprep.subr.mxu0 0.0
  %1069 = vmatpush1.msra.mxu0 %v925
  %1070 = vmatprep.subr.mxu0 0.0
  %1071 = vmatpush1.msra.mxu0 %v924
  %1072 = vmatprep.subr.mxu0 0.0
  %1073 = vmatpush1.msra.mxu0 %v923
  %1074 = vmatprep.subr.mxu0 0.0
  %1075 = vmatpush1.msra.mxu0 %v922
  %1076 = vmatprep.subr.mxu0 0.0
  %1077 = vmatpush1.msra.mxu0 %v921
  %1078 = vmatprep.subr.mxu0 0.0
  %1079 = vmatpush1.msra.mxu0 %v920
  %1080 = vmatprep.subr.mxu0 0.0
  %1081 = vmatpush1.msra.mxu0 %v919
  %1082 = vmatprep.subr.mxu0 0.0
  %1083 = vmatpush1.msra.mxu0 %v918
  %1084 = vmatprep.subr.mxu0 0.0
  %1085 = vmatpush2.msra.mxu0 0.0
  %1086 = vmatprep.subr.mxu0 0.0
  %1087 = vmatpush2.msra.mxu0 %v950
  %1088 = vmatprep.subr.mxu0 0.0
  %1089 = vmatpush2.msra.mxu0 %v947
  %1090 = vmatprep.subr.mxu0 0.0
  %1091 = vmatpush2.msra.mxu0 %v946
  %1092 = vmatprep.subr.mxu0 0.0
  %1093 = vmatpush2.msra.mxu0 %v945
  %1094 = vmatprep.subr.mxu0 0.0
  %1095 = vmatpush2.msra.mxu0 %v944
  %1096 = vmatprep.subr.mxu0 0.0
  %1097 = vmatpush2.msra.mxu0 %v943
  %1098 = vmatprep.subr.mxu0 0.0
  %1099 = vmatpush2.msra.mxu0 %v942
  %1100 = vmatprep.subr.mxu0 0.0
  %1101 = vmatpush2.msra.mxu0 %v941
  %1102 = vmatprep.subr.mxu0 0.0
  %1103 = vmatpush2.msra.mxu0 %v940
  %1104 = vmatprep.subr.mxu0 0.0
  %1105 = vmatpush2.msra.mxu0 %v939
  %1106 = vmatprep.subr.mxu0 0.0
  %1107 = vmatpush2.msra.mxu0 %v938
  %1108 = vmatprep.subr.mxu0 0.0
  %1109 = vmatpush2.msra.mxu0 %v937
  %1110 = vmatprep.subr.mxu0 0.0
  %1111 = vmatpush2.msra.mxu0 %v936
  %1112 = vmatprep.subr.mxu0 0.0
  %1113 = vmatpush2.msra.mxu0 %v935
  %1114 = vmatprep.subr.mxu0 0.0
  %1115 = vmatpush2.msra.mxu0 %v934
  %1116 = vmatprep.mubr.f32.mxu0 %v116
  %1117 = vmatmul.mubr.f32.gmra.mxu0 %v25
  %v1118 = vpop.f32.mrf.mxu0
  %v1119 = vadd.f32 %v1019, %v1118
  %v1120 = vpop.f32.mrf.mxu0
  %1121 = vmatprep.mubr.f32.mxu0 %v119
  %1122 = vmatmul.mubr.f32.gmra.mxu0 %v29
  %v1123 = vpop.f32.mrf.mxu0
  %v1124 = vadd.f32 %v1024, %v1123
  %v1125 = vpop.f32.mrf.mxu0
  %1126 = vmatprep.mubr.f32.mxu0 %v122
  %1127 = vmatmul.mubr.f32.gmra.mxu0 %v33
  %v1128 = vpop.f32.mrf.mxu0
  %v1129 = vadd.f32 %v1029, %v1128
  %v1130 = vpop.f32.mrf.mxu0
  %1131 = vmatprep.mubr.f32.mxu0 %v125
  %1132 = vmatmul.mubr.f32.gmra.mxu0 %v37
  %v1133 = vpop.f32.mrf.mxu0
  %v1134 = vadd.f32 %v1034, %v1133
  %v1135 = vpop.f32.mrf.mxu0
  %1136 = vmatprep.mubr.f32.mxu0 %v128
  %1137 = vmatmul.mubr.f32.gmra.mxu0 %v41
  %v1138 = vpop.f32.mrf.mxu0
  %v1139 = vadd.f32 %v1039, %v1138
  %v1140 = vpop.f32.mrf.mxu0
  %1141 = vmatprep.mubr.f32.mxu0 %v131
  %1142 = vmatmul.mubr.f32.gmra.mxu0 %v45
  %v1143 = vpop.f32.mrf.mxu0
  %v1144 = vadd.f32 %v1044, %v1143
  %v1145 = vpop.f32.mrf.mxu0
  %1146 = vmatprep.mubr.f32.mxu0 %v134
  %1147 = vmatmul.mubr.f32.gmra.mxu0 %v49
  %v1148 = vpop.f32.mrf.mxu0
  %v1149 = vadd.f32 %v1049, %v1148
  %v1150 = vpop.f32.mrf.mxu0
  %1151 = vdwg.mxu0
  %v1152 = vmax.f32 %v879, %v1119
  %v1153 = vmax.f32 %v880, %v1124
  %v1154 = vmax.f32 %v881, %v1129
  %v1155 = vmax.f32 %v882, %v1134
  %v1156 = vmax.f32 %v883, %v1139
  %v1157 = vmax.f32 %v884, %v1144
  %v1158 = vmax.f32 %v885, %v1149
  %v1159 = vld [vmem:[%s5] sm:$0xff]
  %v1160 = vld [vmem:[%s5 + $0x8] sm:$0xff]
  %v1161 = vld [vmem:[%s5 + $0x10] sm:$0xff]
  %v1162 = vld [vmem:[%s5 + $0x18] sm:$0xff]
  %v1163 = vld [vmem:[%s5 + $0x20] sm:$0xff]
  %v1164 = vld [vmem:[%s5 + $0x28] sm:$0xff]
  %v1165 = vld [vmem:[%s5 + $0x30] sm:$0x3]
  %1167 = vset.pattern.permute.xlu0 0
  %1168 = vperm.xlu0 %1167, %v1159
  %v1169 = vpop.permute.xlu0 %1168
  %1172 = vset.pattern.permute.xlu0 0
  %1173 = vperm.xlu0 %1172, %v1160
  %v1174 = vpop.permute.xlu0 %1173
  %1177 = vset.pattern.permute.xlu0 0
  %1178 = vperm.xlu0 %1177, %v1161
  %v1179 = vpop.permute.xlu0 %1178
  %1182 = vset.pattern.permute.xlu0 0
  %1183 = vperm.xlu0 %1182, %v1162
  %v1184 = vpop.permute.xlu0 %1183
  %1187 = vset.pattern.permute.xlu0 0
  %1188 = vperm.xlu0 %1187, %v1163
  %v1189 = vpop.permute.xlu0 %1188
  %1192 = vset.pattern.permute.xlu0 0
  %1193 = vperm.xlu0 %1192, %v1164
  %v1194 = vpop.permute.xlu0 %1193
  %1197 = vset.pattern.permute.xlu0 0
  %1198 = vperm.xlu0 %1197, %v1165
  %v1199 = vpop.permute.xlu0 %1198
  %v1201 = vadd.f32 %v1152, %v1169
  %v1202 = vadd.f32 %v1153, %v1174
  %v1203 = vadd.f32 %v1154, %v1179
  %v1204 = vadd.f32 %v1155, %v1184
  %v1205 = vadd.f32 %v1156, %v1189
  %v1206 = vadd.f32 %v1157, %v1194
  %v1207 = vadd.f32 %v1158, %v1199
  %vm1208 = vcmp.gt.f32.partialorder %v1201, 0.0
  %vm1209 = vcmp.gt.f32.partialorder %v1202, 0.0
  %vm1210 = vcmp.gt.f32.partialorder %v1203, 0.0
  %vm1211 = vcmp.gt.f32.partialorder %v1204, 0.0
  %vm1212 = vcmp.gt.f32.partialorder %v1205, 0.0
  %vm1213 = vcmp.gt.f32.partialorder %v1206, 0.0
  %vm1214 = vcmp.gt.f32.partialorder %v1207, 0.0
  %v1215 = vmul.f32 %v1201, 0.01
  %v1216 = vmul.f32 %v1202, 0.01
  %v1217 = vmul.f32 %v1203, 0.01
  %v1218 = vmul.f32 %v1204, 0.01
  %v1219 = vmul.f32 %v1205, 0.01
  %v1220 = vmul.f32 %v1206, 0.01
  %v1221 = vmul.f32 %v1207, 0.01
  %v1222 = vsel %vm1208, %v1201, %v1215
  %v1223 = vsel %vm1209, %v1202, %v1216
  %v1224 = vsel %vm1210, %v1203, %v1217
  %v1225 = vsel %vm1211, %v1204, %v1218
  %v1226 = vsel %vm1212, %v1205, %v1219
  %v1227 = vsel %vm1213, %v1206, %v1220
  %v1228 = vsel %vm1214, %v1207, %v1221
  %vm1229 = vcmask 719872
  %1230 = vst.msk [vmem:[%s6] sm:$0xff] %vm1229, %v1222
  %1231 = vst.msk [vmem:[%s6 + $0x8] sm:$0xff] %vm1229, %v1223
  %1232 = vst.msk [vmem:[%s6 + $0x10] sm:$0xff] %vm1229, %v1224
  %1233 = vst.msk [vmem:[%s6 + $0x18] sm:$0xff] %vm1229, %v1225
  %1234 = vst.msk [vmem:[%s6 + $0x20] sm:$0xff] %vm1229, %v1226
  %1235 = vst.msk [vmem:[%s6 + $0x28] sm:$0xff] %vm1229, %v1227
  %vm1236 = vcmask 713728
  %1237 = vst.msk [vmem:[%s6 + $0x30] sm:$0x3] %vm1236, %v1228
  // Predicated region
  $region26: #{lenet_forward.4} parent=0 // pred_check
    _
  $region27: #{lenet_forward.4} parent=0 // pred_check_branch
    %1239 = sbr.rel (0) target = $region29
  $region28: #{lenet_forward.4} parent=0 // pred_region
    _
  $region29: #{lenet_forward.4} parent=0 // pred_fallthru
    _
  // Predicated region
  $region30: #{lenet_forward.4} parent=0 // pred_check
    _
  $region31: #{lenet_forward.4} parent=0 // pred_check_branch
    %1241 = sbr.rel (0) target = $region33
  $region32: #{lenet_forward.4} parent=0 // pred_region
    _
  $region33: #{lenet_forward.4} parent=0 // pred_fallthru
    _

// kernel: lenet_forward.5
$region0: #{lenet_forward.5}
  #allocation0 [shape = 'u32[]', space=smem, size = 0x4, offset = 0x4, fixed_abs, tag = 'smem constant byte address 0x4 - core index']
  #allocation1 [shape = 'u32[144,128]{1,0:T(1,128)}', space=vmem, size = 0x12000, scoped, tag = 'internal scratch']
  %s0 = inlined_call_operand.vmem [shape: f32[2,2200], index: 0, kind: input, shape index: {}]
  %s1 = inlined_call_operand.vmem [shape: bf16[2200,400], index: 1, kind: input, shape index: {}]
  %s2 = inlined_call_operand.vmem [shape: f32[1,400], index: 2, kind: input, shape index: {}]
  %s3 = inlined_call_operand.hbm [shape: f32[2,400], index: 3, kind: output, shape index: {}]
  %s4 = sld [smem:[#allocation0]]
  $region22: #{lenet_forward.5} parent=0
    _
  %s6 = ssub.s32 1, %s4
  %s7 = scalar_select 0, %s6, %s4
  $region1: #{lenet_forward.5} parent=0
    #allocation2 [shape = 'u8[4096]{0}', space=vmem, size = 0x1000, scoped, tag = 'output window, operand 0, single buffered']
    #allocation3 [shape = 's32[1]{0}', space=sflag, size = 0x4, scoped, tag = 'scoped memory for lenet_forward.5']
    %8 = vsyncpa [#allocation3], 0
    // Predicated region
    $region2: #{lenet_forward.5} parent=1 // pred_check
      _
    $region3: #{lenet_forward.5} parent=1 // pred_check_branch
      %10 = sbr.rel (0) target = $region5
    $region4: #{lenet_forward.5} parent=1 // pred_region
      _
    $region5: #{lenet_forward.5} parent=1 // pred_fallthru
      _
    // Predicated region
    $region6: #{lenet_forward.5} parent=1 // pred_check
      _
    $region7: #{lenet_forward.5} parent=1 // pred_check_branch
      %12 = sbr.rel (0) target = $region9
    $region8: #{lenet_forward.5} parent=1 // pred_region
      _
    $region9: #{lenet_forward.5} parent=1 // pred_fallthru
      _
    // Predicated region
    $region10: #{lenet_forward.5} parent=1 // pred_check
      _
    $region11: #{lenet_forward.5} parent=1 // pred_check_branch
      %14 = sbr.rel (0) target = $region13
    $region12: #{lenet_forward.5} parent=1 // pred_region
      _
    $region13: #{lenet_forward.5} parent=1 // pred_fallthru
      _
    %v15 = vld [vmem:[%s1] sm:$0xff]
    %v16 = vld [vmem:[%s1 + $0x8] sm:$0xff]
    %v17 = vld [vmem:[%s1 + $0x10] sm:$0xff]
    %v18 = vld [vmem:[%s1 + $0x18] sm:$0xff]
    %v19 = vld [vmem:[%s1 + $0x20] sm:$0xff]
    %v20 = vld [vmem:[%s1 + $0x28] sm:$0xff]
    %v21 = vld [vmem:[%s1 + $0x30] sm:$0xff]
    %v22 = vld [vmem:[%s1 + $0x38] sm:$0xff]
    %v23 = vld [vmem:[%s1 + $0x40] sm:$0xff]
    %v24 = vld [vmem:[%s1 + $0x48] sm:$0xff]
    %v25 = vld [vmem:[%s1 + $0x50] sm:$0xff]
    %v26 = vld [vmem:[%s1 + $0x58] sm:$0xff]
    %v27 = vld [vmem:[%s1 + $0x60] sm:$0xff]
    %v28 = vld [vmem:[%s1 + $0x68] sm:$0xff]
    %v29 = vld [vmem:[%s1 + $0x70] sm:$0xff]
    %v30 = vld [vmem:[%s1 + $0x78] sm:$0xff]
    %v31 = vld [vmem:[%s1 + $0x80] sm:$0xff]
    %v32 = vld [vmem:[%s1 + $0x88] sm:$0xff]
    %v33 = vld [vmem:[%s1 + $0x90] sm:$0xff]
    %v34 = vld [vmem:[%s1 + $0x98] sm:$0xff]
    %v35 = vld [vmem:[%s1 + $0xa0] sm:$0xff]
    %v36 = vld [vmem:[%s1 + $0xa8] sm:$0xff]
    %v37 = vld [vmem:[%s1 + $0xb0] sm:$0xff]
    %v38 = vld [vmem:[%s1 + $0xb8] sm:$0xff]
    %v39 = vld [vmem:[%s1 + $0xc0] sm:$0xff]
    %v40 = vld [vmem:[%s1 + $0xc8] sm:$0xff]
    %v41 = vld [vmem:[%s1 + $0xd0] sm:$0xff]
    %v42 = vld [vmem:[%s1 + $0xd8] sm:$0xff]
    %v43 = vld [vmem:[%s1 + $0xe0] sm:$0xff]
    %v44 = vld [vmem:[%s1 + $0xe8] sm:$0xff]
    %v45 = vld [vmem:[%s1 + $0xf0] sm:$0xff]
    %v46 = vld [vmem:[%s1 + $0xf8] sm:$0xff]
    %v47 = vld [vmem:[%s1 + $0x100] sm:$0xff]
    %v48 = vld [vmem:[%s1 + $0x108] sm:$0xff]
    %v49 = vld [vmem:[%s1 + $0x110] sm:$0xff]
    %v50 = vld [vmem:[%s1 + $0x118] sm:$0xff]
    %v51 = vld [vmem:[%s1 + $0x120] sm:$0xff]
    %v52 = vld [vmem:[%s1 + $0x128] sm:$0xff]
    %v53 = vld [vmem:[%s1 + $0x130] sm:$0xff]
    %v54 = vld [vmem:[%s1 + $0x138] sm:$0xff]
    %v55 = vld [vmem:[%s1 + $0x140] sm:$0xff]
    %v56 = vld [vmem:[%s1 + $0x148] sm:$0xff]
    %v57 = vld [vmem:[%s1 + $0x150] sm:$0xff]
    %v58 = vld [vmem:[%s1 + $0x158] sm:$0xff]
    %v59 = vld [vmem:[%s1 + $0x160] sm:$0xff]
    %v60 = vld [vmem:[%s1 + $0x168] sm:$0xff]
    %v61 = vld [vmem:[%s1 + $0x170] sm:$0xff]
    %v62 = vld [vmem:[%s1 + $0x178] sm:$0xff]
    %v63 = vld [vmem:[%s1 + $0x180] sm:$0xff]
    %v64 = vld [vmem:[%s1 + $0x188] sm:$0xff]
    %v65 = vld [vmem:[%s1 + $0x190] sm:$0xff]
    %v66 = vld [vmem:[%s1 + $0x198] sm:$0xff]
    %v67 = vld [vmem:[%s1 + $0x1a0] sm:$0xff]
    %v68 = vld [vmem:[%s1 + $0x1a8] sm:$0xff]
    %v69 = vld [vmem:[%s1 + $0x1b0] sm:$0xff]
    %v70 = vld [vmem:[%s1 + $0x1b8] sm:$0xff]
    %v71 = vld [vmem:[%s1 + $0x1c0] sm:$0xff]
    %v72 = vld [vmem:[%s1 + $0x1c8] sm:$0xff]
    %v73 = vld [vmem:[%s1 + $0x1d0] sm:$0xff]
    %v74 = vld [vmem:[%s1 + $0x1d8] sm:$0xff]
    %v75 = vld [vmem:[%s1 + $0x1e0] sm:$0xff]
    %v76 = vld [vmem:[%s1 + $0x1e8] sm:$0xff]
    %v77 = vld [vmem:[%s1 + $0x1f0] sm:$0xff]
    %v78 = vld [vmem:[%s1 + $0x1f8] sm:$0xff]
    %v79 = vld [vmem:[%s1 + $0x200] sm:$0xff]
    %v80 = vld [vmem:[%s1 + $0x208] sm:$0xff]
    %v81 = vld [vmem:[%s1 + $0x210] sm:$0xff]
    %v82 = vld [vmem:[%s1 + $0x218] sm:$0xff]
    %v83 = vld [vmem:[%s1 + $0x220] sm:$0xff]
    %v84 = vld [vmem:[%s1 + $0x228] sm:$0xff]
    %v85 = vld [vmem:[%s1 + $0x230] sm:$0xff]
    %v86 = vld [vmem:[%s1 + $0x238] sm:$0xff]
    %v87 = vld [vmem:[%s1 + $0x240] sm:$0xff]
    %v88 = vld [vmem:[%s1 + $0x248] sm:$0xff]
    %v89 = vld [vmem:[%s1 + $0x250] sm:$0xff]
    %v90 = vld [vmem:[%s1 + $0x258] sm:$0xff]
    %v91 = vld [vmem:[%s1 + $0x260] sm:$0xff]
    %v92 = vld [vmem:[%s1 + $0x268] sm:$0xff]
    %v93 = vld [vmem:[%s1 + $0x270] sm:$0xff]
    %v94 = vld [vmem:[%s1 + $0x278] sm:$0xff]
    %v95 = vld [vmem:[%s1 + $0x280] sm:$0xff]
    %v96 = vld [vmem:[%s1 + $0x288] sm:$0xff]
    %v97 = vld [vmem:[%s1 + $0x290] sm:$0xff]
    %v98 = vld [vmem:[%s1 + $0x298] sm:$0xff]
    %v99 = vld [vmem:[%s1 + $0x2a0] sm:$0xff]
    %v100 = vld [vmem:[%s1 + $0x2a8] sm:$0xff]
    %v101 = vld [vmem:[%s1 + $0x2b0] sm:$0xff]
    %v102 = vld [vmem:[%s1 + $0x2b8] sm:$0xff]
    %v103 = vld [vmem:[%s1 + $0x2c0] sm:$0xff]
    %v104 = vld [vmem:[%s1 + $0x2c8] sm:$0xff]
    %v105 = vld [vmem:[%s1 + $0x2d0] sm:$0xff]
    %v106 = vld [vmem:[%s1 + $0x2d8] sm:$0xff]
    %v107 = vld [vmem:[%s1 + $0x2e0] sm:$0xff]
    %v108 = vld [vmem:[%s1 + $0x2e8] sm:$0xff]
    %v109 = vld [vmem:[%s1 + $0x2f0] sm:$0xff]
    %v110 = vld [vmem:[%s1 + $0x2f8] sm:$0xff]
    %v111 = vld [vmem:[%s1 + $0x300] sm:$0xff]
    %v112 = vld [vmem:[%s1 + $0x308] sm:$0xff]
    %v113 = vld [vmem:[%s1 + $0x310] sm:$0xff]
    %v114 = vld [vmem:[%s1 + $0x318] sm:$0xff]
    %v115 = vld [vmem:[%s1 + $0x320] sm:$0xff]
    %v116 = vld [vmem:[%s1 + $0x328] sm:$0xff]
    %v117 = vld [vmem:[%s1 + $0x330] sm:$0xff]
    %v118 = vld [vmem:[%s1 + $0x338] sm:$0xff]
    %v119 = vld [vmem:[%s1 + $0x340] sm:$0xff]
    %v120 = vld [vmem:[%s1 + $0x348] sm:$0xff]
    %v121 = vld [vmem:[%s1 + $0x350] sm:$0xff]
    %v122 = vld [vmem:[%s1 + $0x358] sm:$0xff]
    %v123 = vld [vmem:[%s1 + $0x360] sm:$0xff]
    %v124 = vld [vmem:[%s1 + $0x368] sm:$0xff]
    %v125 = vld [vmem:[%s1 + $0x370] sm:$0xff]
    %v126 = vld [vmem:[%s1 + $0x378] sm:$0xff]
    %v127 = vld [vmem:[%s1 + $0x380] sm:$0xff]
    %v128 = vld [vmem:[%s1 + $0x388] sm:$0xff]
    %v129 = vld [vmem:[%s1 + $0x390] sm:$0xff]
    %v130 = vld [vmem:[%s1 + $0x398] sm:$0xff]
    %v131 = vld [vmem:[%s1 + $0x3a0] sm:$0xff]
    %v132 = vld [vmem:[%s1 + $0x3a8] sm:$0xff]
    %v133 = vld [vmem:[%s1 + $0x3b0] sm:$0xff]
    %v134 = vld [vmem:[%s1 + $0x3b8] sm:$0xff]
    %v135 = vld [vmem:[%s1 + $0x3c0] sm:$0xff]
    %v136 = vld [vmem:[%s1 + $0x3c8] sm:$0xff]
    %v137 = vld [vmem:[%s1 + $0x3d0] sm:$0xff]
    %v138 = vld [vmem:[%s1 + $0x3d8] sm:$0xff]
    %v139 = vld [vmem:[%s1 + $0x3e0] sm:$0xff]
    %v140 = vld [vmem:[%s1 + $0x3e8] sm:$0xff]
    %v141 = vld [vmem:[%s1 + $0x3f0] sm:$0xff]
    %v142 = vld [vmem:[%s1 + $0x3f8] sm:$0xff]
    %v143 = vld [vmem:[%s1 + $0x400] sm:$0xff]
    %v144 = vld [vmem:[%s1 + $0x408] sm:$0xff]
    %v145 = vld [vmem:[%s1 + $0x410] sm:$0xff]
    %v146 = vld [vmem:[%s1 + $0x418] sm:$0xff]
    %v147 = vld [vmem:[%s1 + $0x420] sm:$0xff]
    %v148 = vld [vmem:[%s1 + $0x428] sm:$0xff]
    %v149 = vld [vmem:[%s1 + $0x430] sm:$0xff]
    %v150 = vld [vmem:[%s1 + $0x438] sm:$0xff]
    %v151 = vld [vmem:[%s1 + $0x440] sm:$0xff]
    %v152 = vld [vmem:[%s1 + $0x448] sm:$0xff]
    %v153 = vld [vmem:[%s1 + $0x450] sm:$0xff]
    %v154 = vld [vmem:[%s1 + $0x458] sm:$0xff]
    %v155 = vld [vmem:[%s1 + $0x460] sm:$0xff]
    %v156 = vld [vmem:[%s1 + $0x468] sm:$0xff]
    %v157 = vld [vmem:[%s1 + $0x470] sm:$0xff]
    %v158 = vld [vmem:[%s1 + $0x478] sm:$0xff]
    %v159 = vld [vmem:[%s1 + $0x480] sm:$0xff]
    %v160 = vld [vmem:[%s1 + $0x488] sm:$0xff]
    %v161 = vld [vmem:[%s1 + $0x490] sm:$0xff]
    %v162 = vld [vmem:[%s1 + $0x498] sm:$0xff]
    %v163 = vld [vmem:[%s1 + $0x4a0] sm:$0xff]
    %v164 = vld [vmem:[%s1 + $0x4a8] sm:$0xff]
    %v165 = vld [vmem:[%s1 + $0x4b0] sm:$0xff]
    %v166 = vld [vmem:[%s1 + $0x4b8] sm:$0xff]
    %v167 = vld [vmem:[%s1 + $0x4c0] sm:$0xff]
    %v168 = vld [vmem:[%s1 + $0x4c8] sm:$0xff]
    %v169 = vld [vmem:[%s1 + $0x4d0] sm:$0xff]
    %v170 = vld [vmem:[%s1 + $0x4d8] sm:$0xff]
    %v171 = vld [vmem:[%s1 + $0x4e0] sm:$0xff]
    %v172 = vld [vmem:[%s1 + $0x4e8] sm:$0xff]
    %v173 = vld [vmem:[%s1 + $0x4f0] sm:$0xff]
    %v174 = vld [vmem:[%s1 + $0x4f8] sm:$0xff]
    %v175 = vld [vmem:[%s1 + $0x500] sm:$0xff]
    %v176 = vld [vmem:[%s1 + $0x508] sm:$0xff]
    %v177 = vld [vmem:[%s1 + $0x510] sm:$0xff]
    %v178 = vld [vmem:[%s1 + $0x518] sm:$0xff]
    %v179 = vld [vmem:[%s1 + $0x520] sm:$0xff]
    %v180 = vld [vmem:[%s1 + $0x528] sm:$0xff]
    %v181 = vld [vmem:[%s1 + $0x530] sm:$0xff]
    %v182 = vld [vmem:[%s1 + $0x538] sm:$0xff]
    %v183 = vld [vmem:[%s1 + $0x540] sm:$0xff]
    %v184 = vld [vmem:[%s1 + $0x548] sm:$0xff]
    %v185 = vld [vmem:[%s1 + $0x550] sm:$0xff]
    %v186 = vld [vmem:[%s1 + $0x558] sm:$0xff]
    %v187 = vld [vmem:[%s1 + $0x560] sm:$0xff]
    %v188 = vld [vmem:[%s1 + $0x568] sm:$0xff]
    %v189 = vld [vmem:[%s1 + $0x570] sm:$0xff]
    %v190 = vld [vmem:[%s1 + $0x578] sm:$0xff]
    %v191 = vld [vmem:[%s1 + $0x580] sm:$0xff]
    %v192 = vld [vmem:[%s1 + $0x588] sm:$0xff]
    %v193 = vld [vmem:[%s1 + $0x590] sm:$0xff]
    %v194 = vld [vmem:[%s1 + $0x598] sm:$0xff]
    %v195 = vld [vmem:[%s1 + $0x5a0] sm:$0xff]
    %v196 = vld [vmem:[%s1 + $0x5a8] sm:$0xff]
    %v197 = vld [vmem:[%s1 + $0x5b0] sm:$0xff]
    %v198 = vld [vmem:[%s1 + $0x5b8] sm:$0xff]
    %v199 = vld [vmem:[%s1 + $0x5c0] sm:$0xff]
    %v200 = vld [vmem:[%s1 + $0x5c8] sm:$0xff]
    %v201 = vld [vmem:[%s1 + $0x5d0] sm:$0xff]
    %v202 = vld [vmem:[%s1 + $0x5d8] sm:$0xff]
    %v203 = vld [vmem:[%s1 + $0x5e0] sm:$0xff]
    %v204 = vld [vmem:[%s1 + $0x5e8] sm:$0xff]
    %v205 = vld [vmem:[%s1 + $0x5f0] sm:$0xff]
    %v206 = vld [vmem:[%s1 + $0x5f8] sm:$0xff]
    %v207 = vld [vmem:[%s1 + $0x600] sm:$0xff]
    %v208 = vld [vmem:[%s1 + $0x608] sm:$0xff]
    %v209 = vld [vmem:[%s1 + $0x610] sm:$0xff]
    %v210 = vld [vmem:[%s1 + $0x618] sm:$0xff]
    %v211 = vld [vmem:[%s1 + $0x620] sm:$0xff]
    %v212 = vld [vmem:[%s1 + $0x628] sm:$0xff]
    %v213 = vld [vmem:[%s1 + $0x630] sm:$0xff]
    %v214 = vld [vmem:[%s1 + $0x638] sm:$0xff]
    %v215 = vld [vmem:[%s1 + $0x640] sm:$0xff]
    %v216 = vld [vmem:[%s1 + $0x648] sm:$0xff]
    %v217 = vld [vmem:[%s1 + $0x650] sm:$0xff]
    %v218 = vld [vmem:[%s1 + $0x658] sm:$0xff]
    %v219 = vld [vmem:[%s1 + $0x660] sm:$0xff]
    %v220 = vld [vmem:[%s1 + $0x668] sm:$0xff]
    %v221 = vld [vmem:[%s1 + $0x670] sm:$0xff]
    %v222 = vld [vmem:[%s1 + $0x678] sm:$0xff]
    %v223 = vld [vmem:[%s1 + $0x680] sm:$0xff]
    %v224 = vld [vmem:[%s1 + $0x688] sm:$0xff]
    %v225 = vld [vmem:[%s1 + $0x690] sm:$0xff]
    %v226 = vld [vmem:[%s1 + $0x698] sm:$0xff]
    %v227 = vld [vmem:[%s1 + $0x6a0] sm:$0xff]
    %v228 = vld [vmem:[%s1 + $0x6a8] sm:$0xff]
    %v229 = vld [vmem:[%s1 + $0x6b0] sm:$0xff]
    %v230 = vld [vmem:[%s1 + $0x6b8] sm:$0xff]
    %v231 = vld [vmem:[%s1 + $0x6c0] sm:$0xff]
    %v232 = vld [vmem:[%s1 + $0x6c8] sm:$0xff]
    %v233 = vld [vmem:[%s1 + $0x6d0] sm:$0xff]
    %v234 = vld [vmem:[%s1 + $0x6d8] sm:$0xff]
    %v235 = vld [vmem:[%s1 + $0x6e0] sm:$0xff]
    %v236 = vld [vmem:[%s1 + $0x6e8] sm:$0xff]
    %v237 = vld [vmem:[%s1 + $0x6f0] sm:$0xff]
    %v238 = vld [vmem:[%s1 + $0x6f8] sm:$0xff]
    %v239 = vld [vmem:[%s1 + $0x700] sm:$0xff]
    %v240 = vld [vmem:[%s1 + $0x708] sm:$0xff]
    %v241 = vld [vmem:[%s1 + $0x710] sm:$0xff]
    %v242 = vld [vmem:[%s1 + $0x718] sm:$0xff]
    %v243 = vld [vmem:[%s1 + $0x720] sm:$0xff]
    %v244 = vld [vmem:[%s1 + $0x728] sm:$0xff]
    %v245 = vld [vmem:[%s1 + $0x730] sm:$0xff]
    %v246 = vld [vmem:[%s1 + $0x738] sm:$0xff]
    %v247 = vld [vmem:[%s1 + $0x740] sm:$0xff]
    %v248 = vld [vmem:[%s1 + $0x748] sm:$0xff]
    %v249 = vld [vmem:[%s1 + $0x750] sm:$0xff]
    %v250 = vld [vmem:[%s1 + $0x758] sm:$0xff]
    %v251 = vld [vmem:[%s1 + $0x760] sm:$0xff]
    %v252 = vld [vmem:[%s1 + $0x768] sm:$0xff]
    %v253 = vld [vmem:[%s1 + $0x770] sm:$0xff]
    %v254 = vld [vmem:[%s1 + $0x778] sm:$0xff]
    %v255 = vld [vmem:[%s1 + $0x780] sm:$0xff]
    %v256 = vld [vmem:[%s1 + $0x788] sm:$0xff]
    %v257 = vld [vmem:[%s1 + $0x790] sm:$0xff]
    %v258 = vld [vmem:[%s1 + $0x798] sm:$0xff]
    %v259 = vld [vmem:[%s1 + $0x7a0] sm:$0xff]
    %v260 = vld [vmem:[%s1 + $0x7a8] sm:$0xff]
    %v261 = vld [vmem:[%s1 + $0x7b0] sm:$0xff]
    %v262 = vld [vmem:[%s1 + $0x7b8] sm:$0xff]
    %v263 = vld [vmem:[%s1 + $0x7c0] sm:$0xff]
    %v264 = vld [vmem:[%s1 + $0x7c8] sm:$0xff]
    %v265 = vld [vmem:[%s1 + $0x7d0] sm:$0xff]
    %v266 = vld [vmem:[%s1 + $0x7d8] sm:$0xff]
    %v267 = vld [vmem:[%s1 + $0x7e0] sm:$0xff]
    %v268 = vld [vmem:[%s1 + $0x7e8] sm:$0xff]
    %v269 = vld [vmem:[%s1 + $0x7f0] sm:$0xff]
    %v270 = vld [vmem:[%s1 + $0x7f8] sm:$0xff]
    %v271 = vld [vmem:[%s1 + $0x800] sm:$0xff]
    %v272 = vld [vmem:[%s1 + $0x808] sm:$0xff]
    %v273 = vld [vmem:[%s1 + $0x810] sm:$0xff]
    %v274 = vld [vmem:[%s1 + $0x818] sm:$0xff]
    %v275 = vld [vmem:[%s1 + $0x820] sm:$0xff]
    %v276 = vld [vmem:[%s1 + $0x828] sm:$0xff]
    %v277 = vld [vmem:[%s1 + $0x830] sm:$0xff]
    %v278 = vld [vmem:[%s1 + $0x838] sm:$0xff]
    %v279 = vld [vmem:[%s1 + $0x840] sm:$0xff]
    %v280 = vld [vmem:[%s1 + $0x848] sm:$0xff]
    %v281 = vld [vmem:[%s1 + $0x850] sm:$0xff]
    %v282 = vld [vmem:[%s1 + $0x858] sm:$0xff]
    %v283 = vld [vmem:[%s1 + $0x860] sm:$0xff]
    %v284 = vld [vmem:[%s1 + $0x868] sm:$0xff]
    %v285 = vld [vmem:[%s1 + $0x870] sm:$0xff]
    %v286 = vld [vmem:[%s1 + $0x878] sm:$0xff]
    %v287 = vld [vmem:[%s1 + $0x880] sm:$0xff]
    %v288 = vld [vmem:[%s1 + $0x888] sm:$0xff]
    %v289 = vld [vmem:[%s1 + $0x890] sm:$0xff]
    %v290 = vld [vmem:[%s1 + $0x898] sm:$0xff]
    %v291 = vld [vmem:[%s1 + $0x8a0] sm:$0xff]
    %v292 = vld [vmem:[%s1 + $0x8a8] sm:$0xff]
    %v293 = vld [vmem:[%s1 + $0x8b0] sm:$0xff]
    %v294 = vld [vmem:[%s1 + $0x8b8] sm:$0xff]
    %v295 = vld [vmem:[%s1 + $0x8c0] sm:$0xff]
    %v296 = vld [vmem:[%s1 + $0x8c8] sm:$0xff]
    %v297 = vld [vmem:[%s1 + $0x8d0] sm:$0xff]
    %v298 = vld [vmem:[%s1 + $0x8d8] sm:$0xff]
    %v299 = vld [vmem:[%s1 + $0x8e0] sm:$0xff]
    %v300 = vld [vmem:[%s1 + $0x8e8] sm:$0xff]
    %v301 = vld [vmem:[%s1 + $0x8f0] sm:$0xff]
    %v302 = vld [vmem:[%s1 + $0x8f8] sm:$0xff]
    %v303 = vld [vmem:[%s1 + $0x900] sm:$0xff]
    %v304 = vld [vmem:[%s1 + $0x908] sm:$0xff]
    %v305 = vld [vmem:[%s1 + $0x910] sm:$0xff]
    %v306 = vld [vmem:[%s1 + $0x918] sm:$0xff]
    %v307 = vld [vmem:[%s1 + $0x920] sm:$0xff]
    %v308 = vld [vmem:[%s1 + $0x928] sm:$0xff]
    %v309 = vld [vmem:[%s1 + $0x930] sm:$0xff]
    %v310 = vld [vmem:[%s1 + $0x938] sm:$0xff]
    %v311 = vld [vmem:[%s1 + $0x940] sm:$0xff]
    %v312 = vld [vmem:[%s1 + $0x948] sm:$0xff]
    %v313 = vld [vmem:[%s1 + $0x950] sm:$0xff]
    %v314 = vld [vmem:[%s1 + $0x958] sm:$0xff]
    %v315 = vld [vmem:[%s1 + $0x960] sm:$0xff]
    %v316 = vld [vmem:[%s1 + $0x968] sm:$0xff]
    %v317 = vld [vmem:[%s1 + $0x970] sm:$0xff]
    %v318 = vld [vmem:[%s1 + $0x978] sm:$0xff]
    %v319 = vld [vmem:[%s1 + $0x980] sm:$0xff]
    %v320 = vld [vmem:[%s1 + $0x988] sm:$0xff]
    %v321 = vld [vmem:[%s1 + $0x990] sm:$0xff]
    %v322 = vld [vmem:[%s1 + $0x998] sm:$0xff]
    %v323 = vld [vmem:[%s1 + $0x9a0] sm:$0xff]
    %v324 = vld [vmem:[%s1 + $0x9a8] sm:$0xff]
    %v325 = vld [vmem:[%s1 + $0x9b0] sm:$0xff]
    %v326 = vld [vmem:[%s1 + $0x9b8] sm:$0xff]
    %v327 = vld [vmem:[%s1 + $0x9c0] sm:$0xff]
    %v328 = vld [vmem:[%s1 + $0x9c8] sm:$0xff]
    %v329 = vld [vmem:[%s1 + $0x9d0] sm:$0xff]
    %v330 = vld [vmem:[%s1 + $0x9d8] sm:$0xff]
    %v331 = vld [vmem:[%s1 + $0x9e0] sm:$0xff]
    %v332 = vld [vmem:[%s1 + $0x9e8] sm:$0xff]
    %v333 = vld [vmem:[%s1 + $0x9f0] sm:$0xff]
    %v334 = vld [vmem:[%s1 + $0x9f8] sm:$0xff]
    %v335 = vld [vmem:[%s1 + $0xa00] sm:$0xff]
    %v336 = vld [vmem:[%s1 + $0xa08] sm:$0xff]
    %v337 = vld [vmem:[%s1 + $0xa10] sm:$0xff]
    %v338 = vld [vmem:[%s1 + $0xa18] sm:$0xff]
    %v339 = vld [vmem:[%s1 + $0xa20] sm:$0xff]
    %v340 = vld [vmem:[%s1 + $0xa28] sm:$0xff]
    %v341 = vld [vmem:[%s1 + $0xa30] sm:$0xff]
    %v342 = vld [vmem:[%s1 + $0xa38] sm:$0xff]
    %v343 = vld [vmem:[%s1 + $0xa40] sm:$0xff]
    %v344 = vld [vmem:[%s1 + $0xa48] sm:$0xff]
    %v345 = vld [vmem:[%s1 + $0xa50] sm:$0xff]
    %v346 = vld [vmem:[%s1 + $0xa58] sm:$0xff]
    %v347 = vld [vmem:[%s1 + $0xa60] sm:$0xff]
    %v348 = vld [vmem:[%s1 + $0xa68] sm:$0xff]
    %v349 = vld [vmem:[%s1 + $0xa70] sm:$0xff]
    %v350 = vld [vmem:[%s1 + $0xa78] sm:$0xff]
    %v351 = vld [vmem:[%s1 + $0xa80] sm:$0xff]
    %v352 = vld [vmem:[%s1 + $0xa88] sm:$0xff]
    %v353 = vld [vmem:[%s1 + $0xa90] sm:$0xff]
    %v354 = vld [vmem:[%s1 + $0xa98] sm:$0xff]
    %v355 = vld [vmem:[%s1 + $0xaa0] sm:$0xff]
    %v356 = vld [vmem:[%s1 + $0xaa8] sm:$0xff]
    %v357 = vld [vmem:[%s1 + $0xab0] sm:$0xff]
    %v358 = vld [vmem:[%s1 + $0xab8] sm:$0xff]
    %v359 = vld [vmem:[%s1 + $0xac0] sm:$0xff]
    %v360 = vld [vmem:[%s1 + $0xac8] sm:$0xff]
    %v361 = vld [vmem:[%s1 + $0xad0] sm:$0xff]
    %v362 = vld [vmem:[%s1 + $0xad8] sm:$0xff]
    %v363 = vld [vmem:[%s1 + $0xae0] sm:$0xff]
    %v364 = vld [vmem:[%s1 + $0xae8] sm:$0xff]
    %v365 = vld [vmem:[%s1 + $0xaf0] sm:$0xff]
    %v366 = vld [vmem:[%s1 + $0xaf8] sm:$0xff]
    %v367 = vld [vmem:[%s1 + $0xb00] sm:$0xff]
    %v368 = vld [vmem:[%s1 + $0xb08] sm:$0xff]
    %v369 = vld [vmem:[%s1 + $0xb10] sm:$0xff]
    %v370 = vld [vmem:[%s1 + $0xb18] sm:$0xff]
    %v371 = vld [vmem:[%s1 + $0xb20] sm:$0xff]
    %v372 = vld [vmem:[%s1 + $0xb28] sm:$0xff]
    %v373 = vld [vmem:[%s1 + $0xb30] sm:$0xff]
    %v374 = vld [vmem:[%s1 + $0xb38] sm:$0xff]
    %v375 = vld [vmem:[%s1 + $0xb40] sm:$0xff]
    %v376 = vld [vmem:[%s1 + $0xb48] sm:$0xff]
    %v377 = vld [vmem:[%s1 + $0xb50] sm:$0xff]
    %v378 = vld [vmem:[%s1 + $0xb58] sm:$0xff]
    %v379 = vld [vmem:[%s1 + $0xb60] sm:$0xff]
    %v380 = vld [vmem:[%s1 + $0xb68] sm:$0xff]
    %v381 = vld [vmem:[%s1 + $0xb70] sm:$0xff]
    %v382 = vld [vmem:[%s1 + $0xb78] sm:$0xff]
    %v383 = vld [vmem:[%s1 + $0xb80] sm:$0xff]
    %v384 = vld [vmem:[%s1 + $0xb88] sm:$0xff]
    %v385 = vld [vmem:[%s1 + $0xb90] sm:$0xff]
    %v386 = vld [vmem:[%s1 + $0xb98] sm:$0xff]
    %v387 = vld [vmem:[%s1 + $0xba0] sm:$0xff]
    %v388 = vld [vmem:[%s1 + $0xba8] sm:$0xff]
    %v389 = vld [vmem:[%s1 + $0xbb0] sm:$0xff]
    %v390 = vld [vmem:[%s1 + $0xbb8] sm:$0xff]
    %v391 = vld [vmem:[%s1 + $0xbc0] sm:$0xff]
    %v392 = vld [vmem:[%s1 + $0xbc8] sm:$0xff]
    %v393 = vld [vmem:[%s1 + $0xbd0] sm:$0xff]
    %v394 = vld [vmem:[%s1 + $0xbd8] sm:$0xff]
    %v395 = vld [vmem:[%s1 + $0xbe0] sm:$0xff]
    %v396 = vld [vmem:[%s1 + $0xbe8] sm:$0xff]
    %v397 = vld [vmem:[%s1 + $0xbf0] sm:$0xff]
    %v398 = vld [vmem:[%s1 + $0xbf8] sm:$0xff]
    %v399 = vld [vmem:[%s1 + $0xc00] sm:$0xff]
    %v400 = vld [vmem:[%s1 + $0xc08] sm:$0xff]
    %v401 = vld [vmem:[%s1 + $0xc10] sm:$0xff]
    %v402 = vld [vmem:[%s1 + $0xc18] sm:$0xff]
    %v403 = vld [vmem:[%s1 + $0xc20] sm:$0xff]
    %v404 = vld [vmem:[%s1 + $0xc28] sm:$0xff]
    %v405 = vld [vmem:[%s1 + $0xc30] sm:$0xff]
    %v406 = vld [vmem:[%s1 + $0xc38] sm:$0xff]
    %v407 = vld [vmem:[%s1 + $0xc40] sm:$0xff]
    %v408 = vld [vmem:[%s1 + $0xc48] sm:$0xff]
    %v409 = vld [vmem:[%s1 + $0xc50] sm:$0xff]
    %v410 = vld [vmem:[%s1 + $0xc58] sm:$0xff]
    %v411 = vld [vmem:[%s1 + $0xc60] sm:$0xff]
    %v412 = vld [vmem:[%s1 + $0xc68] sm:$0xff]
    %v413 = vld [vmem:[%s1 + $0xc70] sm:$0xff]
    %v414 = vld [vmem:[%s1 + $0xc78] sm:$0xff]
    %v415 = vld [vmem:[%s1 + $0xc80] sm:$0xff]
    %v416 = vld [vmem:[%s1 + $0xc88] sm:$0xff]
    %v417 = vld [vmem:[%s1 + $0xc90] sm:$0xff]
    %v418 = vld [vmem:[%s1 + $0xc98] sm:$0xff]
    %v419 = vld [vmem:[%s1 + $0xca0] sm:$0xff]
    %v420 = vld [vmem:[%s1 + $0xca8] sm:$0xff]
    %v421 = vld [vmem:[%s1 + $0xcb0] sm:$0xff]
    %v422 = vld [vmem:[%s1 + $0xcb8] sm:$0xff]
    %v423 = vld [vmem:[%s1 + $0xcc0] sm:$0xff]
    %v424 = vld [vmem:[%s1 + $0xcc8] sm:$0xff]
    %v425 = vld [vmem:[%s1 + $0xcd0] sm:$0xff]
    %v426 = vld [vmem:[%s1 + $0xcd8] sm:$0xff]
    %v427 = vld [vmem:[%s1 + $0xce0] sm:$0xff]
    %v428 = vld [vmem:[%s1 + $0xce8] sm:$0xff]
    %v429 = vld [vmem:[%s1 + $0xcf0] sm:$0xff]
    %v430 = vld [vmem:[%s1 + $0xcf8] sm:$0xff]
    %v431 = vld [vmem:[%s1 + $0xd00] sm:$0xff]
    %v432 = vld [vmem:[%s1 + $0xd08] sm:$0xff]
    %v433 = vld [vmem:[%s1 + $0xd10] sm:$0xff]
    %v434 = vld [vmem:[%s1 + $0xd18] sm:$0xff]
    %v435 = vld [vmem:[%s1 + $0xd20] sm:$0xff]
    %v436 = vld [vmem:[%s1 + $0xd28] sm:$0xff]
    %v437 = vld [vmem:[%s1 + $0xd30] sm:$0xff]
    %v438 = vld [vmem:[%s1 + $0xd38] sm:$0xff]
    %v439 = vld [vmem:[%s1 + $0xd40] sm:$0xff]
    %v440 = vld [vmem:[%s1 + $0xd48] sm:$0xff]
    %v441 = vld [vmem:[%s1 + $0xd50] sm:$0xff]
    %v442 = vld [vmem:[%s1 + $0xd58] sm:$0xff]
    %v443 = vld [vmem:[%s1 + $0xd60] sm:$0xff]
    %v444 = vld [vmem:[%s1 + $0xd68] sm:$0xff]
    %v445 = vld [vmem:[%s1 + $0xd70] sm:$0xff]
    %v446 = vld [vmem:[%s1 + $0xd78] sm:$0xff]
    %v447 = vld [vmem:[%s1 + $0xd80] sm:$0xff]
    %v448 = vld [vmem:[%s1 + $0xd88] sm:$0xff]
    %v449 = vld [vmem:[%s1 + $0xd90] sm:$0xff]
    %v450 = vld [vmem:[%s1 + $0xd98] sm:$0xff]
    %v451 = vld [vmem:[%s1 + $0xda0] sm:$0xff]
    %v452 = vld [vmem:[%s1 + $0xda8] sm:$0xff]
    %v453 = vld [vmem:[%s1 + $0xdb0] sm:$0xff]
    %v454 = vld [vmem:[%s1 + $0xdb8] sm:$0xff]
    %v455 = vld [vmem:[%s1 + $0xdc0] sm:$0xff]
    %v456 = vld [vmem:[%s1 + $0xdc8] sm:$0xff]
    %v457 = vld [vmem:[%s1 + $0xdd0] sm:$0xff]
    %v458 = vld [vmem:[%s1 + $0xdd8] sm:$0xff]
    %v459 = vld [vmem:[%s1 + $0xde0] sm:$0xff]
    %v460 = vld [vmem:[%s1 + $0xde8] sm:$0xff]
    %v461 = vld [vmem:[%s1 + $0xdf0] sm:$0xff]
    %v462 = vld [vmem:[%s1 + $0xdf8] sm:$0xff]
    %v463 = vld [vmem:[%s1 + $0xe00] sm:$0xff]
    %v464 = vld [vmem:[%s1 + $0xe08] sm:$0xff]
    %v465 = vld [vmem:[%s1 + $0xe10] sm:$0xff]
    %v466 = vld [vmem:[%s1 + $0xe18] sm:$0xff]
    %v467 = vld [vmem:[%s1 + $0xe20] sm:$0xff]
    %v468 = vld [vmem:[%s1 + $0xe28] sm:$0xff]
    %v469 = vld [vmem:[%s1 + $0xe30] sm:$0xff]
    %v470 = vld [vmem:[%s1 + $0xe38] sm:$0xff]
    %v471 = vld [vmem:[%s1 + $0xe40] sm:$0xff]
    %v472 = vld [vmem:[%s1 + $0xe48] sm:$0xff]
    %v473 = vld [vmem:[%s1 + $0xe50] sm:$0xff]
    %v474 = vld [vmem:[%s1 + $0xe58] sm:$0xff]
    %v475 = vld [vmem:[%s1 + $0xe60] sm:$0xff]
    %v476 = vld [vmem:[%s1 + $0xe68] sm:$0xff]
    %v477 = vld [vmem:[%s1 + $0xe70] sm:$0xff]
    %v478 = vld [vmem:[%s1 + $0xe78] sm:$0xff]
    %v479 = vld [vmem:[%s1 + $0xe80] sm:$0xff]
    %v480 = vld [vmem:[%s1 + $0xe88] sm:$0xff]
    %v481 = vld [vmem:[%s1 + $0xe90] sm:$0xff]
    %v482 = vld [vmem:[%s1 + $0xe98] sm:$0xff]
    %v483 = vld [vmem:[%s1 + $0xea0] sm:$0xff]
    %v484 = vld [vmem:[%s1 + $0xea8] sm:$0xff]
    %v485 = vld [vmem:[%s1 + $0xeb0] sm:$0xff]
    %v486 = vld [vmem:[%s1 + $0xeb8] sm:$0xff]
    %v487 = vld [vmem:[%s1 + $0xec0] sm:$0xff]
    %v488 = vld [vmem:[%s1 + $0xec8] sm:$0xff]
    %v489 = vld [vmem:[%s1 + $0xed0] sm:$0xff]
    %v490 = vld [vmem:[%s1 + $0xed8] sm:$0xff]
    %v491 = vld [vmem:[%s1 + $0xee0] sm:$0xff]
    %v492 = vld [vmem:[%s1 + $0xee8] sm:$0xff]
    %v493 = vld [vmem:[%s1 + $0xef0] sm:$0xff]
    %v494 = vld [vmem:[%s1 + $0xef8] sm:$0xff]
    %v495 = vld [vmem:[%s1 + $0xf00] sm:$0xff]
    %v496 = vld [vmem:[%s1 + $0xf08] sm:$0xff]
    %v497 = vld [vmem:[%s1 + $0xf10] sm:$0xff]
    %v498 = vld [vmem:[%s1 + $0xf18] sm:$0xff]
    %v499 = vld [vmem:[%s1 + $0xf20] sm:$0xff]
    %v500 = vld [vmem:[%s1 + $0xf28] sm:$0xff]
    %v501 = vld [vmem:[%s1 + $0xf30] sm:$0xff]
    %v502 = vld [vmem:[%s1 + $0xf38] sm:$0xff]
    %v503 = vld [vmem:[%s1 + $0xf40] sm:$0xff]
    %v504 = vld [vmem:[%s1 + $0xf48] sm:$0xff]
    %v505 = vld [vmem:[%s1 + $0xf50] sm:$0xff]
    %v506 = vld [vmem:[%s1 + $0xf58] sm:$0xff]
    %v507 = vld [vmem:[%s1 + $0xf60] sm:$0xff]
    %v508 = vld [vmem:[%s1 + $0xf68] sm:$0xff]
    %v509 = vld [vmem:[%s1 + $0xf70] sm:$0xff]
    %v510 = vld [vmem:[%s1 + $0xf78] sm:$0xff]
    %v511 = vld [vmem:[%s1 + $0xf80] sm:$0xff]
    %v512 = vld [vmem:[%s1 + $0xf88] sm:$0xff]
    %v513 = vld [vmem:[%s1 + $0xf90] sm:$0xff]
    %v514 = vld [vmem:[%s1 + $0xf98] sm:$0xff]
    %v515 = vld [vmem:[%s1 + $0xfa0] sm:$0xff]
    %v516 = vld [vmem:[%s1 + $0xfa8] sm:$0xff]
    %v517 = vld [vmem:[%s1 + $0xfb0] sm:$0xff]
    %v518 = vld [vmem:[%s1 + $0xfb8] sm:$0xff]
    %v519 = vld [vmem:[%s1 + $0xfc0] sm:$0xff]
    %v520 = vld [vmem:[%s1 + $0xfc8] sm:$0xff]
    %v521 = vld [vmem:[%s1 + $0xfd0] sm:$0xff]
    %v522 = vld [vmem:[%s1 + $0xfd8] sm:$0xff]
    %v523 = vld [vmem:[%s1 + $0xfe0] sm:$0xff]
    %v524 = vld [vmem:[%s1 + $0xfe8] sm:$0xff]
    %v525 = vld [vmem:[%s1 + $0xff0] sm:$0xff]
    %v526 = vld [vmem:[%s1 + $0xff8] sm:$0xff]
    %v527 = vld [vmem:[%s1 + $0x1000] sm:$0xff]
    %v528 = vld [vmem:[%s1 + $0x1008] sm:$0xff]
    %v529 = vld [vmem:[%s1 + $0x1010] sm:$0xff]
    %v530 = vld [vmem:[%s1 + $0x1018] sm:$0xff]
    %v531 = vld [vmem:[%s1 + $0x1020] sm:$0xff]
    %v532 = vld [vmem:[%s1 + $0x1028] sm:$0xff]
    %v533 = vld [vmem:[%s1 + $0x1030] sm:$0xff]
    %v534 = vld [vmem:[%s1 + $0x1038] sm:$0xff]
    %v535 = vld [vmem:[%s1 + $0x1040] sm:$0xff]
    %v536 = vld [vmem:[%s1 + $0x1048] sm:$0xff]
    %v537 = vld [vmem:[%s1 + $0x1050] sm:$0xff]
    %v538 = vld [vmem:[%s1 + $0x1058] sm:$0xff]
    %v539 = vld [vmem:[%s1 + $0x1060] sm:$0xff]
    %v540 = vld [vmem:[%s1 + $0x1068] sm:$0xff]
    %v541 = vld [vmem:[%s1 + $0x1070] sm:$0xff]
    %v542 = vld [vmem:[%s1 + $0x1078] sm:$0xff]
    %v543 = vld [vmem:[%s1 + $0x1080] sm:$0xff]
    %v544 = vld [vmem:[%s1 + $0x1088] sm:$0xff]
    %v545 = vld [vmem:[%s1 + $0x1090] sm:$0xff]
    %v546 = vld [vmem:[%s1 + $0x1098] sm:$0xff]
    %v547 = vld [vmem:[%s1 + $0x10a0] sm:$0xff]
    %v548 = vld [vmem:[%s1 + $0x10a8] sm:$0xff]
    %v549 = vld [vmem:[%s1 + $0x10b0] sm:$0xff]
    %v550 = vld [vmem:[%s1 + $0x10b8] sm:$0xff]
    %v551 = vld [vmem:[%s1 + $0x10c0] sm:$0xff]
    %v552 = vld [vmem:[%s1 + $0x10c8] sm:$0xff]
    %v553 = vld [vmem:[%s1 + $0x10d0] sm:$0xff]
    %v554 = vld [vmem:[%s1 + $0x10d8] sm:$0xff]
    %v555 = vld [vmem:[%s1 + $0x10e0] sm:$0xff]
    %v556 = vld [vmem:[%s1 + $0x10e8] sm:$0xff]
    %v557 = vld [vmem:[%s1 + $0x10f0] sm:$0xff]
    %v558 = vld [vmem:[%s1 + $0x10f8] sm:$0xff]
    %v559 = vld [vmem:[%s1 + $0x1100] sm:$0xff]
    %v560 = vld [vmem:[%s1 + $0x1108] sm:$0xff]
    %v561 = vld [vmem:[%s1 + $0x1110] sm:$0xff]
    %v562 = vld [vmem:[%s1 + $0x1118] sm:$0xff]
    %v563 = vld [vmem:[%s1 + $0x1120] sm:$0xff]
    %v564 = vld [vmem:[%s1 + $0x1128] sm:$0xff]
    %v565 = vunpack.c.l.bf16 %v15
    %v566 = vunpack.c.h.bf16 %v15
    %v567 = vunpack.c.l.bf16 %v16
    %v568 = vunpack.c.h.bf16 %v16
    %v569 = vunpack.c.l.bf16 %v17
    %v570 = vunpack.c.h.bf16 %v17
    %v571 = vunpack.c.l.bf16 %v18
    %v572 = vunpack.c.h.bf16 %v18
    %v573 = vunpack.c.l.bf16 %v19
    %v574 = vunpack.c.h.bf16 %v19
    %v575 = vunpack.c.l.bf16 %v20
    %v576 = vunpack.c.h.bf16 %v20
    %v577 = vunpack.c.l.bf16 %v21
    %v578 = vunpack.c.h.bf16 %v21
    %v579 = vunpack.c.l.bf16 %v22
    %v580 = vunpack.c.h.bf16 %v22
    %v581 = vunpack.c.l.bf16 %v23
    %v582 = vunpack.c.h.bf16 %v23
    %v583 = vunpack.c.l.bf16 %v24
    %v584 = vunpack.c.h.bf16 %v24
    %v585 = vunpack.c.l.bf16 %v25
    %v586 = vunpack.c.h.bf16 %v25
    %v587 = vunpack.c.l.bf16 %v26
    %v588 = vunpack.c.h.bf16 %v26
    %v589 = vunpack.c.l.bf16 %v27
    %v590 = vunpack.c.h.bf16 %v27
    %v591 = vunpack.c.l.bf16 %v28
    %v592 = vunpack.c.h.bf16 %v28
    %v593 = vunpack.c.l.bf16 %v29
    %v594 = vunpack.c.h.bf16 %v29
    %v595 = vunpack.c.l.bf16 %v30
    %v596 = vunpack.c.h.bf16 %v30
    %v597 = vunpack.c.l.bf16 %v31
    %v598 = vunpack.c.h.bf16 %v31
    %v599 = vunpack.c.l.bf16 %v32
    %v600 = vunpack.c.h.bf16 %v32
    %v601 = vunpack.c.l.bf16 %v33
    %v602 = vunpack.c.h.bf16 %v33
    %v603 = vunpack.c.l.bf16 %v34
    %v604 = vunpack.c.h.bf16 %v34
    %v605 = vunpack.c.l.bf16 %v35
    %v606 = vunpack.c.h.bf16 %v35
    %v607 = vunpack.c.l.bf16 %v36
    %v608 = vunpack.c.h.bf16 %v36
    %v609 = vunpack.c.l.bf16 %v37
    %v610 = vunpack.c.h.bf16 %v37
    %v611 = vunpack.c.l.bf16 %v38
    %v612 = vunpack.c.h.bf16 %v38
    %v613 = vunpack.c.l.bf16 %v39
    %v614 = vunpack.c.h.bf16 %v39
    %v615 = vunpack.c.l.bf16 %v40
    %v616 = vunpack.c.h.bf16 %v40
    %v617 = vunpack.c.l.bf16 %v41
    %v618 = vunpack.c.h.bf16 %v41
    %v619 = vunpack.c.l.bf16 %v42
    %v620 = vunpack.c.h.bf16 %v42
    %v621 = vunpack.c.l.bf16 %v43
    %v622 = vunpack.c.h.bf16 %v43
    %v623 = vunpack.c.l.bf16 %v44
    %v624 = vunpack.c.h.bf16 %v44
    %v625 = vunpack.c.l.bf16 %v45
    %v626 = vunpack.c.h.bf16 %v45
    %v627 = vunpack.c.l.bf16 %v46
    %v628 = vunpack.c.h.bf16 %v46
    %v629 = vunpack.c.l.bf16 %v47
    %v630 = vunpack.c.h.bf16 %v47
    %v631 = vunpack.c.l.bf16 %v48
    %v632 = vunpack.c.h.bf16 %v48
    %v633 = vunpack.c.l.bf16 %v49
    %v634 = vunpack.c.h.bf16 %v49
    %v635 = vunpack.c.l.bf16 %v50
    %v636 = vunpack.c.h.bf16 %v50
    %v637 = vunpack.c.l.bf16 %v51
    %v638 = vunpack.c.h.bf16 %v51
    %v639 = vunpack.c.l.bf16 %v52
    %v640 = vunpack.c.h.bf16 %v52
    %v641 = vunpack.c.l.bf16 %v53
    %v642 = vunpack.c.h.bf16 %v53
    %v643 = vunpack.c.l.bf16 %v54
    %v644 = vunpack.c.h.bf16 %v54
    %v645 = vunpack.c.l.bf16 %v55
    %v646 = vunpack.c.h.bf16 %v55
    %v647 = vunpack.c.l.bf16 %v56
    %v648 = vunpack.c.h.bf16 %v56
    %v649 = vunpack.c.l.bf16 %v57
    %v650 = vunpack.c.h.bf16 %v57
    %v651 = vunpack.c.l.bf16 %v58
    %v652 = vunpack.c.h.bf16 %v58
    %v653 = vunpack.c.l.bf16 %v59
    %v654 = vunpack.c.h.bf16 %v59
    %v655 = vunpack.c.l.bf16 %v60
    %v656 = vunpack.c.h.bf16 %v60
    %v657 = vunpack.c.l.bf16 %v61
    %v658 = vunpack.c.h.bf16 %v61
    %v659 = vunpack.c.l.bf16 %v62
    %v660 = vunpack.c.h.bf16 %v62
    %v661 = vunpack.c.l.bf16 %v63
    %v662 = vunpack.c.h.bf16 %v63
    %v663 = vunpack.c.l.bf16 %v64
    %v664 = vunpack.c.h.bf16 %v64
    %v665 = vunpack.c.l.bf16 %v65
    %v666 = vunpack.c.h.bf16 %v65
    %v667 = vunpack.c.l.bf16 %v66
    %v668 = vunpack.c.h.bf16 %v66
    %v669 = vunpack.c.l.bf16 %v67
    %v670 = vunpack.c.h.bf16 %v67
    %v671 = vunpack.c.l.bf16 %v68
    %v672 = vunpack.c.h.bf16 %v68
    %v673 = vunpack.c.l.bf16 %v69
    %v674 = vunpack.c.h.bf16 %v69
    %v675 = vunpack.c.l.bf16 %v70
    %v676 = vunpack.c.h.bf16 %v70
    %v677 = vunpack.c.l.bf16 %v71
    %v678 = vunpack.c.h.bf16 %v71
    %v679 = vunpack.c.l.bf16 %v72
    %v680 = vunpack.c.h.bf16 %v72
    %v681 = vunpack.c.l.bf16 %v73
    %v682 = vunpack.c.h.bf16 %v73
    %v683 = vunpack.c.l.bf16 %v74
    %v684 = vunpack.c.h.bf16 %v74
    %v685 = vunpack.c.l.bf16 %v75
    %v686 = vunpack.c.h.bf16 %v75
    %v687 = vunpack.c.l.bf16 %v76
    %v688 = vunpack.c.h.bf16 %v76
    %v689 = vunpack.c.l.bf16 %v77
    %v690 = vunpack.c.h.bf16 %v77
    %v691 = vunpack.c.l.bf16 %v78
    %v692 = vunpack.c.h.bf16 %v78
    %v693 = vunpack.c.l.bf16 %v79
    %v694 = vunpack.c.h.bf16 %v79
    %v695 = vunpack.c.l.bf16 %v80
    %v696 = vunpack.c.h.bf16 %v80
    %v697 = vunpack.c.l.bf16 %v81
    %v698 = vunpack.c.h.bf16 %v81
    %v699 = vunpack.c.l.bf16 %v82
    %v700 = vunpack.c.h.bf16 %v82
    %v701 = vunpack.c.l.bf16 %v83
    %v702 = vunpack.c.h.bf16 %v83
    %v703 = vunpack.c.l.bf16 %v84
    %v704 = vunpack.c.h.bf16 %v84
    %v705 = vunpack.c.l.bf16 %v85
    %v706 = vunpack.c.h.bf16 %v85
    %v707 = vunpack.c.l.bf16 %v86
    %v708 = vunpack.c.h.bf16 %v86
    %v709 = vunpack.c.l.bf16 %v87
    %v710 = vunpack.c.h.bf16 %v87
    %v711 = vunpack.c.l.bf16 %v88
    %v712 = vunpack.c.h.bf16 %v88
    %v713 = vunpack.c.l.bf16 %v89
    %v714 = vunpack.c.h.bf16 %v89
    %v715 = vunpack.c.l.bf16 %v90
    %v716 = vunpack.c.h.bf16 %v90
    %v717 = vunpack.c.l.bf16 %v91
    %v718 = vunpack.c.h.bf16 %v91
    %v719 = vunpack.c.l.bf16 %v92
    %v720 = vunpack.c.h.bf16 %v92
    %v721 = vunpack.c.l.bf16 %v93
    %v722 = vunpack.c.h.bf16 %v93
    %v723 = vunpack.c.l.bf16 %v94
    %v724 = vunpack.c.h.bf16 %v94
    %v725 = vunpack.c.l.bf16 %v95
    %v726 = vunpack.c.h.bf16 %v95
    %v727 = vunpack.c.l.bf16 %v96
    %v728 = vunpack.c.h.bf16 %v96
    %v729 = vunpack.c.l.bf16 %v97
    %v730 = vunpack.c.h.bf16 %v97
    %v731 = vunpack.c.l.bf16 %v98
    %v732 = vunpack.c.h.bf16 %v98
    %v733 = vunpack.c.l.bf16 %v99
    %v734 = vunpack.c.h.bf16 %v99
    %v735 = vunpack.c.l.bf16 %v100
    %v736 = vunpack.c.h.bf16 %v100
    %v737 = vunpack.c.l.bf16 %v101
    %v738 = vunpack.c.h.bf16 %v101
    %v739 = vunpack.c.l.bf16 %v102
    %v740 = vunpack.c.h.bf16 %v102
    %v741 = vunpack.c.l.bf16 %v103
    %v742 = vunpack.c.h.bf16 %v103
    %v743 = vunpack.c.l.bf16 %v104
    %v744 = vunpack.c.h.bf16 %v104
    %v745 = vunpack.c.l.bf16 %v105
    %v746 = vunpack.c.h.bf16 %v105
    %v747 = vunpack.c.l.bf16 %v106
    %v748 = vunpack.c.h.bf16 %v106
    %v749 = vunpack.c.l.bf16 %v107
    %v750 = vunpack.c.h.bf16 %v107
    %v751 = vunpack.c.l.bf16 %v108
    %v752 = vunpack.c.h.bf16 %v108
    %v753 = vunpack.c.l.bf16 %v109
    %v754 = vunpack.c.h.bf16 %v109
    %v755 = vunpack.c.l.bf16 %v110
    %v756 = vunpack.c.h.bf16 %v110
    %v757 = vunpack.c.l.bf16 %v111
    %v758 = vunpack.c.h.bf16 %v111
    %v759 = vunpack.c.l.bf16 %v112
    %v760 = vunpack.c.h.bf16 %v112
    %v761 = vunpack.c.l.bf16 %v113
    %v762 = vunpack.c.h.bf16 %v113
    %v763 = vunpack.c.l.bf16 %v114
    %v764 = vunpack.c.h.bf16 %v114
    %v765 = vunpack.c.l.bf16 %v115
    %v766 = vunpack.c.h.bf16 %v115
    %v767 = vunpack.c.l.bf16 %v116
    %v768 = vunpack.c.h.bf16 %v116
    %v769 = vunpack.c.l.bf16 %v117
    %v770 = vunpack.c.h.bf16 %v117
    %v771 = vunpack.c.l.bf16 %v118
    %v772 = vunpack.c.h.bf16 %v118
    %v773 = vunpack.c.l.bf16 %v119
    %v774 = vunpack.c.h.bf16 %v119
    %v775 = vunpack.c.l.bf16 %v120
    %v776 = vunpack.c.h.bf16 %v120
    %v777 = vunpack.c.l.bf16 %v121
    %v778 = vunpack.c.h.bf16 %v121
    %v779 = vunpack.c.l.bf16 %v122
    %v780 = vunpack.c.h.bf16 %v122
    %v781 = vunpack.c.l.bf16 %v123
    %v782 = vunpack.c.h.bf16 %v123
    %v783 = vunpack.c.l.bf16 %v124
    %v784 = vunpack.c.h.bf16 %v124
    %v785 = vunpack.c.l.bf16 %v125
    %v786 = vunpack.c.h.bf16 %v125
    %v787 = vunpack.c.l.bf16 %v126
    %v788 = vunpack.c.h.bf16 %v126
    %v789 = vunpack.c.l.bf16 %v127
    %v790 = vunpack.c.h.bf16 %v127
    %v791 = vunpack.c.l.bf16 %v128
    %v792 = vunpack.c.h.bf16 %v128
    %v793 = vunpack.c.l.bf16 %v129
    %v794 = vunpack.c.h.bf16 %v129
    %v795 = vunpack.c.l.bf16 %v130
    %v796 = vunpack.c.h.bf16 %v130
    %v797 = vunpack.c.l.bf16 %v131
    %v798 = vunpack.c.h.bf16 %v131
    %v799 = vunpack.c.l.bf16 %v132
    %v800 = vunpack.c.h.bf16 %v132
    %v801 = vunpack.c.l.bf16 %v133
    %v802 = vunpack.c.h.bf16 %v133
    %v803 = vunpack.c.l.bf16 %v134
    %v804 = vunpack.c.h.bf16 %v134
    %v805 = vunpack.c.l.bf16 %v135
    %v806 = vunpack.c.h.bf16 %v135
    %v807 = vunpack.c.l.bf16 %v136
    %v808 = vunpack.c.h.bf16 %v136
    %v809 = vunpack.c.l.bf16 %v137
    %v810 = vunpack.c.h.bf16 %v137
    %v811 = vunpack.c.l.bf16 %v138
    %v812 = vunpack.c.h.bf16 %v138
    %v813 = vunpack.c.l.bf16 %v139
    %v814 = vunpack.c.h.bf16 %v139
    %v815 = vunpack.c.l.bf16 %v140
    %v816 = vunpack.c.h.bf16 %v140
    %v817 = vunpack.c.l.bf16 %v141
    %v818 = vunpack.c.h.bf16 %v141
    %v819 = vunpack.c.l.bf16 %v142
    %v820 = vunpack.c.h.bf16 %v142
    %v821 = vunpack.c.l.bf16 %v143
    %v822 = vunpack.c.h.bf16 %v143
    %v823 = vunpack.c.l.bf16 %v144
    %v824 = vunpack.c.h.bf16 %v144
    %v825 = vunpack.c.l.bf16 %v145
    %v826 = vunpack.c.h.bf16 %v145
    %v827 = vunpack.c.l.bf16 %v146
    %v828 = vunpack.c.h.bf16 %v146
    %v829 = vunpack.c.l.bf16 %v147
    %v830 = vunpack.c.h.bf16 %v147
    %v831 = vunpack.c.l.bf16 %v148
    %v832 = vunpack.c.h.bf16 %v148
    %v833 = vunpack.c.l.bf16 %v149
    %v834 = vunpack.c.h.bf16 %v149
    %v835 = vunpack.c.l.bf16 %v150
    %v836 = vunpack.c.h.bf16 %v150
    %v837 = vunpack.c.l.bf16 %v151
    %v838 = vunpack.c.h.bf16 %v151
    %v839 = vunpack.c.l.bf16 %v152
    %v840 = vunpack.c.h.bf16 %v152
    %v841 = vunpack.c.l.bf16 %v153
    %v842 = vunpack.c.h.bf16 %v153
    %v843 = vunpack.c.l.bf16 %v154
    %v844 = vunpack.c.h.bf16 %v154
    %v845 = vunpack.c.l.bf16 %v155
    %v846 = vunpack.c.h.bf16 %v155
    %v847 = vunpack.c.l.bf16 %v156
    %v848 = vunpack.c.h.bf16 %v156
    %v849 = vunpack.c.l.bf16 %v157
    %v850 = vunpack.c.h.bf16 %v157
    %v851 = vunpack.c.l.bf16 %v158
    %v852 = vunpack.c.h.bf16 %v158
    %v853 = vunpack.c.l.bf16 %v159
    %v854 = vunpack.c.h.bf16 %v159
    %v855 = vunpack.c.l.bf16 %v160
    %v856 = vunpack.c.h.bf16 %v160
    %v857 = vunpack.c.l.bf16 %v161
    %v858 = vunpack.c.h.bf16 %v161
    %v859 = vunpack.c.l.bf16 %v162
    %v860 = vunpack.c.h.bf16 %v162
    %v861 = vunpack.c.l.bf16 %v163
    %v862 = vunpack.c.h.bf16 %v163
    %v863 = vunpack.c.l.bf16 %v164
    %v864 = vunpack.c.h.bf16 %v164
    %v865 = vunpack.c.l.bf16 %v165
    %v866 = vunpack.c.h.bf16 %v165
    %v867 = vunpack.c.l.bf16 %v166
    %v868 = vunpack.c.h.bf16 %v166
    %v869 = vunpack.c.l.bf16 %v167
    %v870 = vunpack.c.h.bf16 %v167
    %v871 = vunpack.c.l.bf16 %v168
    %v872 = vunpack.c.h.bf16 %v168
    %v873 = vunpack.c.l.bf16 %v169
    %v874 = vunpack.c.h.bf16 %v169
    %v875 = vunpack.c.l.bf16 %v170
    %v876 = vunpack.c.h.bf16 %v170
    %v877 = vunpack.c.l.bf16 %v171
    %v878 = vunpack.c.h.bf16 %v171
    %v879 = vunpack.c.l.bf16 %v172
    %v880 = vunpack.c.h.bf16 %v172
    %v881 = vunpack.c.l.bf16 %v173
    %v882 = vunpack.c.h.bf16 %v173
    %v883 = vunpack.c.l.bf16 %v174
    %v884 = vunpack.c.h.bf16 %v174
    %v885 = vunpack.c.l.bf16 %v175
    %v886 = vunpack.c.h.bf16 %v175
    %v887 = vunpack.c.l.bf16 %v176
    %v888 = vunpack.c.h.bf16 %v176
    %v889 = vunpack.c.l.bf16 %v177
    %v890 = vunpack.c.h.bf16 %v177
    %v891 = vunpack.c.l.bf16 %v178
    %v892 = vunpack.c.h.bf16 %v178
    %v893 = vunpack.c.l.bf16 %v179
    %v894 = vunpack.c.h.bf16 %v179
    %v895 = vunpack.c.l.bf16 %v180
    %v896 = vunpack.c.h.bf16 %v180
    %v897 = vunpack.c.l.bf16 %v181
    %v898 = vunpack.c.h.bf16 %v181
    %v899 = vunpack.c.l.bf16 %v182
    %v900 = vunpack.c.h.bf16 %v182
    %v901 = vunpack.c.l.bf16 %v183
    %v902 = vunpack.c.h.bf16 %v183
    %v903 = vunpack.c.l.bf16 %v184
    %v904 = vunpack.c.h.bf16 %v184
    %v905 = vunpack.c.l.bf16 %v185
    %v906 = vunpack.c.h.bf16 %v185
    %v907 = vunpack.c.l.bf16 %v186
    %v908 = vunpack.c.h.bf16 %v186
    %v909 = vunpack.c.l.bf16 %v187
    %v910 = vunpack.c.h.bf16 %v187
    %v911 = vunpack.c.l.bf16 %v188
    %v912 = vunpack.c.h.bf16 %v188
    %v913 = vunpack.c.l.bf16 %v189
    %v914 = vunpack.c.h.bf16 %v189
    %v915 = vunpack.c.l.bf16 %v190
    %v916 = vunpack.c.h.bf16 %v190
    %v917 = vunpack.c.l.bf16 %v191
    %v918 = vunpack.c.h.bf16 %v191
    %v919 = vunpack.c.l.bf16 %v192
    %v920 = vunpack.c.h.bf16 %v192
    %v921 = vunpack.c.l.bf16 %v193
    %v922 = vunpack.c.h.bf16 %v193
    %v923 = vunpack.c.l.bf16 %v194
    %v924 = vunpack.c.h.bf16 %v194
    %v925 = vunpack.c.l.bf16 %v195
    %v926 = vunpack.c.h.bf16 %v195
    %v927 = vunpack.c.l.bf16 %v196
    %v928 = vunpack.c.h.bf16 %v196
    %v929 = vunpack.c.l.bf16 %v197
    %v930 = vunpack.c.h.bf16 %v197
    %v931 = vunpack.c.l.bf16 %v198
    %v932 = vunpack.c.h.bf16 %v198
    %v933 = vunpack.c.l.bf16 %v199
    %v934 = vunpack.c.h.bf16 %v199
    %v935 = vunpack.c.l.bf16 %v200
    %v936 = vunpack.c.h.bf16 %v200
    %v937 = vunpack.c.l.bf16 %v201
    %v938 = vunpack.c.h.bf16 %v201
    %v939 = vunpack.c.l.bf16 %v202
    %v940 = vunpack.c.h.bf16 %v202
    %v941 = vunpack.c.l.bf16 %v203
    %v942 = vunpack.c.h.bf16 %v203
    %v943 = vunpack.c.l.bf16 %v204
    %v944 = vunpack.c.h.bf16 %v204
    %v945 = vunpack.c.l.bf16 %v205
    %v946 = vunpack.c.h.bf16 %v205
    %v947 = vunpack.c.l.bf16 %v206
    %v948 = vunpack.c.h.bf16 %v206
    %v949 = vunpack.c.l.bf16 %v207
    %v950 = vunpack.c.h.bf16 %v207
    %v951 = vunpack.c.l.bf16 %v208
    %v952 = vunpack.c.h.bf16 %v208
    %v953 = vunpack.c.l.bf16 %v209
    %v954 = vunpack.c.h.bf16 %v209
    %v955 = vunpack.c.l.bf16 %v210
    %v956 = vunpack.c.h.bf16 %v210
    %v957 = vunpack.c.l.bf16 %v211
    %v958 = vunpack.c.h.bf16 %v211
    %v959 = vunpack.c.l.bf16 %v212
    %v960 = vunpack.c.h.bf16 %v212
    %v961 = vunpack.c.l.bf16 %v213
    %v962 = vunpack.c.h.bf16 %v213
    %v963 = vunpack.c.l.bf16 %v214
    %v964 = vunpack.c.h.bf16 %v214
    %v965 = vunpack.c.l.bf16 %v215
    %v966 = vunpack.c.h.bf16 %v215
    %v967 = vunpack.c.l.bf16 %v216
    %v968 = vunpack.c.h.bf16 %v216
    %v969 = vunpack.c.l.bf16 %v217
    %v970 = vunpack.c.h.bf16 %v217
    %v971 = vunpack.c.l.bf16 %v218
    %v972 = vunpack.c.h.bf16 %v218
    %v973 = vunpack.c.l.bf16 %v219
    %v974 = vunpack.c.h.bf16 %v219
    %v975 = vunpack.c.l.bf16 %v220
    %v976 = vunpack.c.h.bf16 %v220
    %v977 = vunpack.c.l.bf16 %v221
    %v978 = vunpack.c.h.bf16 %v221
    %v979 = vunpack.c.l.bf16 %v222
    %v980 = vunpack.c.h.bf16 %v222
    %v981 = vunpack.c.l.bf16 %v223
    %v982 = vunpack.c.h.bf16 %v223
    %v983 = vunpack.c.l.bf16 %v224
    %v984 = vunpack.c.h.bf16 %v224
    %v985 = vunpack.c.l.bf16 %v225
    %v986 = vunpack.c.h.bf16 %v225
    %v987 = vunpack.c.l.bf16 %v226
    %v988 = vunpack.c.h.bf16 %v226
    %v989 = vunpack.c.l.bf16 %v227
    %v990 = vunpack.c.h.bf16 %v227
    %v991 = vunpack.c.l.bf16 %v228
    %v992 = vunpack.c.h.bf16 %v228
    %v993 = vunpack.c.l.bf16 %v229
    %v994 = vunpack.c.h.bf16 %v229
    %v995 = vunpack.c.l.bf16 %v230
    %v996 = vunpack.c.h.bf16 %v230
    %v997 = vunpack.c.l.bf16 %v231
    %v998 = vunpack.c.h.bf16 %v231
    %v999 = vunpack.c.l.bf16 %v232
    %v1000 = vunpack.c.h.bf16 %v232
    %v1001 = vunpack.c.l.bf16 %v233
    %v1002 = vunpack.c.h.bf16 %v233
    %v1003 = vunpack.c.l.bf16 %v234
    %v1004 = vunpack.c.h.bf16 %v234
    %v1005 = vunpack.c.l.bf16 %v235
    %v1006 = vunpack.c.h.bf16 %v235
    %v1007 = vunpack.c.l.bf16 %v236
    %v1008 = vunpack.c.h.bf16 %v236
    %v1009 = vunpack.c.l.bf16 %v237
    %v1010 = vunpack.c.h.bf16 %v237
    %v1011 = vunpack.c.l.bf16 %v238
    %v1012 = vunpack.c.h.bf16 %v238
    %v1013 = vunpack.c.l.bf16 %v239
    %v1014 = vunpack.c.h.bf16 %v239
    %v1015 = vunpack.c.l.bf16 %v240
    %v1016 = vunpack.c.h.bf16 %v240
    %v1017 = vunpack.c.l.bf16 %v241
    %v1018 = vunpack.c.h.bf16 %v241
    %v1019 = vunpack.c.l.bf16 %v242
    %v1020 = vunpack.c.h.bf16 %v242
    %v1021 = vunpack.c.l.bf16 %v243
    %v1022 = vunpack.c.h.bf16 %v243
    %v1023 = vunpack.c.l.bf16 %v244
    %v1024 = vunpack.c.h.bf16 %v244
    %v1025 = vunpack.c.l.bf16 %v245
    %v1026 = vunpack.c.h.bf16 %v245
    %v1027 = vunpack.c.l.bf16 %v246
    %v1028 = vunpack.c.h.bf16 %v246
    %v1029 = vunpack.c.l.bf16 %v247
    %v1030 = vunpack.c.h.bf16 %v247
    %v1031 = vunpack.c.l.bf16 %v248
    %v1032 = vunpack.c.h.bf16 %v248
    %v1033 = vunpack.c.l.bf16 %v249
    %v1034 = vunpack.c.h.bf16 %v249
    %v1035 = vunpack.c.l.bf16 %v250
    %v1036 = vunpack.c.h.bf16 %v250
    %v1037 = vunpack.c.l.bf16 %v251
    %v1038 = vunpack.c.h.bf16 %v251
    %v1039 = vunpack.c.l.bf16 %v252
    %v1040 = vunpack.c.h.bf16 %v252
    %v1041 = vunpack.c.l.bf16 %v253
    %v1042 = vunpack.c.h.bf16 %v253
    %v1043 = vunpack.c.l.bf16 %v254
    %v1044 = vunpack.c.h.bf16 %v254
    %v1045 = vunpack.c.l.bf16 %v255
    %v1046 = vunpack.c.h.bf16 %v255
    %v1047 = vunpack.c.l.bf16 %v256
    %v1048 = vunpack.c.h.bf16 %v256
    %v1049 = vunpack.c.l.bf16 %v257
    %v1050 = vunpack.c.h.bf16 %v257
    %v1051 = vunpack.c.l.bf16 %v258
    %v1052 = vunpack.c.h.bf16 %v258
    %v1053 = vunpack.c.l.bf16 %v259
    %v1054 = vunpack.c.h.bf16 %v259
    %v1055 = vunpack.c.l.bf16 %v260
    %v1056 = vunpack.c.h.bf16 %v260
    %v1057 = vunpack.c.l.bf16 %v261
    %v1058 = vunpack.c.h.bf16 %v261
    %v1059 = vunpack.c.l.bf16 %v262
    %v1060 = vunpack.c.h.bf16 %v262
    %v1061 = vunpack.c.l.bf16 %v263
    %v1062 = vunpack.c.h.bf16 %v263
    %v1063 = vunpack.c.l.bf16 %v264
    %v1064 = vunpack.c.h.bf16 %v264
    %v1065 = vunpack.c.l.bf16 %v265
    %v1066 = vunpack.c.h.bf16 %v265
    %v1067 = vunpack.c.l.bf16 %v266
    %v1068 = vunpack.c.h.bf16 %v266
    %v1069 = vunpack.c.l.bf16 %v267
    %v1070 = vunpack.c.h.bf16 %v267
    %v1071 = vunpack.c.l.bf16 %v268
    %v1072 = vunpack.c.h.bf16 %v268
    %v1073 = vunpack.c.l.bf16 %v269
    %v1074 = vunpack.c.h.bf16 %v269
    %v1075 = vunpack.c.l.bf16 %v270
    %v1076 = vunpack.c.h.bf16 %v270
    %v1077 = vunpack.c.l.bf16 %v271
    %v1078 = vunpack.c.h.bf16 %v271
    %v1079 = vunpack.c.l.bf16 %v272
    %v1080 = vunpack.c.h.bf16 %v272
    %v1081 = vunpack.c.l.bf16 %v273
    %v1082 = vunpack.c.h.bf16 %v273
    %v1083 = vunpack.c.l.bf16 %v274
    %v1084 = vunpack.c.h.bf16 %v274
    %v1085 = vunpack.c.l.bf16 %v275
    %v1086 = vunpack.c.h.bf16 %v275
    %v1087 = vunpack.c.l.bf16 %v276
    %v1088 = vunpack.c.h.bf16 %v276
    %v1089 = vunpack.c.l.bf16 %v277
    %v1090 = vunpack.c.h.bf16 %v277
    %v1091 = vunpack.c.l.bf16 %v278
    %v1092 = vunpack.c.h.bf16 %v278
    %v1093 = vunpack.c.l.bf16 %v279
    %v1094 = vunpack.c.h.bf16 %v279
    %v1095 = vunpack.c.l.bf16 %v280
    %v1096 = vunpack.c.h.bf16 %v280
    %v1097 = vunpack.c.l.bf16 %v281
    %v1098 = vunpack.c.h.bf16 %v281
    %v1099 = vunpack.c.l.bf16 %v282
    %v1100 = vunpack.c.h.bf16 %v282
    %v1101 = vunpack.c.l.bf16 %v283
    %v1102 = vunpack.c.h.bf16 %v283
    %v1103 = vunpack.c.l.bf16 %v284
    %v1104 = vunpack.c.h.bf16 %v284
    %v1105 = vunpack.c.l.bf16 %v285
    %v1106 = vunpack.c.h.bf16 %v285
    %v1107 = vunpack.c.l.bf16 %v286
    %v1108 = vunpack.c.h.bf16 %v286
    %v1109 = vunpack.c.l.bf16 %v287
    %v1110 = vunpack.c.h.bf16 %v287
    %v1111 = vunpack.c.l.bf16 %v288
    %v1112 = vunpack.c.h.bf16 %v288
    %v1113 = vunpack.c.l.bf16 %v289
    %v1114 = vunpack.c.h.bf16 %v289
    %v1115 = vunpack.c.l.bf16 %v290
    %v1116 = vunpack.c.h.bf16 %v290
    %v1117 = vunpack.c.l.bf16 %v291
    %v1118 = vunpack.c.h.bf16 %v291
    %v1119 = vunpack.c.l.bf16 %v292
    %v1120 = vunpack.c.h.bf16 %v292
    %v1121 = vunpack.c.l.bf16 %v293
    %v1122 = vunpack.c.h.bf16 %v293
    %v1123 = vunpack.c.l.bf16 %v294
    %v1124 = vunpack.c.h.bf16 %v294
    %v1125 = vunpack.c.l.bf16 %v295
    %v1126 = vunpack.c.h.bf16 %v295
    %v1127 = vunpack.c.l.bf16 %v296
    %v1128 = vunpack.c.h.bf16 %v296
    %v1129 = vunpack.c.l.bf16 %v297
    %v1130 = vunpack.c.h.bf16 %v297
    %v1131 = vunpack.c.l.bf16 %v298
    %v1132 = vunpack.c.h.bf16 %v298
    %v1133 = vunpack.c.l.bf16 %v299
    %v1134 = vunpack.c.h.bf16 %v299
    %v1135 = vunpack.c.l.bf16 %v300
    %v1136 = vunpack.c.h.bf16 %v300
    %v1137 = vunpack.c.l.bf16 %v301
    %v1138 = vunpack.c.h.bf16 %v301
    %v1139 = vunpack.c.l.bf16 %v302
    %v1140 = vunpack.c.h.bf16 %v302
    %v1141 = vunpack.c.l.bf16 %v303
    %v1142 = vunpack.c.h.bf16 %v303
    %v1143 = vunpack.c.l.bf16 %v304
    %v1144 = vunpack.c.h.bf16 %v304
    %v1145 = vunpack.c.l.bf16 %v305
    %v1146 = vunpack.c.h.bf16 %v305
    %v1147 = vunpack.c.l.bf16 %v306
    %v1148 = vunpack.c.h.bf16 %v306
    %v1149 = vunpack.c.l.bf16 %v307
    %v1150 = vunpack.c.h.bf16 %v307
    %v1151 = vunpack.c.l.bf16 %v308
    %v1152 = vunpack.c.h.bf16 %v308
    %v1153 = vunpack.c.l.bf16 %v309
    %v1154 = vunpack.c.h.bf16 %v309
    %v1155 = vunpack.c.l.bf16 %v310
    %v1156 = vunpack.c.h.bf16 %v310
    %v1157 = vunpack.c.l.bf16 %v311
    %v1158 = vunpack.c.h.bf16 %v311
    %v1159 = vunpack.c.l.bf16 %v312
    %v1160 = vunpack.c.h.bf16 %v312
    %v1161 = vunpack.c.l.bf16 %v313
    %v1162 = vunpack.c.h.bf16 %v313
    %v1163 = vunpack.c.l.bf16 %v314
    %v1164 = vunpack.c.h.bf16 %v314
    %v1165 = vunpack.c.l.bf16 %v315
    %v1166 = vunpack.c.h.bf16 %v315
    %v1167 = vunpack.c.l.bf16 %v316
    %v1168 = vunpack.c.h.bf16 %v316
    %v1169 = vunpack.c.l.bf16 %v317
    %v1170 = vunpack.c.h.bf16 %v317
    %v1171 = vunpack.c.l.bf16 %v318
    %v1172 = vunpack.c.h.bf16 %v318
    %v1173 = vunpack.c.l.bf16 %v319
    %v1174 = vunpack.c.h.bf16 %v319
    %v1175 = vunpack.c.l.bf16 %v320
    %v1176 = vunpack.c.h.bf16 %v320
    %v1177 = vunpack.c.l.bf16 %v321
    %v1178 = vunpack.c.h.bf16 %v321
    %v1179 = vunpack.c.l.bf16 %v322
    %v1180 = vunpack.c.h.bf16 %v322
    %v1181 = vunpack.c.l.bf16 %v323
    %v1182 = vunpack.c.h.bf16 %v323
    %v1183 = vunpack.c.l.bf16 %v324
    %v1184 = vunpack.c.h.bf16 %v324
    %v1185 = vunpack.c.l.bf16 %v325
    %v1186 = vunpack.c.h.bf16 %v325
    %v1187 = vunpack.c.l.bf16 %v326
    %v1188 = vunpack.c.h.bf16 %v326
    %v1189 = vunpack.c.l.bf16 %v327
    %v1190 = vunpack.c.h.bf16 %v327
    %v1191 = vunpack.c.l.bf16 %v328
    %v1192 = vunpack.c.h.bf16 %v328
    %v1193 = vunpack.c.l.bf16 %v329
    %v1194 = vunpack.c.h.bf16 %v329
    %v1195 = vunpack.c.l.bf16 %v330
    %v1196 = vunpack.c.h.bf16 %v330
    %v1197 = vunpack.c.l.bf16 %v331
    %v1198 = vunpack.c.h.bf16 %v331
    %v1199 = vunpack.c.l.bf16 %v332
    %v1200 = vunpack.c.h.bf16 %v332
    %v1201 = vunpack.c.l.bf16 %v333
    %v1202 = vunpack.c.h.bf16 %v333
    %v1203 = vunpack.c.l.bf16 %v334
    %v1204 = vunpack.c.h.bf16 %v334
    %v1205 = vunpack.c.l.bf16 %v335
    %v1206 = vunpack.c.h.bf16 %v335
    %v1207 = vunpack.c.l.bf16 %v336
    %v1208 = vunpack.c.h.bf16 %v336
    %v1209 = vunpack.c.l.bf16 %v337
    %v1210 = vunpack.c.h.bf16 %v337
    %v1211 = vunpack.c.l.bf16 %v338
    %v1212 = vunpack.c.h.bf16 %v338
    %v1213 = vunpack.c.l.bf16 %v339
    %v1214 = vunpack.c.h.bf16 %v339
    %v1215 = vunpack.c.l.bf16 %v340
    %v1216 = vunpack.c.h.bf16 %v340
    %v1217 = vunpack.c.l.bf16 %v341
    %v1218 = vunpack.c.h.bf16 %v341
    %v1219 = vunpack.c.l.bf16 %v342
    %v1220 = vunpack.c.h.bf16 %v342
    %v1221 = vunpack.c.l.bf16 %v343
    %v1222 = vunpack.c.h.bf16 %v343
    %v1223 = vunpack.c.l.bf16 %v344
    %v1224 = vunpack.c.h.bf16 %v344
    %v1225 = vunpack.c.l.bf16 %v345
    %v1226 = vunpack.c.h.bf16 %v345
    %v1227 = vunpack.c.l.bf16 %v346
    %v1228 = vunpack.c.h.bf16 %v346
    %v1229 = vunpack.c.l.bf16 %v347
    %v1230 = vunpack.c.h.bf16 %v347
    %v1231 = vunpack.c.l.bf16 %v348
    %v1232 = vunpack.c.h.bf16 %v348
    %v1233 = vunpack.c.l.bf16 %v349
    %v1234 = vunpack.c.h.bf16 %v349
    %v1235 = vunpack.c.l.bf16 %v350
    %v1236 = vunpack.c.h.bf16 %v350
    %v1237 = vunpack.c.l.bf16 %v351
    %v1238 = vunpack.c.h.bf16 %v351
    %v1239 = vunpack.c.l.bf16 %v352
    %v1240 = vunpack.c.h.bf16 %v352
    %v1241 = vunpack.c.l.bf16 %v353
    %v1242 = vunpack.c.h.bf16 %v353
    %v1243 = vunpack.c.l.bf16 %v354
    %v1244 = vunpack.c.h.bf16 %v354
    %v1245 = vunpack.c.l.bf16 %v355
    %v1246 = vunpack.c.h.bf16 %v355
    %v1247 = vunpack.c.l.bf16 %v356
    %v1248 = vunpack.c.h.bf16 %v356
    %v1249 = vunpack.c.l.bf16 %v357
    %v1250 = vunpack.c.h.bf16 %v357
    %v1251 = vunpack.c.l.bf16 %v358
    %v1252 = vunpack.c.h.bf16 %v358
    %v1253 = vunpack.c.l.bf16 %v359
    %v1254 = vunpack.c.h.bf16 %v359
    %v1255 = vunpack.c.l.bf16 %v360
    %v1256 = vunpack.c.h.bf16 %v360
    %v1257 = vunpack.c.l.bf16 %v361
    %v1258 = vunpack.c.h.bf16 %v361
    %v1259 = vunpack.c.l.bf16 %v362
    %v1260 = vunpack.c.h.bf16 %v362
    %v1261 = vunpack.c.l.bf16 %v363
    %v1262 = vunpack.c.h.bf16 %v363
    %v1263 = vunpack.c.l.bf16 %v364
    %v1264 = vunpack.c.h.bf16 %v364
    %v1265 = vunpack.c.l.bf16 %v365
    %v1266 = vunpack.c.h.bf16 %v365
    %v1267 = vunpack.c.l.bf16 %v366
    %v1268 = vunpack.c.h.bf16 %v366
    %v1269 = vunpack.c.l.bf16 %v367
    %v1270 = vunpack.c.h.bf16 %v367
    %v1271 = vunpack.c.l.bf16 %v368
    %v1272 = vunpack.c.h.bf16 %v368
    %v1273 = vunpack.c.l.bf16 %v369
    %v1274 = vunpack.c.h.bf16 %v369
    %v1275 = vunpack.c.l.bf16 %v370
    %v1276 = vunpack.c.h.bf16 %v370
    %v1277 = vunpack.c.l.bf16 %v371
    %v1278 = vunpack.c.h.bf16 %v371
    %v1279 = vunpack.c.l.bf16 %v372
    %v1280 = vunpack.c.h.bf16 %v372
    %v1281 = vunpack.c.l.bf16 %v373
    %v1282 = vunpack.c.h.bf16 %v373
    %v1283 = vunpack.c.l.bf16 %v374
    %v1284 = vunpack.c.h.bf16 %v374
    %v1285 = vunpack.c.l.bf16 %v375
    %v1286 = vunpack.c.h.bf16 %v375
    %v1287 = vunpack.c.l.bf16 %v376
    %v1288 = vunpack.c.h.bf16 %v376
    %v1289 = vunpack.c.l.bf16 %v377
    %v1290 = vunpack.c.h.bf16 %v377
    %v1291 = vunpack.c.l.bf16 %v378
    %v1292 = vunpack.c.h.bf16 %v378
    %v1293 = vunpack.c.l.bf16 %v379
    %v1294 = vunpack.c.h.bf16 %v379
    %v1295 = vunpack.c.l.bf16 %v380
    %v1296 = vunpack.c.h.bf16 %v380
    %v1297 = vunpack.c.l.bf16 %v381
    %v1298 = vunpack.c.h.bf16 %v381
    %v1299 = vunpack.c.l.bf16 %v382
    %v1300 = vunpack.c.h.bf16 %v382
    %v1301 = vunpack.c.l.bf16 %v383
    %v1302 = vunpack.c.h.bf16 %v383
    %v1303 = vunpack.c.l.bf16 %v384
    %v1304 = vunpack.c.h.bf16 %v384
    %v1305 = vunpack.c.l.bf16 %v385
    %v1306 = vunpack.c.h.bf16 %v385
    %v1307 = vunpack.c.l.bf16 %v386
    %v1308 = vunpack.c.h.bf16 %v386
    %v1309 = vunpack.c.l.bf16 %v387
    %v1310 = vunpack.c.h.bf16 %v387
    %v1311 = vunpack.c.l.bf16 %v388
    %v1312 = vunpack.c.h.bf16 %v388
    %v1313 = vunpack.c.l.bf16 %v389
    %v1314 = vunpack.c.h.bf16 %v389
    %v1315 = vunpack.c.l.bf16 %v390
    %v1316 = vunpack.c.h.bf16 %v390
    %v1317 = vunpack.c.l.bf16 %v391
    %v1318 = vunpack.c.h.bf16 %v391
    %v1319 = vunpack.c.l.bf16 %v392
    %v1320 = vunpack.c.h.bf16 %v392
    %v1321 = vunpack.c.l.bf16 %v393
    %v1322 = vunpack.c.h.bf16 %v393
    %v1323 = vunpack.c.l.bf16 %v394
    %v1324 = vunpack.c.h.bf16 %v394
    %v1325 = vunpack.c.l.bf16 %v395
    %v1326 = vunpack.c.h.bf16 %v395
    %v1327 = vunpack.c.l.bf16 %v396
    %v1328 = vunpack.c.h.bf16 %v396
    %v1329 = vunpack.c.l.bf16 %v397
    %v1330 = vunpack.c.h.bf16 %v397
    %v1331 = vunpack.c.l.bf16 %v398
    %v1332 = vunpack.c.h.bf16 %v398
    %v1333 = vunpack.c.l.bf16 %v399
    %v1334 = vunpack.c.h.bf16 %v399
    %v1335 = vunpack.c.l.bf16 %v400
    %v1336 = vunpack.c.h.bf16 %v400
    %v1337 = vunpack.c.l.bf16 %v401
    %v1338 = vunpack.c.h.bf16 %v401
    %v1339 = vunpack.c.l.bf16 %v402
    %v1340 = vunpack.c.h.bf16 %v402
    %v1341 = vunpack.c.l.bf16 %v403
    %v1342 = vunpack.c.h.bf16 %v403
    %v1343 = vunpack.c.l.bf16 %v404
    %v1344 = vunpack.c.h.bf16 %v404
    %v1345 = vunpack.c.l.bf16 %v405
    %v1346 = vunpack.c.h.bf16 %v405
    %v1347 = vunpack.c.l.bf16 %v406
    %v1348 = vunpack.c.h.bf16 %v406
    %v1349 = vunpack.c.l.bf16 %v407
    %v1350 = vunpack.c.h.bf16 %v407
    %v1351 = vunpack.c.l.bf16 %v408
    %v1352 = vunpack.c.h.bf16 %v408
    %v1353 = vunpack.c.l.bf16 %v409
    %v1354 = vunpack.c.h.bf16 %v409
    %v1355 = vunpack.c.l.bf16 %v410
    %v1356 = vunpack.c.h.bf16 %v410
    %v1357 = vunpack.c.l.bf16 %v411
    %v1358 = vunpack.c.h.bf16 %v411
    %v1359 = vunpack.c.l.bf16 %v412
    %v1360 = vunpack.c.h.bf16 %v412
    %v1361 = vunpack.c.l.bf16 %v413
    %v1362 = vunpack.c.h.bf16 %v413
    %v1363 = vunpack.c.l.bf16 %v414
    %v1364 = vunpack.c.h.bf16 %v414
    %v1365 = vunpack.c.l.bf16 %v415
    %v1366 = vunpack.c.h.bf16 %v415
    %v1367 = vunpack.c.l.bf16 %v416
    %v1368 = vunpack.c.h.bf16 %v416
    %v1369 = vunpack.c.l.bf16 %v417
    %v1370 = vunpack.c.h.bf16 %v417
    %v1371 = vunpack.c.l.bf16 %v418
    %v1372 = vunpack.c.h.bf16 %v418
    %v1373 = vunpack.c.l.bf16 %v419
    %v1374 = vunpack.c.h.bf16 %v419
    %v1375 = vunpack.c.l.bf16 %v420
    %v1376 = vunpack.c.h.bf16 %v420
    %v1377 = vunpack.c.l.bf16 %v421
    %v1378 = vunpack.c.h.bf16 %v421
    %v1379 = vunpack.c.l.bf16 %v422
    %v1380 = vunpack.c.h.bf16 %v422
    %v1381 = vunpack.c.l.bf16 %v423
    %v1382 = vunpack.c.h.bf16 %v423
    %v1383 = vunpack.c.l.bf16 %v424
    %v1384 = vunpack.c.h.bf16 %v424
    %v1385 = vunpack.c.l.bf16 %v425
    %v1386 = vunpack.c.h.bf16 %v425
    %v1387 = vunpack.c.l.bf16 %v426
    %v1388 = vunpack.c.h.bf16 %v426
    %v1389 = vunpack.c.l.bf16 %v427
    %v1390 = vunpack.c.h.bf16 %v427
    %v1391 = vunpack.c.l.bf16 %v428
    %v1392 = vunpack.c.h.bf16 %v428
    %v1393 = vunpack.c.l.bf16 %v429
    %v1394 = vunpack.c.h.bf16 %v429
    %v1395 = vunpack.c.l.bf16 %v430
    %v1396 = vunpack.c.h.bf16 %v430
    %v1397 = vunpack.c.l.bf16 %v431
    %v1398 = vunpack.c.h.bf16 %v431
    %v1399 = vunpack.c.l.bf16 %v432
    %v1400 = vunpack.c.h.bf16 %v432
    %v1401 = vunpack.c.l.bf16 %v433
    %v1402 = vunpack.c.h.bf16 %v433
    %v1403 = vunpack.c.l.bf16 %v434
    %v1404 = vunpack.c.h.bf16 %v434
    %v1405 = vunpack.c.l.bf16 %v435
    %v1406 = vunpack.c.h.bf16 %v435
    %v1407 = vunpack.c.l.bf16 %v436
    %v1408 = vunpack.c.h.bf16 %v436
    %v1409 = vunpack.c.l.bf16 %v437
    %v1410 = vunpack.c.h.bf16 %v437
    %v1411 = vunpack.c.l.bf16 %v438
    %v1412 = vunpack.c.h.bf16 %v438
    %v1413 = vunpack.c.l.bf16 %v439
    %v1414 = vunpack.c.h.bf16 %v439
    %v1415 = vunpack.c.l.bf16 %v440
    %v1416 = vunpack.c.h.bf16 %v440
    %v1417 = vunpack.c.l.bf16 %v441
    %v1418 = vunpack.c.h.bf16 %v441
    %v1419 = vunpack.c.l.bf16 %v442
    %v1420 = vunpack.c.h.bf16 %v442
    %v1421 = vunpack.c.l.bf16 %v443
    %v1422 = vunpack.c.h.bf16 %v443
    %v1423 = vunpack.c.l.bf16 %v444
    %v1424 = vunpack.c.h.bf16 %v444
    %v1425 = vunpack.c.l.bf16 %v445
    %v1426 = vunpack.c.h.bf16 %v445
    %v1427 = vunpack.c.l.bf16 %v446
    %v1428 = vunpack.c.h.bf16 %v446
    %v1429 = vunpack.c.l.bf16 %v447
    %v1430 = vunpack.c.h.bf16 %v447
    %v1431 = vunpack.c.l.bf16 %v448
    %v1432 = vunpack.c.h.bf16 %v448
    %v1433 = vunpack.c.l.bf16 %v449
    %v1434 = vunpack.c.h.bf16 %v449
    %v1435 = vunpack.c.l.bf16 %v450
    %v1436 = vunpack.c.h.bf16 %v450
    %v1437 = vunpack.c.l.bf16 %v451
    %v1438 = vunpack.c.h.bf16 %v451
    %v1439 = vunpack.c.l.bf16 %v452
    %v1440 = vunpack.c.h.bf16 %v452
    %v1441 = vunpack.c.l.bf16 %v453
    %v1442 = vunpack.c.h.bf16 %v453
    %v1443 = vunpack.c.l.bf16 %v454
    %v1444 = vunpack.c.h.bf16 %v454
    %v1445 = vunpack.c.l.bf16 %v455
    %v1446 = vunpack.c.h.bf16 %v455
    %v1447 = vunpack.c.l.bf16 %v456
    %v1448 = vunpack.c.h.bf16 %v456
    %v1449 = vunpack.c.l.bf16 %v457
    %v1450 = vunpack.c.h.bf16 %v457
    %v1451 = vunpack.c.l.bf16 %v458
    %v1452 = vunpack.c.h.bf16 %v458
    %v1453 = vunpack.c.l.bf16 %v459
    %v1454 = vunpack.c.h.bf16 %v459
    %v1455 = vunpack.c.l.bf16 %v460
    %v1456 = vunpack.c.h.bf16 %v460
    %v1457 = vunpack.c.l.bf16 %v461
    %v1458 = vunpack.c.h.bf16 %v461
    %v1459 = vunpack.c.l.bf16 %v462
    %v1460 = vunpack.c.h.bf16 %v462
    %v1461 = vunpack.c.l.bf16 %v463
    %v1462 = vunpack.c.h.bf16 %v463
    %v1463 = vunpack.c.l.bf16 %v464
    %v1464 = vunpack.c.h.bf16 %v464
    %v1465 = vunpack.c.l.bf16 %v465
    %v1466 = vunpack.c.h.bf16 %v465
    %v1467 = vunpack.c.l.bf16 %v466
    %v1468 = vunpack.c.h.bf16 %v466
    %v1469 = vunpack.c.l.bf16 %v467
    %v1470 = vunpack.c.h.bf16 %v467
    %v1471 = vunpack.c.l.bf16 %v468
    %v1472 = vunpack.c.h.bf16 %v468
    %v1473 = vunpack.c.l.bf16 %v469
    %v1474 = vunpack.c.h.bf16 %v469
    %v1475 = vunpack.c.l.bf16 %v470
    %v1476 = vunpack.c.h.bf16 %v470
    %v1477 = vunpack.c.l.bf16 %v471
    %v1478 = vunpack.c.h.bf16 %v471
    %v1479 = vunpack.c.l.bf16 %v472
    %v1480 = vunpack.c.h.bf16 %v472
    %v1481 = vunpack.c.l.bf16 %v473
    %v1482 = vunpack.c.h.bf16 %v473
    %v1483 = vunpack.c.l.bf16 %v474
    %v1484 = vunpack.c.h.bf16 %v474
    %v1485 = vunpack.c.l.bf16 %v475
    %v1486 = vunpack.c.h.bf16 %v475
    %v1487 = vunpack.c.l.bf16 %v476
    %v1488 = vunpack.c.h.bf16 %v476
    %v1489 = vunpack.c.l.bf16 %v477
    %v1490 = vunpack.c.h.bf16 %v477
    %v1491 = vunpack.c.l.bf16 %v478
    %v1492 = vunpack.c.h.bf16 %v478
    %v1493 = vunpack.c.l.bf16 %v479
    %v1494 = vunpack.c.h.bf16 %v479
    %v1495 = vunpack.c.l.bf16 %v480
    %v1496 = vunpack.c.h.bf16 %v480
    %v1497 = vunpack.c.l.bf16 %v481
    %v1498 = vunpack.c.h.bf16 %v481
    %v1499 = vunpack.c.l.bf16 %v482
    %v1500 = vunpack.c.h.bf16 %v482
    %v1501 = vunpack.c.l.bf16 %v483
    %v1502 = vunpack.c.h.bf16 %v483
    %v1503 = vunpack.c.l.bf16 %v484
    %v1504 = vunpack.c.h.bf16 %v484
    %v1505 = vunpack.c.l.bf16 %v485
    %v1506 = vunpack.c.h.bf16 %v485
    %v1507 = vunpack.c.l.bf16 %v486
    %v1508 = vunpack.c.h.bf16 %v486
    %v1509 = vunpack.c.l.bf16 %v487
    %v1510 = vunpack.c.h.bf16 %v487
    %v1511 = vunpack.c.l.bf16 %v488
    %v1512 = vunpack.c.h.bf16 %v488
    %v1513 = vunpack.c.l.bf16 %v489
    %v1514 = vunpack.c.h.bf16 %v489
    %v1515 = vunpack.c.l.bf16 %v490
    %v1516 = vunpack.c.h.bf16 %v490
    %v1517 = vunpack.c.l.bf16 %v491
    %v1518 = vunpack.c.h.bf16 %v491
    %v1519 = vunpack.c.l.bf16 %v492
    %v1520 = vunpack.c.h.bf16 %v492
    %v1521 = vunpack.c.l.bf16 %v493
    %v1522 = vunpack.c.h.bf16 %v493
    %v1523 = vunpack.c.l.bf16 %v494
    %v1524 = vunpack.c.h.bf16 %v494
    %v1525 = vunpack.c.l.bf16 %v495
    %v1526 = vunpack.c.h.bf16 %v495
    %v1527 = vunpack.c.l.bf16 %v496
    %v1528 = vunpack.c.h.bf16 %v496
    %v1529 = vunpack.c.l.bf16 %v497
    %v1530 = vunpack.c.h.bf16 %v497
    %v1531 = vunpack.c.l.bf16 %v498
    %v1532 = vunpack.c.h.bf16 %v498
    %v1533 = vunpack.c.l.bf16 %v499
    %v1534 = vunpack.c.h.bf16 %v499
    %v1535 = vunpack.c.l.bf16 %v500
    %v1536 = vunpack.c.h.bf16 %v500
    %v1537 = vunpack.c.l.bf16 %v501
    %v1538 = vunpack.c.h.bf16 %v501
    %v1539 = vunpack.c.l.bf16 %v502
    %v1540 = vunpack.c.h.bf16 %v502
    %v1541 = vunpack.c.l.bf16 %v503
    %v1542 = vunpack.c.h.bf16 %v503
    %v1543 = vunpack.c.l.bf16 %v504
    %v1544 = vunpack.c.h.bf16 %v504
    %v1545 = vunpack.c.l.bf16 %v505
    %v1546 = vunpack.c.h.bf16 %v505
    %v1547 = vunpack.c.l.bf16 %v506
    %v1548 = vunpack.c.h.bf16 %v506
    %v1549 = vunpack.c.l.bf16 %v507
    %v1550 = vunpack.c.h.bf16 %v507
    %v1551 = vunpack.c.l.bf16 %v508
    %v1552 = vunpack.c.h.bf16 %v508
    %v1553 = vunpack.c.l.bf16 %v509
    %v1554 = vunpack.c.h.bf16 %v509
    %v1555 = vunpack.c.l.bf16 %v510
    %v1556 = vunpack.c.h.bf16 %v510
    %v1557 = vunpack.c.l.bf16 %v511
    %v1558 = vunpack.c.h.bf16 %v511
    %v1559 = vunpack.c.l.bf16 %v512
    %v1560 = vunpack.c.h.bf16 %v512
    %v1561 = vunpack.c.l.bf16 %v513
    %v1562 = vunpack.c.h.bf16 %v513
    %v1563 = vunpack.c.l.bf16 %v514
    %v1564 = vunpack.c.h.bf16 %v514
    %v1565 = vunpack.c.l.bf16 %v515
    %v1566 = vunpack.c.h.bf16 %v515
    %v1567 = vunpack.c.l.bf16 %v516
    %v1568 = vunpack.c.h.bf16 %v516
    %v1569 = vunpack.c.l.bf16 %v517
    %v1570 = vunpack.c.h.bf16 %v517
    %v1571 = vunpack.c.l.bf16 %v518
    %v1572 = vunpack.c.h.bf16 %v518
    %v1573 = vunpack.c.l.bf16 %v519
    %v1574 = vunpack.c.h.bf16 %v519
    %v1575 = vunpack.c.l.bf16 %v520
    %v1576 = vunpack.c.h.bf16 %v520
    %v1577 = vunpack.c.l.bf16 %v521
    %v1578 = vunpack.c.h.bf16 %v521
    %v1579 = vunpack.c.l.bf16 %v522
    %v1580 = vunpack.c.h.bf16 %v522
    %v1581 = vunpack.c.l.bf16 %v523
    %v1582 = vunpack.c.h.bf16 %v523
    %v1583 = vunpack.c.l.bf16 %v524
    %v1584 = vunpack.c.h.bf16 %v524
    %v1585 = vunpack.c.l.bf16 %v525
    %v1586 = vunpack.c.h.bf16 %v525
    %v1587 = vunpack.c.l.bf16 %v526
    %v1588 = vunpack.c.h.bf16 %v526
    %v1589 = vunpack.c.l.bf16 %v527
    %v1590 = vunpack.c.h.bf16 %v527
    %v1591 = vunpack.c.l.bf16 %v528
    %v1592 = vunpack.c.h.bf16 %v528
    %v1593 = vunpack.c.l.bf16 %v529
    %v1594 = vunpack.c.h.bf16 %v529
    %v1595 = vunpack.c.l.bf16 %v530
    %v1596 = vunpack.c.h.bf16 %v530
    %v1597 = vunpack.c.l.bf16 %v531
    %v1598 = vunpack.c.h.bf16 %v531
    %v1599 = vunpack.c.l.bf16 %v532
    %v1600 = vunpack.c.h.bf16 %v532
    %v1601 = vunpack.c.l.bf16 %v533
    %v1602 = vunpack.c.h.bf16 %v533
    %v1603 = vunpack.c.l.bf16 %v534
    %v1604 = vunpack.c.h.bf16 %v534
    %v1605 = vunpack.c.l.bf16 %v535
    %v1606 = vunpack.c.h.bf16 %v535
    %v1607 = vunpack.c.l.bf16 %v536
    %v1608 = vunpack.c.h.bf16 %v536
    %v1609 = vunpack.c.l.bf16 %v537
    %v1610 = vunpack.c.h.bf16 %v537
    %v1611 = vunpack.c.l.bf16 %v538
    %v1612 = vunpack.c.h.bf16 %v538
    %v1613 = vunpack.c.l.bf16 %v539
    %v1614 = vunpack.c.h.bf16 %v539
    %v1615 = vunpack.c.l.bf16 %v540
    %v1616 = vunpack.c.h.bf16 %v540
    %v1617 = vunpack.c.l.bf16 %v541
    %v1618 = vunpack.c.h.bf16 %v541
    %v1619 = vunpack.c.l.bf16 %v542
    %v1620 = vunpack.c.h.bf16 %v542
    %v1621 = vunpack.c.l.bf16 %v543
    %v1622 = vunpack.c.h.bf16 %v543
    %v1623 = vunpack.c.l.bf16 %v544
    %v1624 = vunpack.c.h.bf16 %v544
    %v1625 = vunpack.c.l.bf16 %v545
    %v1626 = vunpack.c.h.bf16 %v545
    %v1627 = vunpack.c.l.bf16 %v546
    %v1628 = vunpack.c.h.bf16 %v546
    %v1629 = vunpack.c.l.bf16 %v547
    %v1630 = vunpack.c.h.bf16 %v547
    %v1631 = vunpack.c.l.bf16 %v548
    %v1632 = vunpack.c.h.bf16 %v548
    %v1633 = vunpack.c.l.bf16 %v549
    %v1634 = vunpack.c.h.bf16 %v549
    %v1635 = vunpack.c.l.bf16 %v550
    %v1636 = vunpack.c.h.bf16 %v550
    %v1637 = vunpack.c.l.bf16 %v551
    %v1638 = vunpack.c.h.bf16 %v551
    %v1639 = vunpack.c.l.bf16 %v552
    %v1640 = vunpack.c.h.bf16 %v552
    %v1641 = vunpack.c.l.bf16 %v553
    %v1642 = vunpack.c.h.bf16 %v553
    %v1643 = vunpack.c.l.bf16 %v554
    %v1644 = vunpack.c.h.bf16 %v554
    %v1645 = vunpack.c.l.bf16 %v555
    %v1646 = vunpack.c.h.bf16 %v555
    %v1647 = vunpack.c.l.bf16 %v556
    %v1648 = vunpack.c.h.bf16 %v556
    %v1649 = vunpack.c.l.bf16 %v557
    %v1650 = vunpack.c.h.bf16 %v557
    %v1651 = vunpack.c.l.bf16 %v558
    %v1652 = vunpack.c.h.bf16 %v558
    %v1653 = vunpack.c.l.bf16 %v559
    %v1654 = vunpack.c.h.bf16 %v559
    %v1655 = vunpack.c.l.bf16 %v560
    %v1656 = vunpack.c.h.bf16 %v560
    %v1657 = vunpack.c.l.bf16 %v561
    %v1658 = vunpack.c.h.bf16 %v561
    %v1659 = vunpack.c.l.bf16 %v562
    %v1660 = vunpack.c.h.bf16 %v562
    %v1661 = vunpack.c.l.bf16 %v563
    %v1662 = vunpack.c.h.bf16 %v563
    %v1663 = vunpack.c.l.bf16 %v564
    %v1664 = vunpack.c.h.bf16 %v564
    %v1665 = vld [vmem:[%s0] sm:$0xff]
    %v1666 = vld [vmem:[%s0 + $0x8] sm:$0xff]
    %v1667 = vld [vmem:[%s0 + $0x10] sm:$0xff]
    %v1668 = vld [vmem:[%s0 + $0x18] sm:$0xff]
    %v1669 = vld [vmem:[%s0 + $0x20] sm:$0xf]
    %v1670 = vld [vmem:[%s2] sm:$0xf]
    %v1672 = vlaneseq
    %v1673 = vshrl.u32 %v1672, 7
    %v1674 = vsub.s32 0, %v1673
    %v1675 = vrot.slane %v1670, %v1674
    %v1676 = vlaneseq
    %v1677 = vshrl.u32 %v1676, 7
    %v1678 = vsub.s32 1, %v1677
    %v1679 = vrot.slane %v1670, %v1678
    %v1680 = vlaneseq
    %v1681 = vshrl.u32 %v1680, 7
    %v1682 = vsub.s32 2, %v1681
    %v1683 = vrot.slane %v1670, %v1682
    %v1684 = vlaneseq
    %v1685 = vshrl.u32 %v1684, 7
    %v1686 = vsub.s32 3, %v1685
    %v1687 = vrot.slane %v1670, %v1686
    %v1697 = vcombine.high %v1665, %v1665
    %v1699 = vunpack.c.l.s4 1983009808
    %v1700 = vunpack.c.0.s8 %v1699
    %v1701 = vlaneseq
    %v1702 = vshrl.u32 %v1701, 7
    %v1703 = vsub.s32 %v1700, %v1702
    %v1704 = vrot.slane %v1665, %v1703
    %v1706 = vunpack.c.l.s4 1983009808
    %v1707 = vunpack.c.0.s8 %v1706
    %v1708 = vlaneseq
    %v1709 = vshrl.u32 %v1708, 7
    %v1710 = vsub.s32 %v1707, %v1709
    %v1711 = vrot.slane %v1697, %v1710
    %v1712 = vcombine.high %v1704, %v1704
    %v1713 = vcombine.high %v1711, %v1711
    %v1714 = vcombine.high %v1666, %v1666
    %v1716 = vunpack.c.l.s4 1983009808
    %v1717 = vunpack.c.0.s8 %v1716
    %v1718 = vlaneseq
    %v1719 = vshrl.u32 %v1718, 7
    %v1720 = vsub.s32 %v1717, %v1719
    %v1721 = vrot.slane %v1666, %v1720
    %v1723 = vunpack.c.l.s4 1983009808
    %v1724 = vunpack.c.0.s8 %v1723
    %v1725 = vlaneseq
    %v1726 = vshrl.u32 %v1725, 7
    %v1727 = vsub.s32 %v1724, %v1726
    %v1728 = vrot.slane %v1714, %v1727
    %v1729 = vcombine.high %v1721, %v1721
    %v1730 = vcombine.high %v1728, %v1728
    %v1731 = vcombine.high %v1667, %v1667
    %v1733 = vunpack.c.l.s4 1983009808
    %v1734 = vunpack.c.0.s8 %v1733
    %v1735 = vlaneseq
    %v1736 = vshrl.u32 %v1735, 7
    %v1737 = vsub.s32 %v1734, %v1736
    %v1738 = vrot.slane %v1667, %v1737
    %v1740 = vunpack.c.l.s4 1983009808
    %v1741 = vunpack.c.0.s8 %v1740
    %v1742 = vlaneseq
    %v1743 = vshrl.u32 %v1742, 7
    %v1744 = vsub.s32 %v1741, %v1743
    %v1745 = vrot.slane %v1731, %v1744
    %v1746 = vcombine.high %v1738, %v1738
    %v1747 = vcombine.high %v1745, %v1745
    %v1748 = vcombine.high %v1668, %v1668
    %v1750 = vunpack.c.l.s4 1983009808
    %v1751 = vunpack.c.0.s8 %v1750
    %v1752 = vlaneseq
    %v1753 = vshrl.u32 %v1752, 7
    %v1754 = vsub.s32 %v1751, %v1753
    %v1755 = vrot.slane %v1668, %v1754
    %v1757 = vunpack.c.l.s4 1983009808
    %v1758 = vunpack.c.0.s8 %v1757
    %v1759 = vlaneseq
    %v1760 = vshrl.u32 %v1759, 7
    %v1761 = vsub.s32 %v1758, %v1760
    %v1762 = vrot.slane %v1748, %v1761
    %v1763 = vcombine.high %v1755, %v1755
    %v1764 = vcombine.high %v1762, %v1762
    %v1766 = vunpack.c.l.s4 1983009808
    %v1767 = vunpack.c.0.s8 %v1766
    %v1768 = vlaneseq
    %v1769 = vshrl.u32 %v1768, 7
    %v1770 = vsub.s32 %v1767, %v1769
    %v1771 = vrot.slane %v1669, %v1770
    %v1772 = vcombine.high %v1771, %v1771
    %vm1790 = vcmask 195584
    %v1791 = vsel %vm1790, %v1772, 0
    %1793 = vmatprep.subr.mxu0 %v626
    %1794 = vmatpush1.msra.mxu0 %v625
    %1795 = vmatprep.subr.mxu0 %v622
    %1796 = vmatpush1.msra.mxu0 %v621
    %1797 = vmatprep.subr.mxu0 %v618
    %1798 = vmatpush1.msra.mxu0 %v617
    %1799 = vmatprep.subr.mxu0 %v614
    %1800 = vmatpush1.msra.mxu0 %v613
    %1801 = vmatprep.subr.mxu0 %v610
    %1802 = vmatpush1.msra.mxu0 %v609
    %1803 = vmatprep.subr.mxu0 %v606
    %1804 = vmatpush1.msra.mxu0 %v605
    %1805 = vmatprep.subr.mxu0 %v602
    %1806 = vmatpush1.msra.mxu0 %v601
    %1807 = vmatprep.subr.mxu0 %v598
    %1808 = vmatpush1.msra.mxu0 %v597
    %1809 = vmatprep.subr.mxu0 %v594
    %1810 = vmatpush1.msra.mxu0 %v593
    %1811 = vmatprep.subr.mxu0 %v590
    %1812 = vmatpush1.msra.mxu0 %v589
    %1813 = vmatprep.subr.mxu0 %v586
    %1814 = vmatpush1.msra.mxu0 %v585
    %1815 = vmatprep.subr.mxu0 %v582
    %1816 = vmatpush1.msra.mxu0 %v581
    %1817 = vmatprep.subr.mxu0 %v578
    %1818 = vmatpush1.msra.mxu0 %v577
    %1819 = vmatprep.subr.mxu0 %v574
    %1820 = vmatpush1.msra.mxu0 %v573
    %1821 = vmatprep.subr.mxu0 %v570
    %1822 = vmatpush1.msra.mxu0 %v569
    %1823 = vmatprep.subr.mxu0 %v566
    %1824 = vmatpush1.msra.mxu0 %v565
    %1825 = vmatprep.subr.mxu0 %v690
    %1826 = vmatpush2.msra.mxu0 %v689
    %1827 = vmatprep.subr.mxu0 %v686
    %1828 = vmatpush2.msra.mxu0 %v685
    %1829 = vmatprep.subr.mxu0 %v682
    %1830 = vmatpush2.msra.mxu0 %v681
    %1831 = vmatprep.subr.mxu0 %v678
    %1832 = vmatpush2.msra.mxu0 %v677
    %1833 = vmatprep.subr.mxu0 %v674
    %1834 = vmatpush2.msra.mxu0 %v673
    %1835 = vmatprep.subr.mxu0 %v670
    %1836 = vmatpush2.msra.mxu0 %v669
    %1837 = vmatprep.subr.mxu0 %v666
    %1838 = vmatpush2.msra.mxu0 %v665
    %1839 = vmatprep.subr.mxu0 %v662
    %1840 = vmatpush2.msra.mxu0 %v661
    %1841 = vmatprep.subr.mxu0 %v658
    %1842 = vmatpush2.msra.mxu0 %v657
    %1843 = vmatprep.subr.mxu0 %v654
    %1844 = vmatpush2.msra.mxu0 %v653
    %1845 = vmatprep.subr.mxu0 %v650
    %1846 = vmatpush2.msra.mxu0 %v649
    %1847 = vmatprep.subr.mxu0 %v646
    %1848 = vmatpush2.msra.mxu0 %v645
    %1849 = vmatprep.subr.mxu0 %v642
    %1850 = vmatpush2.msra.mxu0 %v641
    %1851 = vmatprep.subr.mxu0 %v638
    %1852 = vmatpush2.msra.mxu0 %v637
    %1853 = vmatprep.subr.mxu0 %v634
    %1854 = vmatpush2.msra.mxu0 %v633
    %1855 = vmatprep.subr.mxu0 %v630
    %1856 = vmatpush2.msra.mxu0 %v629
    %1857 = vmatprep.mubr.f32.mxu0 %v1712
    %1858 = vmatmul.mubr.f32.gmra.mxu0 %v1704
    %v1859 = vpop.f32.mrf.mxu0
    %v1860 = vadd.f32 %v1675, %v1859
    %v1861 = vpop.f32.mrf.mxu0
    %v1862 = vadd.f32 %v1679, %v1861
    %1863 = vdwg.mxu0
    %1864 = vmatprep.subr.mxu0 %v754
    %1865 = vmatpush1.msra.mxu0 %v753
    %1866 = vmatprep.subr.mxu0 %v750
    %1867 = vmatpush1.msra.mxu0 %v749
    %1868 = vmatprep.subr.mxu0 %v746
    %1869 = vmatpush1.msra.mxu0 %v745
    %1870 = vmatprep.subr.mxu0 %v742
    %1871 = vmatpush1.msra.mxu0 %v741
    %1872 = vmatprep.subr.mxu0 %v738
    %1873 = vmatpush1.msra.mxu0 %v737
    %1874 = vmatprep.subr.mxu0 %v734
    %1875 = vmatpush1.msra.mxu0 %v733
    %1876 = vmatprep.subr.mxu0 %v730
    %1877 = vmatpush1.msra.mxu0 %v729
    %1878 = vmatprep.subr.mxu0 %v726
    %1879 = vmatpush1.msra.mxu0 %v725
    %1880 = vmatprep.subr.mxu0 %v722
    %1881 = vmatpush1.msra.mxu0 %v721
    %1882 = vmatprep.subr.mxu0 %v718
    %1883 = vmatpush1.msra.mxu0 %v717
    %1884 = vmatprep.subr.mxu0 %v714
    %1885 = vmatpush1.msra.mxu0 %v713
    %1886 = vmatprep.subr.mxu0 %v710
    %1887 = vmatpush1.msra.mxu0 %v709
    %1888 = vmatprep.subr.mxu0 %v706
    %1889 = vmatpush1.msra.mxu0 %v705
    %1890 = vmatprep.subr.mxu0 %v702
    %1891 = vmatpush1.msra.mxu0 %v701
    %1892 = vmatprep.subr.mxu0 %v698
    %1893 = vmatpush1.msra.mxu0 %v697
    %1894 = vmatprep.subr.mxu0 %v694
    %1895 = vmatpush1.msra.mxu0 %v693
    %1896 = vmatprep.subr.mxu0 %v818
    %1897 = vmatpush2.msra.mxu0 %v817
    %1898 = vmatprep.subr.mxu0 %v814
    %1899 = vmatpush2.msra.mxu0 %v813
    %1900 = vmatprep.subr.mxu0 %v810
    %1901 = vmatpush2.msra.mxu0 %v809
    %1902 = vmatprep.subr.mxu0 %v806
    %1903 = vmatpush2.msra.mxu0 %v805
    %1904 = vmatprep.subr.mxu0 %v802
    %1905 = vmatpush2.msra.mxu0 %v801
    %1906 = vmatprep.subr.mxu0 %v798
    %1907 = vmatpush2.msra.mxu0 %v797
    %1908 = vmatprep.subr.mxu0 %v794
    %1909 = vmatpush2.msra.mxu0 %v793
    %1910 = vmatprep.subr.mxu0 %v790
    %1911 = vmatpush2.msra.mxu0 %v789
    %1912 = vmatprep.subr.mxu0 %v786
    %1913 = vmatpush2.msra.mxu0 %v785
    %1914 = vmatprep.subr.mxu0 %v782
    %1915 = vmatpush2.msra.mxu0 %v781
    %1916 = vmatprep.subr.mxu0 %v778
    %1917 = vmatpush2.msra.mxu0 %v777
    %1918 = vmatprep.subr.mxu0 %v774
    %1919 = vmatpush2.msra.mxu0 %v773
    %1920 = vmatprep.subr.mxu0 %v770
    %1921 = vmatpush2.msra.mxu0 %v769
    %1922 = vmatprep.subr.mxu0 %v766
    %1923 = vmatpush2.msra.mxu0 %v765
    %1924 = vmatprep.subr.mxu0 %v762
    %1925 = vmatpush2.msra.mxu0 %v761
    %1926 = vmatprep.subr.mxu0 %v758
    %1927 = vmatpush2.msra.mxu0 %v757
    %1928 = vmatprep.mubr.f32.mxu0 %v1713
    %1929 = vmatmul.mubr.f32.gmra.mxu0 %v1711
    %v1930 = vpop.f32.mrf.mxu0
    %v1931 = vadd.f32 %v1860, %v1930
    %v1932 = vpop.f32.mrf.mxu0
    %v1933 = vadd.f32 %v1862, %v1932
    %1934 = vdwg.mxu0
    %1935 = vmatprep.subr.mxu0 %v882
    %1936 = vmatpush1.msra.mxu0 %v881
    %1937 = vmatprep.subr.mxu0 %v878
    %1938 = vmatpush1.msra.mxu0 %v877
    %1939 = vmatprep.subr.mxu0 %v874
    %1940 = vmatpush1.msra.mxu0 %v873
    %1941 = vmatprep.subr.mxu0 %v870
    %1942 = vmatpush1.msra.mxu0 %v869
    %1943 = vmatprep.subr.mxu0 %v866
    %1944 = vmatpush1.msra.mxu0 %v865
    %1945 = vmatprep.subr.mxu0 %v862
    %1946 = vmatpush1.msra.mxu0 %v861
    %1947 = vmatprep.subr.mxu0 %v858
    %1948 = vmatpush1.msra.mxu0 %v857
    %1949 = vmatprep.subr.mxu0 %v854
    %1950 = vmatpush1.msra.mxu0 %v853
    %1951 = vmatprep.subr.mxu0 %v850
    %1952 = vmatpush1.msra.mxu0 %v849
    %1953 = vmatprep.subr.mxu0 %v846
    %1954 = vmatpush1.msra.mxu0 %v845
    %1955 = vmatprep.subr.mxu0 %v842
    %1956 = vmatpush1.msra.mxu0 %v841
    %1957 = vmatprep.subr.mxu0 %v838
    %1958 = vmatpush1.msra.mxu0 %v837
    %1959 = vmatprep.subr.mxu0 %v834
    %1960 = vmatpush1.msra.mxu0 %v833
    %1961 = vmatprep.subr.mxu0 %v830
    %1962 = vmatpush1.msra.mxu0 %v829
    %1963 = vmatprep.subr.mxu0 %v826
    %1964 = vmatpush1.msra.mxu0 %v825
    %1965 = vmatprep.subr.mxu0 %v822
    %1966 = vmatpush1.msra.mxu0 %v821
    %1967 = vmatprep.subr.mxu0 %v946
    %1968 = vmatpush2.msra.mxu0 %v945
    %1969 = vmatprep.subr.mxu0 %v942
    %1970 = vmatpush2.msra.mxu0 %v941
    %1971 = vmatprep.subr.mxu0 %v938
    %1972 = vmatpush2.msra.mxu0 %v937
    %1973 = vmatprep.subr.mxu0 %v934
    %1974 = vmatpush2.msra.mxu0 %v933
    %1975 = vmatprep.subr.mxu0 %v930
    %1976 = vmatpush2.msra.mxu0 %v929
    %1977 = vmatprep.subr.mxu0 %v926
    %1978 = vmatpush2.msra.mxu0 %v925
    %1979 = vmatprep.subr.mxu0 %v922
    %1980 = vmatpush2.msra.mxu0 %v921
    %1981 = vmatprep.subr.mxu0 %v918
    %1982 = vmatpush2.msra.mxu0 %v917
    %1983 = vmatprep.subr.mxu0 %v914
    %1984 = vmatpush2.msra.mxu0 %v913
    %1985 = vmatprep.subr.mxu0 %v910
    %1986 = vmatpush2.msra.mxu0 %v909
    %1987 = vmatprep.subr.mxu0 %v906
    %1988 = vmatpush2.msra.mxu0 %v905
    %1989 = vmatprep.subr.mxu0 %v902
    %1990 = vmatpush2.msra.mxu0 %v901
    %1991 = vmatprep.subr.mxu0 %v898
    %1992 = vmatpush2.msra.mxu0 %v897
    %1993 = vmatprep.subr.mxu0 %v894
    %1994 = vmatpush2.msra.mxu0 %v893
    %1995 = vmatprep.subr.mxu0 %v890
    %1996 = vmatpush2.msra.mxu0 %v889
    %1997 = vmatprep.subr.mxu0 %v886
    %1998 = vmatpush2.msra.mxu0 %v885
    %1999 = vmatprep.mubr.f32.mxu0 %v1729
    %2000 = vmatmul.mubr.f32.gmra.mxu0 %v1721
    %v2001 = vpop.f32.mrf.mxu0
    %v2002 = vadd.f32 %v1931, %v2001
    %v2003 = vpop.f32.mrf.mxu0
    %v2004 = vadd.f32 %v1933, %v2003
    %2005 = vdwg.mxu0
    %2006 = vmatprep.subr.mxu0 %v1010
    %2007 = vmatpush1.msra.mxu0 %v1009
    %2008 = vmatprep.subr.mxu0 %v1006
    %2009 = vmatpush1.msra.mxu0 %v1005
    %2010 = vmatprep.subr.mxu0 %v1002
    %2011 = vmatpush1.msra.mxu0 %v1001
    %2012 = vmatprep.subr.mxu0 %v998
    %2013 = vmatpush1.msra.mxu0 %v997
    %2014 = vmatprep.subr.mxu0 %v994
    %2015 = vmatpush1.msra.mxu0 %v993
    %2016 = vmatprep.subr.mxu0 %v990
    %2017 = vmatpush1.msra.mxu0 %v989
    %2018 = vmatprep.subr.mxu0 %v986
    %2019 = vmatpush1.msra.mxu0 %v985
    %2020 = vmatprep.subr.mxu0 %v982
    %2021 = vmatpush1.msra.mxu0 %v981
    %2022 = vmatprep.subr.mxu0 %v978
    %2023 = vmatpush1.msra.mxu0 %v977
    %2024 = vmatprep.subr.mxu0 %v974
    %2025 = vmatpush1.msra.mxu0 %v973
    %2026 = vmatprep.subr.mxu0 %v970
    %2027 = vmatpush1.msra.mxu0 %v969
    %2028 = vmatprep.subr.mxu0 %v966
    %2029 = vmatpush1.msra.mxu0 %v965
    %2030 = vmatprep.subr.mxu0 %v962
    %2031 = vmatpush1.msra.mxu0 %v961
    %2032 = vmatprep.subr.mxu0 %v958
    %2033 = vmatpush1.msra.mxu0 %v957
    %2034 = vmatprep.subr.mxu0 %v954
    %2035 = vmatpush1.msra.mxu0 %v953
    %2036 = vmatprep.subr.mxu0 %v950
    %2037 = vmatpush1.msra.mxu0 %v949
    %2038 = vmatprep.subr.mxu0 %v1074
    %2039 = vmatpush2.msra.mxu0 %v1073
    %2040 = vmatprep.subr.mxu0 %v1070
    %2041 = vmatpush2.msra.mxu0 %v1069
    %2042 = vmatprep.subr.mxu0 %v1066
    %2043 = vmatpush2.msra.mxu0 %v1065
    %2044 = vmatprep.subr.mxu0 %v1062
    %2045 = vmatpush2.msra.mxu0 %v1061
    %2046 = vmatprep.subr.mxu0 %v1058
    %2047 = vmatpush2.msra.mxu0 %v1057
    %2048 = vmatprep.subr.mxu0 %v1054
    %2049 = vmatpush2.msra.mxu0 %v1053
    %2050 = vmatprep.subr.mxu0 %v1050
    %2051 = vmatpush2.msra.mxu0 %v1049
    %2052 = vmatprep.subr.mxu0 %v1046
    %2053 = vmatpush2.msra.mxu0 %v1045
    %2054 = vmatprep.subr.mxu0 %v1042
    %2055 = vmatpush2.msra.mxu0 %v1041
    %2056 = vmatprep.subr.mxu0 %v1038
    %2057 = vmatpush2.msra.mxu0 %v1037
    %2058 = vmatprep.subr.mxu0 %v1034
    %2059 = vmatpush2.msra.mxu0 %v1033
    %2060 = vmatprep.subr.mxu0 %v1030
    %2061 = vmatpush2.msra.mxu0 %v1029
    %2062 = vmatprep.subr.mxu0 %v1026
    %2063 = vmatpush2.msra.mxu0 %v1025
    %2064 = vmatprep.subr.mxu0 %v1022
    %2065 = vmatpush2.msra.mxu0 %v1021
    %2066 = vmatprep.subr.mxu0 %v1018
    %2067 = vmatpush2.msra.mxu0 %v1017
    %2068 = vmatprep.subr.mxu0 %v1014
    %2069 = vmatpush2.msra.mxu0 %v1013
    %2070 = vmatprep.mubr.f32.mxu0 %v1730
    %2071 = vmatmul.mubr.f32.gmra.mxu0 %v1728
    %v2072 = vpop.f32.mrf.mxu0
    %v2073 = vadd.f32 %v2002, %v2072
    %v2074 = vpop.f32.mrf.mxu0
    %v2075 = vadd.f32 %v2004, %v2074
    %2076 = vdwg.mxu0
    %2077 = vmatprep.subr.mxu0 %v1138
    %2078 = vmatpush1.msra.mxu0 %v1137
    %2079 = vmatprep.subr.mxu0 %v1134
    %2080 = vmatpush1.msra.mxu0 %v1133
    %2081 = vmatprep.subr.mxu0 %v1130
    %2082 = vmatpush1.msra.mxu0 %v1129
    %2083 = vmatprep.subr.mxu0 %v1126
    %2084 = vmatpush1.msra.mxu0 %v1125
    %2085 = vmatprep.subr.mxu0 %v1122
    %2086 = vmatpush1.msra.mxu0 %v1121
    %2087 = vmatprep.subr.mxu0 %v1118
    %2088 = vmatpush1.msra.mxu0 %v1117
    %2089 = vmatprep.subr.mxu0 %v1114
    %2090 = vmatpush1.msra.mxu0 %v1113
    %2091 = vmatprep.subr.mxu0 %v1110
    %2092 = vmatpush1.msra.mxu0 %v1109
    %2093 = vmatprep.subr.mxu0 %v1106
    %2094 = vmatpush1.msra.mxu0 %v1105
    %2095 = vmatprep.subr.mxu0 %v1102
    %2096 = vmatpush1.msra.mxu0 %v1101
    %2097 = vmatprep.subr.mxu0 %v1098
    %2098 = vmatpush1.msra.mxu0 %v1097
    %2099 = vmatprep.subr.mxu0 %v1094
    %2100 = vmatpush1.msra.mxu0 %v1093
    %2101 = vmatprep.subr.mxu0 %v1090
    %2102 = vmatpush1.msra.mxu0 %v1089
    %2103 = vmatprep.subr.mxu0 %v1086
    %2104 = vmatpush1.msra.mxu0 %v1085
    %2105 = vmatprep.subr.mxu0 %v1082
    %2106 = vmatpush1.msra.mxu0 %v1081
    %2107 = vmatprep.subr.mxu0 %v1078
    %2108 = vmatpush1.msra.mxu0 %v1077
    %2109 = vmatprep.subr.mxu0 %v1202
    %2110 = vmatpush2.msra.mxu0 %v1201
    %2111 = vmatprep.subr.mxu0 %v1198
    %2112 = vmatpush2.msra.mxu0 %v1197
    %2113 = vmatprep.subr.mxu0 %v1194
    %2114 = vmatpush2.msra.mxu0 %v1193
    %2115 = vmatprep.subr.mxu0 %v1190
    %2116 = vmatpush2.msra.mxu0 %v1189
    %2117 = vmatprep.subr.mxu0 %v1186
    %2118 = vmatpush2.msra.mxu0 %v1185
    %2119 = vmatprep.subr.mxu0 %v1182
    %2120 = vmatpush2.msra.mxu0 %v1181
    %2121 = vmatprep.subr.mxu0 %v1178
    %2122 = vmatpush2.msra.mxu0 %v1177
    %2123 = vmatprep.subr.mxu0 %v1174
    %2124 = vmatpush2.msra.mxu0 %v1173
    %2125 = vmatprep.subr.mxu0 %v1170
    %2126 = vmatpush2.msra.mxu0 %v1169
    %2127 = vmatprep.subr.mxu0 %v1166
    %2128 = vmatpush2.msra.mxu0 %v1165
    %2129 = vmatprep.subr.mxu0 %v1162
    %2130 = vmatpush2.msra.mxu0 %v1161
    %2131 = vmatprep.subr.mxu0 %v1158
    %2132 = vmatpush2.msra.mxu0 %v1157
    %2133 = vmatprep.subr.mxu0 %v1154
    %2134 = vmatpush2.msra.mxu0 %v1153
    %2135 = vmatprep.subr.mxu0 %v1150
    %2136 = vmatpush2.msra.mxu0 %v1149
    %2137 = vmatprep.subr.mxu0 %v1146
    %2138 = vmatpush2.msra.mxu0 %v1145
    %2139 = vmatprep.subr.mxu0 %v1142
    %2140 = vmatpush2.msra.mxu0 %v1141
    %2141 = vmatprep.mubr.f32.mxu0 %v1746
    %2142 = vmatmul.mubr.f32.gmra.mxu0 %v1738
    %v2143 = vpop.f32.mrf.mxu0
    %v2144 = vadd.f32 %v2073, %v2143
    %v2145 = vpop.f32.mrf.mxu0
    %v2146 = vadd.f32 %v2075, %v2145
    %2147 = vdwg.mxu0
    %2148 = vmatprep.subr.mxu0 %v1266
    %2149 = vmatpush1.msra.mxu0 %v1265
    %2150 = vmatprep.subr.mxu0 %v1262
    %2151 = vmatpush1.msra.mxu0 %v1261
    %2152 = vmatprep.subr.mxu0 %v1258
    %2153 = vmatpush1.msra.mxu0 %v1257
    %2154 = vmatprep.subr.mxu0 %v1254
    %2155 = vmatpush1.msra.mxu0 %v1253
    %2156 = vmatprep.subr.mxu0 %v1250
    %2157 = vmatpush1.msra.mxu0 %v1249
    %2158 = vmatprep.subr.mxu0 %v1246
    %2159 = vmatpush1.msra.mxu0 %v1245
    %2160 = vmatprep.subr.mxu0 %v1242
    %2161 = vmatpush1.msra.mxu0 %v1241
    %2162 = vmatprep.subr.mxu0 %v1238
    %2163 = vmatpush1.msra.mxu0 %v1237
    %2164 = vmatprep.subr.mxu0 %v1234
    %2165 = vmatpush1.msra.mxu0 %v1233
    %2166 = vmatprep.subr.mxu0 %v1230
    %2167 = vmatpush1.msra.mxu0 %v1229
    %2168 = vmatprep.subr.mxu0 %v1226
    %2169 = vmatpush1.msra.mxu0 %v1225
    %2170 = vmatprep.subr.mxu0 %v1222
    %2171 = vmatpush1.msra.mxu0 %v1221
    %2172 = vmatprep.subr.mxu0 %v1218
    %2173 = vmatpush1.msra.mxu0 %v1217
    %2174 = vmatprep.subr.mxu0 %v1214
    %2175 = vmatpush1.msra.mxu0 %v1213
    %2176 = vmatprep.subr.mxu0 %v1210
    %2177 = vmatpush1.msra.mxu0 %v1209
    %2178 = vmatprep.subr.mxu0 %v1206
    %2179 = vmatpush1.msra.mxu0 %v1205
    %2180 = vmatprep.subr.mxu0 %v1330
    %2181 = vmatpush2.msra.mxu0 %v1329
    %2182 = vmatprep.subr.mxu0 %v1326
    %2183 = vmatpush2.msra.mxu0 %v1325
    %2184 = vmatprep.subr.mxu0 %v1322
    %2185 = vmatpush2.msra.mxu0 %v1321
    %2186 = vmatprep.subr.mxu0 %v1318
    %2187 = vmatpush2.msra.mxu0 %v1317
    %2188 = vmatprep.subr.mxu0 %v1314
    %2189 = vmatpush2.msra.mxu0 %v1313
    %2190 = vmatprep.subr.mxu0 %v1310
    %2191 = vmatpush2.msra.mxu0 %v1309
    %2192 = vmatprep.subr.mxu0 %v1306
    %2193 = vmatpush2.msra.mxu0 %v1305
    %2194 = vmatprep.subr.mxu0 %v1302
    %2195 = vmatpush2.msra.mxu0 %v1301
    %2196 = vmatprep.subr.mxu0 %v1298
    %2197 = vmatpush2.msra.mxu0 %v1297
    %2198 = vmatprep.subr.mxu0 %v1294
    %2199 = vmatpush2.msra.mxu0 %v1293
    %2200 = vmatprep.subr.mxu0 %v1290
    %2201 = vmatpush2.msra.mxu0 %v1289
    %2202 = vmatprep.subr.mxu0 %v1286
    %2203 = vmatpush2.msra.mxu0 %v1285
    %2204 = vmatprep.subr.mxu0 %v1282
    %2205 = vmatpush2.msra.mxu0 %v1281
    %2206 = vmatprep.subr.mxu0 %v1278
    %2207 = vmatpush2.msra.mxu0 %v1277
    %2208 = vmatprep.subr.mxu0 %v1274
    %2209 = vmatpush2.msra.mxu0 %v1273
    %2210 = vmatprep.subr.mxu0 %v1270
    %2211 = vmatpush2.msra.mxu0 %v1269
    %2212 = vmatprep.mubr.f32.mxu0 %v1747
    %2213 = vmatmul.mubr.f32.gmra.mxu0 %v1745
    %v2214 = vpop.f32.mrf.mxu0
    %v2215 = vadd.f32 %v2144, %v2214
    %v2216 = vpop.f32.mrf.mxu0
    %v2217 = vadd.f32 %v2146, %v2216
    %2218 = vdwg.mxu0
    %2219 = vmatprep.subr.mxu0 %v1394
    %2220 = vmatpush1.msra.mxu0 %v1393
    %2221 = vmatprep.subr.mxu0 %v1390
    %2222 = vmatpush1.msra.mxu0 %v1389
    %2223 = vmatprep.subr.mxu0 %v1386
    %2224 = vmatpush1.msra.mxu0 %v1385
    %2225 = vmatprep.subr.mxu0 %v1382
    %2226 = vmatpush1.msra.mxu0 %v1381
    %2227 = vmatprep.subr.mxu0 %v1378
    %2228 = vmatpush1.msra.mxu0 %v1377
    %2229 = vmatprep.subr.mxu0 %v1374
    %2230 = vmatpush1.msra.mxu0 %v1373
    %2231 = vmatprep.subr.mxu0 %v1370
    %2232 = vmatpush1.msra.mxu0 %v1369
    %2233 = vmatprep.subr.mxu0 %v1366
    %2234 = vmatpush1.msra.mxu0 %v1365
    %2235 = vmatprep.subr.mxu0 %v1362
    %2236 = vmatpush1.msra.mxu0 %v1361
    %2237 = vmatprep.subr.mxu0 %v1358
    %2238 = vmatpush1.msra.mxu0 %v1357
    %2239 = vmatprep.subr.mxu0 %v1354
    %2240 = vmatpush1.msra.mxu0 %v1353
    %2241 = vmatprep.subr.mxu0 %v1350
    %2242 = vmatpush1.msra.mxu0 %v1349
    %2243 = vmatprep.subr.mxu0 %v1346
    %2244 = vmatpush1.msra.mxu0 %v1345
    %2245 = vmatprep.subr.mxu0 %v1342
    %2246 = vmatpush1.msra.mxu0 %v1341
    %2247 = vmatprep.subr.mxu0 %v1338
    %2248 = vmatpush1.msra.mxu0 %v1337
    %2249 = vmatprep.subr.mxu0 %v1334
    %2250 = vmatpush1.msra.mxu0 %v1333
    %2251 = vmatprep.subr.mxu0 %v1458
    %2252 = vmatpush2.msra.mxu0 %v1457
    %2253 = vmatprep.subr.mxu0 %v1454
    %2254 = vmatpush2.msra.mxu0 %v1453
    %2255 = vmatprep.subr.mxu0 %v1450
    %2256 = vmatpush2.msra.mxu0 %v1449
    %2257 = vmatprep.subr.mxu0 %v1446
    %2258 = vmatpush2.msra.mxu0 %v1445
    %2259 = vmatprep.subr.mxu0 %v1442
    %2260 = vmatpush2.msra.mxu0 %v1441
    %2261 = vmatprep.subr.mxu0 %v1438
    %2262 = vmatpush2.msra.mxu0 %v1437
    %2263 = vmatprep.subr.mxu0 %v1434
    %2264 = vmatpush2.msra.mxu0 %v1433
    %2265 = vmatprep.subr.mxu0 %v1430
    %2266 = vmatpush2.msra.mxu0 %v1429
    %2267 = vmatprep.subr.mxu0 %v1426
    %2268 = vmatpush2.msra.mxu0 %v1425
    %2269 = vmatprep.subr.mxu0 %v1422
    %2270 = vmatpush2.msra.mxu0 %v1421
    %2271 = vmatprep.subr.mxu0 %v1418
    %2272 = vmatpush2.msra.mxu0 %v1417
    %2273 = vmatprep.subr.mxu0 %v1414
    %2274 = vmatpush2.msra.mxu0 %v1413
    %2275 = vmatprep.subr.mxu0 %v1410
    %2276 = vmatpush2.msra.mxu0 %v1409
    %2277 = vmatprep.subr.mxu0 %v1406
    %2278 = vmatpush2.msra.mxu0 %v1405
    %2279 = vmatprep.subr.mxu0 %v1402
    %2280 = vmatpush2.msra.mxu0 %v1401
    %2281 = vmatprep.subr.mxu0 %v1398
    %2282 = vmatpush2.msra.mxu0 %v1397
    %2283 = vmatprep.mubr.f32.mxu0 %v1763
    %2284 = vmatmul.mubr.f32.gmra.mxu0 %v1755
    %v2285 = vpop.f32.mrf.mxu0
    %v2286 = vadd.f32 %v2215, %v2285
    %v2287 = vpop.f32.mrf.mxu0
    %v2288 = vadd.f32 %v2217, %v2287
    %2289 = vdwg.mxu0
    %2290 = vmatprep.subr.mxu0 %v1522
    %2291 = vmatpush1.msra.mxu0 %v1521
    %2292 = vmatprep.subr.mxu0 %v1518
    %2293 = vmatpush1.msra.mxu0 %v1517
    %2294 = vmatprep.subr.mxu0 %v1514
    %2295 = vmatpush1.msra.mxu0 %v1513
    %2296 = vmatprep.subr.mxu0 %v1510
    %2297 = vmatpush1.msra.mxu0 %v1509
    %2298 = vmatprep.subr.mxu0 %v1506
    %2299 = vmatpush1.msra.mxu0 %v1505
    %2300 = vmatprep.subr.mxu0 %v1502
    %2301 = vmatpush1.msra.mxu0 %v1501
    %2302 = vmatprep.subr.mxu0 %v1498
    %2303 = vmatpush1.msra.mxu0 %v1497
    %2304 = vmatprep.subr.mxu0 %v1494
    %2305 = vmatpush1.msra.mxu0 %v1493
    %2306 = vmatprep.subr.mxu0 %v1490
    %2307 = vmatpush1.msra.mxu0 %v1489
    %2308 = vmatprep.subr.mxu0 %v1486
    %2309 = vmatpush1.msra.mxu0 %v1485
    %2310 = vmatprep.subr.mxu0 %v1482
    %2311 = vmatpush1.msra.mxu0 %v1481
    %2312 = vmatprep.subr.mxu0 %v1478
    %2313 = vmatpush1.msra.mxu0 %v1477
    %2314 = vmatprep.subr.mxu0 %v1474
    %2315 = vmatpush1.msra.mxu0 %v1473
    %2316 = vmatprep.subr.mxu0 %v1470
    %2317 = vmatpush1.msra.mxu0 %v1469
    %2318 = vmatprep.subr.mxu0 %v1466
    %2319 = vmatpush1.msra.mxu0 %v1465
    %2320 = vmatprep.subr.mxu0 %v1462
    %2321 = vmatpush1.msra.mxu0 %v1461
    %2322 = vmatprep.subr.mxu0 %v1586
    %2323 = vmatpush2.msra.mxu0 %v1585
    %2324 = vmatprep.subr.mxu0 %v1582
    %2325 = vmatpush2.msra.mxu0 %v1581
    %2326 = vmatprep.subr.mxu0 %v1578
    %2327 = vmatpush2.msra.mxu0 %v1577
    %2328 = vmatprep.subr.mxu0 %v1574
    %2329 = vmatpush2.msra.mxu0 %v1573
    %2330 = vmatprep.subr.mxu0 %v1570
    %2331 = vmatpush2.msra.mxu0 %v1569
    %2332 = vmatprep.subr.mxu0 %v1566
    %2333 = vmatpush2.msra.mxu0 %v1565
    %2334 = vmatprep.subr.mxu0 %v1562
    %2335 = vmatpush2.msra.mxu0 %v1561
    %2336 = vmatprep.subr.mxu0 %v1558
    %2337 = vmatpush2.msra.mxu0 %v1557
    %2338 = vmatprep.subr.mxu0 %v1554
    %2339 = vmatpush2.msra.mxu0 %v1553
    %2340 = vmatprep.subr.mxu0 %v1550
    %2341 = vmatpush2.msra.mxu0 %v1549
    %2342 = vmatprep.subr.mxu0 %v1546
    %2343 = vmatpush2.msra.mxu0 %v1545
    %2344 = vmatprep.subr.mxu0 %v1542
    %2345 = vmatpush2.msra.mxu0 %v1541
    %2346 = vmatprep.subr.mxu0 %v1538
    %2347 = vmatpush2.msra.mxu0 %v1537
    %2348 = vmatprep.subr.mxu0 %v1534
    %2349 = vmatpush2.msra.mxu0 %v1533
    %2350 = vmatprep.subr.mxu0 %v1530
    %2351 = vmatpush2.msra.mxu0 %v1529
    %2352 = vmatprep.subr.mxu0 %v1526
    %2353 = vmatpush2.msra.mxu0 %v1525
    %2354 = vmatprep.mubr.f32.mxu0 %v1764
    %2355 = vmatmul.mubr.f32.gmra.mxu0 %v1762
    %v2356 = vpop.f32.mrf.mxu0
    %v2357 = vadd.f32 %v2286, %v2356
    %v2358 = vpop.f32.mrf.mxu0
    %v2359 = vadd.f32 %v2288, %v2358
    %2360 = vdwg.mxu0
    %2361 = vmatprep.subr.mxu0 %v1650
    %2362 = vmatpush1.msra.mxu0 %v1649
    %2363 = vmatprep.subr.mxu0 %v1646
    %2364 = vmatpush1.msra.mxu0 %v1645
    %2365 = vmatprep.subr.mxu0 %v1642
    %2366 = vmatpush1.msra.mxu0 %v1641
    %2367 = vmatprep.subr.mxu0 %v1638
    %2368 = vmatpush1.msra.mxu0 %v1637
    %2369 = vmatprep.subr.mxu0 %v1634
    %2370 = vmatpush1.msra.mxu0 %v1633
    %2371 = vmatprep.subr.mxu0 %v1630
    %2372 = vmatpush1.msra.mxu0 %v1629
    %2373 = vmatprep.subr.mxu0 %v1626
    %2374 = vmatpush1.msra.mxu0 %v1625
    %2375 = vmatprep.subr.mxu0 %v1622
    %2376 = vmatpush1.msra.mxu0 %v1621
    %2377 = vmatprep.subr.mxu0 %v1618
    %2378 = vmatpush1.msra.mxu0 %v1617
    %2379 = vmatprep.subr.mxu0 %v1614
    %2380 = vmatpush1.msra.mxu0 %v1613
    %2381 = vmatprep.subr.mxu0 %v1610
    %2382 = vmatpush1.msra.mxu0 %v1609
    %2383 = vmatprep.subr.mxu0 %v1606
    %2384 = vmatpush1.msra.mxu0 %v1605
    %2385 = vmatprep.subr.mxu0 %v1602
    %2386 = vmatpush1.msra.mxu0 %v1601
    %2387 = vmatprep.subr.mxu0 %v1598
    %2388 = vmatpush1.msra.mxu0 %v1597
    %2389 = vmatprep.subr.mxu0 %v1594
    %2390 = vmatpush1.msra.mxu0 %v1593
    %2391 = vmatprep.subr.mxu0 %v1590
    %2392 = vmatpush1.msra.mxu0 %v1589
    %2393 = vmatprep.subr.mxu0 0.0
    %2394 = vmatpush2.msra.mxu0 0.0
    %2395 = vmatprep.subr.mxu0 0.0
    %2396 = vmatpush2.msra.mxu0 0.0
    %2397 = vmatprep.subr.mxu0 0.0
    %2398 = vmatpush2.msra.mxu0 0.0
    %2399 = vmatprep.subr.mxu0 0.0
    %2400 = vmatpush2.msra.mxu0 0.0
    %2401 = vmatprep.subr.mxu0 0.0
    %2402 = vmatpush2.msra.mxu0 0.0
    %2403 = vmatprep.subr.mxu0 0.0
    %2404 = vmatpush2.msra.mxu0 0.0
    %2405 = vmatprep.subr.mxu0 0.0
    %2406 = vmatpush2.msra.mxu0 0.0
    %2407 = vmatprep.subr.mxu0 0.0
    %2408 = vmatpush2.msra.mxu0 0.0
    %2409 = vmatprep.subr.mxu0 0.0
    %2410 = vmatpush2.msra.mxu0 0.0
    %2411 = vmatprep.subr.mxu0 0.0
    %2412 = vmatpush2.msra.mxu0 0.0
    %2413 = vmatprep.subr.mxu0 0.0
    %2414 = vmatpush2.msra.mxu0 0.0
    %2415 = vmatprep.subr.mxu0 0.0
    %2416 = vmatpush2.msra.mxu0 0.0
    %2417 = vmatprep.subr.mxu0 0.0
    %2418 = vmatpush2.msra.mxu0 0.0
    %2419 = vmatprep.subr.mxu0 %v1662
    %2420 = vmatpush2.msra.mxu0 %v1661
    %2421 = vmatprep.subr.mxu0 %v1658
    %2422 = vmatpush2.msra.mxu0 %v1657
    %2423 = vmatprep.subr.mxu0 %v1654
    %2424 = vmatpush2.msra.mxu0 %v1653
    %2425 = vmatprep.mubr.f32.mxu0 %v1791
    %2426 = vmatmul.mubr.f32.gmra.mxu0 %v1771
    %v2427 = vpop.f32.mrf.mxu0
    %v2428 = vadd.f32 %v2357, %v2427
    %v2429 = vpop.f32.mrf.mxu0
    %v2430 = vadd.f32 %v2359, %v2429
    %2431 = vdwg.mxu0
    %2432 = vmatprep.subr.mxu0 %v628
    %2433 = vmatpush1.msra.mxu0 %v627
    %2434 = vmatprep.subr.mxu0 %v624
    %2435 = vmatpush1.msra.mxu0 %v623
    %2436 = vmatprep.subr.mxu0 %v620
    %2437 = vmatpush1.msra.mxu0 %v619
    %2438 = vmatprep.subr.mxu0 %v616
    %2439 = vmatpush1.msra.mxu0 %v615
    %2440 = vmatprep.subr.mxu0 %v612
    %2441 = vmatpush1.msra.mxu0 %v611
    %2442 = vmatprep.subr.mxu0 %v608
    %2443 = vmatpush1.msra.mxu0 %v607
    %2444 = vmatprep.subr.mxu0 %v604
    %2445 = vmatpush1.msra.mxu0 %v603
    %2446 = vmatprep.subr.mxu0 %v600
    %2447 = vmatpush1.msra.mxu0 %v599
    %2448 = vmatprep.subr.mxu0 %v596
    %2449 = vmatpush1.msra.mxu0 %v595
    %2450 = vmatprep.subr.mxu0 %v592
    %2451 = vmatpush1.msra.mxu0 %v591
    %2452 = vmatprep.subr.mxu0 %v588
    %2453 = vmatpush1.msra.mxu0 %v587
    %2454 = vmatprep.subr.mxu0 %v584
    %2455 = vmatpush1.msra.mxu0 %v583
    %2456 = vmatprep.subr.mxu0 %v580
    %2457 = vmatpush1.msra.mxu0 %v579
    %2458 = vmatprep.subr.mxu0 %v576
    %2459 = vmatpush1.msra.mxu0 %v575
    %2460 = vmatprep.subr.mxu0 %v572
    %2461 = vmatpush1.msra.mxu0 %v571
    %2462 = vmatprep.subr.mxu0 %v568
    %2463 = vmatpush1.msra.mxu0 %v567
    %2464 = vmatprep.subr.mxu0 %v692
    %2465 = vmatpush2.msra.mxu0 %v691
    %2466 = vmatprep.subr.mxu0 %v688
    %2467 = vmatpush2.msra.mxu0 %v687
    %2468 = vmatprep.subr.mxu0 %v684
    %2469 = vmatpush2.msra.mxu0 %v683
    %2470 = vmatprep.subr.mxu0 %v680
    %2471 = vmatpush2.msra.mxu0 %v679
    %2472 = vmatprep.subr.mxu0 %v676
    %2473 = vmatpush2.msra.mxu0 %v675
    %2474 = vmatprep.subr.mxu0 %v672
    %2475 = vmatpush2.msra.mxu0 %v671
    %2476 = vmatprep.subr.mxu0 %v668
    %2477 = vmatpush2.msra.mxu0 %v667
    %2478 = vmatprep.subr.mxu0 %v664
    %2479 = vmatpush2.msra.mxu0 %v663
    %2480 = vmatprep.subr.mxu0 %v660
    %2481 = vmatpush2.msra.mxu0 %v659
    %2482 = vmatprep.subr.mxu0 %v656
    %2483 = vmatpush2.msra.mxu0 %v655
    %2484 = vmatprep.subr.mxu0 %v652
    %2485 = vmatpush2.msra.mxu0 %v651
    %2486 = vmatprep.subr.mxu0 %v648
    %2487 = vmatpush2.msra.mxu0 %v647
    %2488 = vmatprep.subr.mxu0 %v644
    %2489 = vmatpush2.msra.mxu0 %v643
    %2490 = vmatprep.subr.mxu0 %v640
    %2491 = vmatpush2.msra.mxu0 %v639
    %2492 = vmatprep.subr.mxu0 %v636
    %2493 = vmatpush2.msra.mxu0 %v635
    %2494 = vmatprep.subr.mxu0 %v632
    %2495 = vmatpush2.msra.mxu0 %v631
    %2496 = vmatprep.mubr.f32.mxu0 %v1712
    %2497 = vmatmul.mubr.f32.gmra.mxu0 %v1704
    %v2498 = vpop.f32.mrf.mxu0
    %v2499 = vadd.f32 %v1683, %v2498
    %v2500 = vpop.f32.mrf.mxu0
    %v2501 = vadd.f32 %v1687, %v2500
    %2502 = vdwg.mxu0
    %2503 = vmatprep.subr.mxu0 %v756
    %2504 = vmatpush1.msra.mxu0 %v755
    %2505 = vmatprep.subr.mxu0 %v752
    %2506 = vmatpush1.msra.mxu0 %v751
    %2507 = vmatprep.subr.mxu0 %v748
    %2508 = vmatpush1.msra.mxu0 %v747
    %2509 = vmatprep.subr.mxu0 %v744
    %2510 = vmatpush1.msra.mxu0 %v743
    %2511 = vmatprep.subr.mxu0 %v740
    %2512 = vmatpush1.msra.mxu0 %v739
    %2513 = vmatprep.subr.mxu0 %v736
    %2514 = vmatpush1.msra.mxu0 %v735
    %2515 = vmatprep.subr.mxu0 %v732
    %2516 = vmatpush1.msra.mxu0 %v731
    %2517 = vmatprep.subr.mxu0 %v728
    %2518 = vmatpush1.msra.mxu0 %v727
    %2519 = vmatprep.subr.mxu0 %v724
    %2520 = vmatpush1.msra.mxu0 %v723
    %2521 = vmatprep.subr.mxu0 %v720
    %2522 = vmatpush1.msra.mxu0 %v719
    %2523 = vmatprep.subr.mxu0 %v716
    %2524 = vmatpush1.msra.mxu0 %v715
    %2525 = vmatprep.subr.mxu0 %v712
    %2526 = vmatpush1.msra.mxu0 %v711
    %2527 = vmatprep.subr.mxu0 %v708
    %2528 = vmatpush1.msra.mxu0 %v707
    %2529 = vmatprep.subr.mxu0 %v704
    %2530 = vmatpush1.msra.mxu0 %v703
    %2531 = vmatprep.subr.mxu0 %v700
    %2532 = vmatpush1.msra.mxu0 %v699
    %2533 = vmatprep.subr.mxu0 %v696
    %2534 = vmatpush1.msra.mxu0 %v695
    %2535 = vmatprep.subr.mxu0 %v820
    %2536 = vmatpush2.msra.mxu0 %v819
    %2537 = vmatprep.subr.mxu0 %v816
    %2538 = vmatpush2.msra.mxu0 %v815
    %2539 = vmatprep.subr.mxu0 %v812
    %2540 = vmatpush2.msra.mxu0 %v811
    %2541 = vmatprep.subr.mxu0 %v808
    %2542 = vmatpush2.msra.mxu0 %v807
    %2543 = vmatprep.subr.mxu0 %v804
    %2544 = vmatpush2.msra.mxu0 %v803
    %2545 = vmatprep.subr.mxu0 %v800
    %2546 = vmatpush2.msra.mxu0 %v799
    %2547 = vmatprep.subr.mxu0 %v796
    %2548 = vmatpush2.msra.mxu0 %v795
    %2549 = vmatprep.subr.mxu0 %v792
    %2550 = vmatpush2.msra.mxu0 %v791
    %2551 = vmatprep.subr.mxu0 %v788
    %2552 = vmatpush2.msra.mxu0 %v787
    %2553 = vmatprep.subr.mxu0 %v784
    %2554 = vmatpush2.msra.mxu0 %v783
    %2555 = vmatprep.subr.mxu0 %v780
    %2556 = vmatpush2.msra.mxu0 %v779
    %2557 = vmatprep.subr.mxu0 %v776
    %2558 = vmatpush2.msra.mxu0 %v775
    %2559 = vmatprep.subr.mxu0 %v772
    %2560 = vmatpush2.msra.mxu0 %v771
    %2561 = vmatprep.subr.mxu0 %v768
    %2562 = vmatpush2.msra.mxu0 %v767
    %2563 = vmatprep.subr.mxu0 %v764
    %2564 = vmatpush2.msra.mxu0 %v763
    %2565 = vmatprep.subr.mxu0 %v760
    %2566 = vmatpush2.msra.mxu0 %v759
    %2567 = vmatprep.mubr.f32.mxu0 %v1713
    %2568 = vmatmul.mubr.f32.gmra.mxu0 %v1711
    %v2569 = vpop.f32.mrf.mxu0
    %v2570 = vadd.f32 %v2499, %v2569
    %v2571 = vpop.f32.mrf.mxu0
    %v2572 = vadd.f32 %v2501, %v2571
    %2573 = vdwg.mxu0
    %2574 = vmatprep.subr.mxu0 %v884
    %2575 = vmatpush1.msra.mxu0 %v883
    %2576 = vmatprep.subr.mxu0 %v880
    %2577 = vmatpush1.msra.mxu0 %v879
    %2578 = vmatprep.subr.mxu0 %v876
    %2579 = vmatpush1.msra.mxu0 %v875
    %2580 = vmatprep.subr.mxu0 %v872
    %2581 = vmatpush1.msra.mxu0 %v871
    %2582 = vmatprep.subr.mxu0 %v868
    %2583 = vmatpush1.msra.mxu0 %v867
    %2584 = vmatprep.subr.mxu0 %v864
    %2585 = vmatpush1.msra.mxu0 %v863
    %2586 = vmatprep.subr.mxu0 %v860
    %2587 = vmatpush1.msra.mxu0 %v859
    %2588 = vmatprep.subr.mxu0 %v856
    %2589 = vmatpush1.msra.mxu0 %v855
    %2590 = vmatprep.subr.mxu0 %v852
    %2591 = vmatpush1.msra.mxu0 %v851
    %2592 = vmatprep.subr.mxu0 %v848
    %2593 = vmatpush1.msra.mxu0 %v847
    %2594 = vmatprep.subr.mxu0 %v844
    %2595 = vmatpush1.msra.mxu0 %v843
    %2596 = vmatprep.subr.mxu0 %v840
    %2597 = vmatpush1.msra.mxu0 %v839
    %2598 = vmatprep.subr.mxu0 %v836
    %2599 = vmatpush1.msra.mxu0 %v835
    %2600 = vmatprep.subr.mxu0 %v832
    %2601 = vmatpush1.msra.mxu0 %v831
    %2602 = vmatprep.subr.mxu0 %v828
    %2603 = vmatpush1.msra.mxu0 %v827
    %2604 = vmatprep.subr.mxu0 %v824
    %2605 = vmatpush1.msra.mxu0 %v823
    %2606 = vmatprep.subr.mxu0 %v948
    %2607 = vmatpush2.msra.mxu0 %v947
    %2608 = vmatprep.subr.mxu0 %v944
    %2609 = vmatpush2.msra.mxu0 %v943
    %2610 = vmatprep.subr.mxu0 %v940
    %2611 = vmatpush2.msra.mxu0 %v939
    %2612 = vmatprep.subr.mxu0 %v936
    %2613 = vmatpush2.msra.mxu0 %v935
    %2614 = vmatprep.subr.mxu0 %v932
    %2615 = vmatpush2.msra.mxu0 %v931
    %2616 = vmatprep.subr.mxu0 %v928
    %2617 = vmatpush2.msra.mxu0 %v927
    %2618 = vmatprep.subr.mxu0 %v924
    %2619 = vmatpush2.msra.mxu0 %v923
    %2620 = vmatprep.subr.mxu0 %v920
    %2621 = vmatpush2.msra.mxu0 %v919
    %2622 = vmatprep.subr.mxu0 %v916
    %2623 = vmatpush2.msra.mxu0 %v915
    %2624 = vmatprep.subr.mxu0 %v912
    %2625 = vmatpush2.msra.mxu0 %v911
    %2626 = vmatprep.subr.mxu0 %v908
    %2627 = vmatpush2.msra.mxu0 %v907
    %2628 = vmatprep.subr.mxu0 %v904
    %2629 = vmatpush2.msra.mxu0 %v903
    %2630 = vmatprep.subr.mxu0 %v900
    %2631 = vmatpush2.msra.mxu0 %v899
    %2632 = vmatprep.subr.mxu0 %v896
    %2633 = vmatpush2.msra.mxu0 %v895
    %2634 = vmatprep.subr.mxu0 %v892
    %2635 = vmatpush2.msra.mxu0 %v891
    %2636 = vmatprep.subr.mxu0 %v888
    %2637 = vmatpush2.msra.mxu0 %v887
    %2638 = vmatprep.mubr.f32.mxu0 %v1729
    %2639 = vmatmul.mubr.f32.gmra.mxu0 %v1721
    %v2640 = vpop.f32.mrf.mxu0
    %v2641 = vadd.f32 %v2570, %v2640
    %v2642 = vpop.f32.mrf.mxu0
    %v2643 = vadd.f32 %v2572, %v2642
    %2644 = vdwg.mxu0
    %2645 = vmatprep.subr.mxu0 %v1012
    %2646 = vmatpush1.msra.mxu0 %v1011
    %2647 = vmatprep.subr.mxu0 %v1008
    %2648 = vmatpush1.msra.mxu0 %v1007
    %2649 = vmatprep.subr.mxu0 %v1004
    %2650 = vmatpush1.msra.mxu0 %v1003
    %2651 = vmatprep.subr.mxu0 %v1000
    %2652 = vmatpush1.msra.mxu0 %v999
    %2653 = vmatprep.subr.mxu0 %v996
    %2654 = vmatpush1.msra.mxu0 %v995
    %2655 = vmatprep.subr.mxu0 %v992
    %2656 = vmatpush1.msra.mxu0 %v991
    %2657 = vmatprep.subr.mxu0 %v988
    %2658 = vmatpush1.msra.mxu0 %v987
    %2659 = vmatprep.subr.mxu0 %v984
    %2660 = vmatpush1.msra.mxu0 %v983
    %2661 = vmatprep.subr.mxu0 %v980
    %2662 = vmatpush1.msra.mxu0 %v979
    %2663 = vmatprep.subr.mxu0 %v976
    %2664 = vmatpush1.msra.mxu0 %v975
    %2665 = vmatprep.subr.mxu0 %v972
    %2666 = vmatpush1.msra.mxu0 %v971
    %2667 = vmatprep.subr.mxu0 %v968
    %2668 = vmatpush1.msra.mxu0 %v967
    %2669 = vmatprep.subr.mxu0 %v964
    %2670 = vmatpush1.msra.mxu0 %v963
    %2671 = vmatprep.subr.mxu0 %v960
    %2672 = vmatpush1.msra.mxu0 %v959
    %2673 = vmatprep.subr.mxu0 %v956
    %2674 = vmatpush1.msra.mxu0 %v955
    %2675 = vmatprep.subr.mxu0 %v952
    %2676 = vmatpush1.msra.mxu0 %v951
    %2677 = vmatprep.subr.mxu0 %v1076
    %2678 = vmatpush2.msra.mxu0 %v1075
    %2679 = vmatprep.subr.mxu0 %v1072
    %2680 = vmatpush2.msra.mxu0 %v1071
    %2681 = vmatprep.subr.mxu0 %v1068
    %2682 = vmatpush2.msra.mxu0 %v1067
    %2683 = vmatprep.subr.mxu0 %v1064
    %2684 = vmatpush2.msra.mxu0 %v1063
    %2685 = vmatprep.subr.mxu0 %v1060
    %2686 = vmatpush2.msra.mxu0 %v1059
    %2687 = vmatprep.subr.mxu0 %v1056
    %2688 = vmatpush2.msra.mxu0 %v1055
    %2689 = vmatprep.subr.mxu0 %v1052
    %2690 = vmatpush2.msra.mxu0 %v1051
    %2691 = vmatprep.subr.mxu0 %v1048
    %2692 = vmatpush2.msra.mxu0 %v1047
    %2693 = vmatprep.subr.mxu0 %v1044
    %2694 = vmatpush2.msra.mxu0 %v1043
    %2695 = vmatprep.subr.mxu0 %v1040
    %2696 = vmatpush2.msra.mxu0 %v1039
    %2697 = vmatprep.subr.mxu0 %v1036
    %2698 = vmatpush2.msra.mxu0 %v1035
    %2699 = vmatprep.subr.mxu0 %v1032
    %2700 = vmatpush2.msra.mxu0 %v1031
    %2701 = vmatprep.subr.mxu0 %v1028
    %2702 = vmatpush2.msra.mxu0 %v1027
    %2703 = vmatprep.subr.mxu0 %v1024
    %2704 = vmatpush2.msra.mxu0 %v1023
    %2705 = vmatprep.subr.mxu0 %v1020
    %2706 = vmatpush2.msra.mxu0 %v1019
    %2707 = vmatprep.subr.mxu0 %v1016
    %2708 = vmatpush2.msra.mxu0 %v1015
    %2709 = vmatprep.mubr.f32.mxu0 %v1730
    %2710 = vmatmul.mubr.f32.gmra.mxu0 %v1728
    %v2711 = vpop.f32.mrf.mxu0
    %v2712 = vadd.f32 %v2641, %v2711
    %v2713 = vpop.f32.mrf.mxu0
    %v2714 = vadd.f32 %v2643, %v2713
    %2715 = vdwg.mxu0
    %2716 = vmatprep.subr.mxu0 %v1140
    %2717 = vmatpush1.msra.mxu0 %v1139
    %2718 = vmatprep.subr.mxu0 %v1136
    %2719 = vmatpush1.msra.mxu0 %v1135
    %2720 = vmatprep.subr.mxu0 %v1132
    %2721 = vmatpush1.msra.mxu0 %v1131
    %2722 = vmatprep.subr.mxu0 %v1128
    %2723 = vmatpush1.msra.mxu0 %v1127
    %2724 = vmatprep.subr.mxu0 %v1124
    %2725 = vmatpush1.msra.mxu0 %v1123
    %2726 = vmatprep.subr.mxu0 %v1120
    %2727 = vmatpush1.msra.mxu0 %v1119
    %2728 = vmatprep.subr.mxu0 %v1116
    %2729 = vmatpush1.msra.mxu0 %v1115
    %2730 = vmatprep.subr.mxu0 %v1112
    %2731 = vmatpush1.msra.mxu0 %v1111
    %2732 = vmatprep.subr.mxu0 %v1108
    %2733 = vmatpush1.msra.mxu0 %v1107
    %2734 = vmatprep.subr.mxu0 %v1104
    %2735 = vmatpush1.msra.mxu0 %v1103
    %2736 = vmatprep.subr.mxu0 %v1100
    %2737 = vmatpush1.msra.mxu0 %v1099
    %2738 = vmatprep.subr.mxu0 %v1096
    %2739 = vmatpush1.msra.mxu0 %v1095
    %2740 = vmatprep.subr.mxu0 %v1092
    %2741 = vmatpush1.msra.mxu0 %v1091
    %2742 = vmatprep.subr.mxu0 %v1088
    %2743 = vmatpush1.msra.mxu0 %v1087
    %2744 = vmatprep.subr.mxu0 %v1084
    %2745 = vmatpush1.msra.mxu0 %v1083
    %2746 = vmatprep.subr.mxu0 %v1080
    %2747 = vmatpush1.msra.mxu0 %v1079
    %2748 = vmatprep.subr.mxu0 %v1204
    %2749 = vmatpush2.msra.mxu0 %v1203
    %2750 = vmatprep.subr.mxu0 %v1200
    %2751 = vmatpush2.msra.mxu0 %v1199
    %2752 = vmatprep.subr.mxu0 %v1196
    %2753 = vmatpush2.msra.mxu0 %v1195
    %2754 = vmatprep.subr.mxu0 %v1192
    %2755 = vmatpush2.msra.mxu0 %v1191
    %2756 = vmatprep.subr.mxu0 %v1188
    %2757 = vmatpush2.msra.mxu0 %v1187
    %2758 = vmatprep.subr.mxu0 %v1184
    %2759 = vmatpush2.msra.mxu0 %v1183
    %2760 = vmatprep.subr.mxu0 %v1180
    %2761 = vmatpush2.msra.mxu0 %v1179
    %2762 = vmatprep.subr.mxu0 %v1176
    %2763 = vmatpush2.msra.mxu0 %v1175
    %2764 = vmatprep.subr.mxu0 %v1172
    %2765 = vmatpush2.msra.mxu0 %v1171
    %2766 = vmatprep.subr.mxu0 %v1168
    %2767 = vmatpush2.msra.mxu0 %v1167
    %2768 = vmatprep.subr.mxu0 %v1164
    %2769 = vmatpush2.msra.mxu0 %v1163
    %2770 = vmatprep.subr.mxu0 %v1160
    %2771 = vmatpush2.msra.mxu0 %v1159
    %2772 = vmatprep.subr.mxu0 %v1156
    %2773 = vmatpush2.msra.mxu0 %v1155
    %2774 = vmatprep.subr.mxu0 %v1152
    %2775 = vmatpush2.msra.mxu0 %v1151
    %2776 = vmatprep.subr.mxu0 %v1148
    %2777 = vmatpush2.msra.mxu0 %v1147
    %2778 = vmatprep.subr.mxu0 %v1144
    %2779 = vmatpush2.msra.mxu0 %v1143
    %2780 = vmatprep.mubr.f32.mxu0 %v1746
    %2781 = vmatmul.mubr.f32.gmra.mxu0 %v1738
    %v2782 = vpop.f32.mrf.mxu0
    %v2783 = vadd.f32 %v2712, %v2782
    %v2784 = vpop.f32.mrf.mxu0
    %v2785 = vadd.f32 %v2714, %v2784
    %2786 = vdwg.mxu0
    %2787 = vmatprep.subr.mxu0 %v1268
    %2788 = vmatpush1.msra.mxu0 %v1267
    %2789 = vmatprep.subr.mxu0 %v1264
    %2790 = vmatpush1.msra.mxu0 %v1263
    %2791 = vmatprep.subr.mxu0 %v1260
    %2792 = vmatpush1.msra.mxu0 %v1259
    %2793 = vmatprep.subr.mxu0 %v1256
    %2794 = vmatpush1.msra.mxu0 %v1255
    %2795 = vmatprep.subr.mxu0 %v1252
    %2796 = vmatpush1.msra.mxu0 %v1251
    %2797 = vmatprep.subr.mxu0 %v1248
    %2798 = vmatpush1.msra.mxu0 %v1247
    %2799 = vmatprep.subr.mxu0 %v1244
    %2800 = vmatpush1.msra.mxu0 %v1243
    %2801 = vmatprep.subr.mxu0 %v1240
    %2802 = vmatpush1.msra.mxu0 %v1239
    %2803 = vmatprep.subr.mxu0 %v1236
    %2804 = vmatpush1.msra.mxu0 %v1235
    %2805 = vmatprep.subr.mxu0 %v1232
    %2806 = vmatpush1.msra.mxu0 %v1231
    %2807 = vmatprep.subr.mxu0 %v1228
    %2808 = vmatpush1.msra.mxu0 %v1227
    %2809 = vmatprep.subr.mxu0 %v1224
    %2810 = vmatpush1.msra.mxu0 %v1223
    %2811 = vmatprep.subr.mxu0 %v1220
    %2812 = vmatpush1.msra.mxu0 %v1219
    %2813 = vmatprep.subr.mxu0 %v1216
    %2814 = vmatpush1.msra.mxu0 %v1215
    %2815 = vmatprep.subr.mxu0 %v1212
    %2816 = vmatpush1.msra.mxu0 %v1211
    %2817 = vmatprep.subr.mxu0 %v1208
    %2818 = vmatpush1.msra.mxu0 %v1207
    %2819 = vmatprep.subr.mxu0 %v1332
    %2820 = vmatpush2.msra.mxu0 %v1331
    %2821 = vmatprep.subr.mxu0 %v1328
    %2822 = vmatpush2.msra.mxu0 %v1327
    %2823 = vmatprep.subr.mxu0 %v1324
    %2824 = vmatpush2.msra.mxu0 %v1323
    %2825 = vmatprep.subr.mxu0 %v1320
    %2826 = vmatpush2.msra.mxu0 %v1319
    %2827 = vmatprep.subr.mxu0 %v1316
    %2828 = vmatpush2.msra.mxu0 %v1315
    %2829 = vmatprep.subr.mxu0 %v1312
    %2830 = vmatpush2.msra.mxu0 %v1311
    %2831 = vmatprep.subr.mxu0 %v1308
    %2832 = vmatpush2.msra.mxu0 %v1307
    %2833 = vmatprep.subr.mxu0 %v1304
    %2834 = vmatpush2.msra.mxu0 %v1303
    %2835 = vmatprep.subr.mxu0 %v1300
    %2836 = vmatpush2.msra.mxu0 %v1299
    %2837 = vmatprep.subr.mxu0 %v1296
    %2838 = vmatpush2.msra.mxu0 %v1295
    %2839 = vmatprep.subr.mxu0 %v1292
    %2840 = vmatpush2.msra.mxu0 %v1291
    %2841 = vmatprep.subr.mxu0 %v1288
    %2842 = vmatpush2.msra.mxu0 %v1287
    %2843 = vmatprep.subr.mxu0 %v1284
    %2844 = vmatpush2.msra.mxu0 %v1283
    %2845 = vmatprep.subr.mxu0 %v1280
    %2846 = vmatpush2.msra.mxu0 %v1279
    %2847 = vmatprep.subr.mxu0 %v1276
    %2848 = vmatpush2.msra.mxu0 %v1275
    %2849 = vmatprep.subr.mxu0 %v1272
    %2850 = vmatpush2.msra.mxu0 %v1271
    %2851 = vmatprep.mubr.f32.mxu0 %v1747
    %2852 = vmatmul.mubr.f32.gmra.mxu0 %v1745
    %v2853 = vpop.f32.mrf.mxu0
    %v2854 = vadd.f32 %v2783, %v2853
    %v2855 = vpop.f32.mrf.mxu0
    %v2856 = vadd.f32 %v2785, %v2855
    %2857 = vdwg.mxu0
    %2858 = vmatprep.subr.mxu0 %v1396
    %2859 = vmatpush1.msra.mxu0 %v1395
    %2860 = vmatprep.subr.mxu0 %v1392
    %2861 = vmatpush1.msra.mxu0 %v1391
    %2862 = vmatprep.subr.mxu0 %v1388
    %2863 = vmatpush1.msra.mxu0 %v1387
    %2864 = vmatprep.subr.mxu0 %v1384
    %2865 = vmatpush1.msra.mxu0 %v1383
    %2866 = vmatprep.subr.mxu0 %v1380
    %2867 = vmatpush1.msra.mxu0 %v1379
    %2868 = vmatprep.subr.mxu0 %v1376
    %2869 = vmatpush1.msra.mxu0 %v1375
    %2870 = vmatprep.subr.mxu0 %v1372
    %2871 = vmatpush1.msra.mxu0 %v1371
    %2872 = vmatprep.subr.mxu0 %v1368
    %2873 = vmatpush1.msra.mxu0 %v1367
    %2874 = vmatprep.subr.mxu0 %v1364
    %2875 = vmatpush1.msra.mxu0 %v1363
    %2876 = vmatprep.subr.mxu0 %v1360
    %2877 = vmatpush1.msra.mxu0 %v1359
    %2878 = vmatprep.subr.mxu0 %v1356
    %2879 = vmatpush1.msra.mxu0 %v1355
    %2880 = vmatprep.subr.mxu0 %v1352
    %2881 = vmatpush1.msra.mxu0 %v1351
    %2882 = vmatprep.subr.mxu0 %v1348
    %2883 = vmatpush1.msra.mxu0 %v1347
    %2884 = vmatprep.subr.mxu0 %v1344
    %2885 = vmatpush1.msra.mxu0 %v1343
    %2886 = vmatprep.subr.mxu0 %v1340
    %2887 = vmatpush1.msra.mxu0 %v1339
    %2888 = vmatprep.subr.mxu0 %v1336
    %2889 = vmatpush1.msra.mxu0 %v1335
    %2890 = vmatprep.subr.mxu0 %v1460
    %2891 = vmatpush2.msra.mxu0 %v1459
    %2892 = vmatprep.subr.mxu0 %v1456
    %2893 = vmatpush2.msra.mxu0 %v1455
    %2894 = vmatprep.subr.mxu0 %v1452
    %2895 = vmatpush2.msra.mxu0 %v1451
    %2896 = vmatprep.subr.mxu0 %v1448
    %2897 = vmatpush2.msra.mxu0 %v1447
    %2898 = vmatprep.subr.mxu0 %v1444
    %2899 = vmatpush2.msra.mxu0 %v1443
    %2900 = vmatprep.subr.mxu0 %v1440
    %2901 = vmatpush2.msra.mxu0 %v1439
    %2902 = vmatprep.subr.mxu0 %v1436
    %2903 = vmatpush2.msra.mxu0 %v1435
    %2904 = vmatprep.subr.mxu0 %v1432
    %2905 = vmatpush2.msra.mxu0 %v1431
    %2906 = vmatprep.subr.mxu0 %v1428
    %2907 = vmatpush2.msra.mxu0 %v1427
    %2908 = vmatprep.subr.mxu0 %v1424
    %2909 = vmatpush2.msra.mxu0 %v1423
    %2910 = vmatprep.subr.mxu0 %v1420
    %2911 = vmatpush2.msra.mxu0 %v1419
    %2912 = vmatprep.subr.mxu0 %v1416
    %2913 = vmatpush2.msra.mxu0 %v1415
    %2914 = vmatprep.subr.mxu0 %v1412
    %2915 = vmatpush2.msra.mxu0 %v1411
    %2916 = vmatprep.subr.mxu0 %v1408
    %2917 = vmatpush2.msra.mxu0 %v1407
    %2918 = vmatprep.subr.mxu0 %v1404
    %2919 = vmatpush2.msra.mxu0 %v1403
    %2920 = vmatprep.subr.mxu0 %v1400
    %2921 = vmatpush2.msra.mxu0 %v1399
    %2922 = vmatprep.mubr.f32.mxu0 %v1763
    %2923 = vmatmul.mubr.f32.gmra.mxu0 %v1755
    %v2924 = vpop.f32.mrf.mxu0
    %v2925 = vadd.f32 %v2854, %v2924
    %v2926 = vpop.f32.mrf.mxu0
    %v2927 = vadd.f32 %v2856, %v2926
    %2928 = vdwg.mxu0
    %2929 = vmatprep.subr.mxu0 %v1524
    %2930 = vmatpush1.msra.mxu0 %v1523
    %2931 = vmatprep.subr.mxu0 %v1520
    %2932 = vmatpush1.msra.mxu0 %v1519
    %2933 = vmatprep.subr.mxu0 %v1516
    %2934 = vmatpush1.msra.mxu0 %v1515
    %2935 = vmatprep.subr.mxu0 %v1512
    %2936 = vmatpush1.msra.mxu0 %v1511
    %2937 = vmatprep.subr.mxu0 %v1508
    %2938 = vmatpush1.msra.mxu0 %v1507
    %2939 = vmatprep.subr.mxu0 %v1504
    %2940 = vmatpush1.msra.mxu0 %v1503
    %2941 = vmatprep.subr.mxu0 %v1500
    %2942 = vmatpush1.msra.mxu0 %v1499
    %2943 = vmatprep.subr.mxu0 %v1496
    %2944 = vmatpush1.msra.mxu0 %v1495
    %2945 = vmatprep.subr.mxu0 %v1492
    %2946 = vmatpush1.msra.mxu0 %v1491
    %2947 = vmatprep.subr.mxu0 %v1488
    %2948 = vmatpush1.msra.mxu0 %v1487
    %2949 = vmatprep.subr.mxu0 %v1484
    %2950 = vmatpush1.msra.mxu0 %v1483
    %2951 = vmatprep.subr.mxu0 %v1480
    %2952 = vmatpush1.msra.mxu0 %v1479
    %2953 = vmatprep.subr.mxu0 %v1476
    %2954 = vmatpush1.msra.mxu0 %v1475
    %2955 = vmatprep.subr.mxu0 %v1472
    %2956 = vmatpush1.msra.mxu0 %v1471
    %2957 = vmatprep.subr.mxu0 %v1468
    %2958 = vmatpush1.msra.mxu0 %v1467
    %2959 = vmatprep.subr.mxu0 %v1464
    %2960 = vmatpush1.msra.mxu0 %v1463
    %2961 = vmatprep.subr.mxu0 %v1588
    %2962 = vmatpush2.msra.mxu0 %v1587
    %2963 = vmatprep.subr.mxu0 %v1584
    %2964 = vmatpush2.msra.mxu0 %v1583
    %2965 = vmatprep.subr.mxu0 %v1580
    %2966 = vmatpush2.msra.mxu0 %v1579
    %2967 = vmatprep.subr.mxu0 %v1576
    %2968 = vmatpush2.msra.mxu0 %v1575
    %2969 = vmatprep.subr.mxu0 %v1572
    %2970 = vmatpush2.msra.mxu0 %v1571
    %2971 = vmatprep.subr.mxu0 %v1568
    %2972 = vmatpush2.msra.mxu0 %v1567
    %2973 = vmatprep.subr.mxu0 %v1564
    %2974 = vmatpush2.msra.mxu0 %v1563
    %2975 = vmatprep.subr.mxu0 %v1560
    %2976 = vmatpush2.msra.mxu0 %v1559
    %2977 = vmatprep.subr.mxu0 %v1556
    %2978 = vmatpush2.msra.mxu0 %v1555
    %2979 = vmatprep.subr.mxu0 %v1552
    %2980 = vmatpush2.msra.mxu0 %v1551
    %2981 = vmatprep.subr.mxu0 %v1548
    %2982 = vmatpush2.msra.mxu0 %v1547
    %2983 = vmatprep.subr.mxu0 %v1544
    %2984 = vmatpush2.msra.mxu0 %v1543
    %2985 = vmatprep.subr.mxu0 %v1540
    %2986 = vmatpush2.msra.mxu0 %v1539
    %2987 = vmatprep.subr.mxu0 %v1536
    %2988 = vmatpush2.msra.mxu0 %v1535
    %2989 = vmatprep.subr.mxu0 %v1532
    %2990 = vmatpush2.msra.mxu0 %v1531
    %2991 = vmatprep.subr.mxu0 %v1528
    %2992 = vmatpush2.msra.mxu0 %v1527
    %2993 = vmatprep.mubr.f32.mxu0 %v1764
    %2994 = vmatmul.mubr.f32.gmra.mxu0 %v1762
    %v2995 = vpop.f32.mrf.mxu0
    %v2996 = vadd.f32 %v2925, %v2995
    %v2997 = vpop.f32.mrf.mxu0
    %v2998 = vadd.f32 %v2927, %v2997
    %2999 = vdwg.mxu0
    %3000 = vmatprep.subr.mxu0 %v1652
    %3001 = vmatpush1.msra.mxu0 %v1651
    %3002 = vmatprep.subr.mxu0 %v1648
    %3003 = vmatpush1.msra.mxu0 %v1647
    %3004 = vmatprep.subr.mxu0 %v1644
    %3005 = vmatpush1.msra.mxu0 %v1643
    %3006 = vmatprep.subr.mxu0 %v1640
    %3007 = vmatpush1.msra.mxu0 %v1639
    %3008 = vmatprep.subr.mxu0 %v1636
    %3009 = vmatpush1.msra.mxu0 %v1635
    %3010 = vmatprep.subr.mxu0 %v1632
    %3011 = vmatpush1.msra.mxu0 %v1631
    %3012 = vmatprep.subr.mxu0 %v1628
    %3013 = vmatpush1.msra.mxu0 %v1627
    %3014 = vmatprep.subr.mxu0 %v1624
    %3015 = vmatpush1.msra.mxu0 %v1623
    %3016 = vmatprep.subr.mxu0 %v1620
    %3017 = vmatpush1.msra.mxu0 %v1619
    %3018 = vmatprep.subr.mxu0 %v1616
    %3019 = vmatpush1.msra.mxu0 %v1615
    %3020 = vmatprep.subr.mxu0 %v1612
    %3021 = vmatpush1.msra.mxu0 %v1611
    %3022 = vmatprep.subr.mxu0 %v1608
    %3023 = vmatpush1.msra.mxu0 %v1607
    %3024 = vmatprep.subr.mxu0 %v1604
    %3025 = vmatpush1.msra.mxu0 %v1603
    %3026 = vmatprep.subr.mxu0 %v1600
    %3027 = vmatpush1.msra.mxu0 %v1599
    %3028 = vmatprep.subr.mxu0 %v1596
    %3029 = vmatpush1.msra.mxu0 %v1595
    %3030 = vmatprep.subr.mxu0 %v1592
    %3031 = vmatpush1.msra.mxu0 %v1591
    %3032 = vmatprep.subr.mxu0 0.0
    %3033 = vmatpush2.msra.mxu0 0.0
    %3034 = vmatprep.subr.mxu0 0.0
    %3035 = vmatpush2.msra.mxu0 0.0
    %3036 = vmatprep.subr.mxu0 0.0
    %3037 = vmatpush2.msra.mxu0 0.0
    %3038 = vmatprep.subr.mxu0 0.0
    %3039 = vmatpush2.msra.mxu0 0.0
    %3040 = vmatprep.subr.mxu0 0.0
    %3041 = vmatpush2.msra.mxu0 0.0
    %3042 = vmatprep.subr.mxu0 0.0
    %3043 = vmatpush2.msra.mxu0 0.0
    %3044 = vmatprep.subr.mxu0 0.0
    %3045 = vmatpush2.msra.mxu0 0.0
    %3046 = vmatprep.subr.mxu0 0.0
    %3047 = vmatpush2.msra.mxu0 0.0
    %3048 = vmatprep.subr.mxu0 0.0
    %3049 = vmatpush2.msra.mxu0 0.0
    %3050 = vmatprep.subr.mxu0 0.0
    %3051 = vmatpush2.msra.mxu0 0.0
    %3052 = vmatprep.subr.mxu0 0.0
    %3053 = vmatpush2.msra.mxu0 0.0
    %3054 = vmatprep.subr.mxu0 0.0
    %3055 = vmatpush2.msra.mxu0 0.0
    %3056 = vmatprep.subr.mxu0 0.0
    %3057 = vmatpush2.msra.mxu0 0.0
    %3058 = vmatprep.subr.mxu0 %v1664
    %3059 = vmatpush2.msra.mxu0 %v1663
    %3060 = vmatprep.subr.mxu0 %v1660
    %3061 = vmatpush2.msra.mxu0 %v1659
    %3062 = vmatprep.subr.mxu0 %v1656
    %3063 = vmatpush2.msra.mxu0 %v1655
    %3064 = vmatprep.mubr.f32.mxu0 %v1791
    %3065 = vmatmul.mubr.f32.gmra.mxu0 %v1771
    %v3066 = vpop.f32.mrf.mxu0
    %v3067 = vadd.f32 %v2996, %v3066
    %v3068 = vpop.f32.mrf.mxu0
    %v3069 = vadd.f32 %v2998, %v3068
    %3070 = vdwg.mxu0
    %vm3071 = vcmp.gt.f32.partialorder %v2428, 0.0
    %vm3072 = vcmp.gt.f32.partialorder %v2430, 0.0
    %vm3073 = vcmp.gt.f32.partialorder %v3067, 0.0
    %vm3074 = vcmp.gt.f32.partialorder %v3069, 0.0
    %v3075 = vmul.f32 %v2428, 0.01
    %v3076 = vmul.f32 %v2430, 0.01
    %v3077 = vmul.f32 %v3067, 0.01
    %v3078 = vmul.f32 %v3069, 0.01
    %v3079 = vsel %vm3071, %v2428, %v3075
    %v3080 = vsel %vm3072, %v2430, %v3076
    %v3081 = vsel %vm3073, %v3067, %v3077
    %v3082 = vsel %vm3074, %v3069, %v3078
    %v3087 = vcombine.low %v3079, %v3080
    %v3088 = vcombine.low %v3081, %v3082
    %v3090 = vunpack.c.l.s4 1983009808
    %v3091 = vunpack.c.0.s8 %v3090
    %v3092 = vlaneseq
    %v3093 = vshrl.u32 %v3092, 7
    %v3094 = vsub.s32 %v3091, %v3093
    %v3095 = vrot.slane %v3087, %v3094
    %v3097 = vunpack.c.l.s4 1983009808
    %v3098 = vunpack.c.0.s8 %v3097
    %v3099 = vlaneseq
    %v3100 = vshrl.u32 %v3099, 7
    %v3101 = vsub.s32 %v3098, %v3100
    %v3102 = vrot.slane %v3088, %v3101
    %v3103 = vcombine.low %v3095, %v3102
    %vm3105 = vcmask 1041408
    %vm3106 = vcmask 1043458
    %vm3107 = vmor %vm3106, %vm3105
    %vm3108 = vcmask 1045508
    %vm3109 = vmor %vm3108, %vm3107
    %vm3110 = vcmask 130054
    %vm3111 = vmor %vm3110, %vm3109
    %3112 = vst.msk [vmem:[#allocation2] sm:$0xff] %vm3111, %v3103
    // Predicated region
    $region14: #{lenet_forward.5} parent=1 // pred_check
      _
    $region15: #{lenet_forward.5} parent=1 // pred_check_branch
      %3114 = sbr.rel (0) target = $region17
    $region16: #{lenet_forward.5} parent=1 // pred_region
      %s3116 = ssub.s32 128, 128
      %3117 = vsyncadd [#allocation3], %s3116
      %s3119 = sshll.u32 [#allocation2], 4
      %s3120 = int_to_ptr.vmem [resolvable:$true] %s3119
      %3122 = dma.vmem_to_hbm [thread:$0]  %s3120, 128, %s3, [#allocation3]
    $region17: #{lenet_forward.5} parent=1 // pred_fallthru
      _
    // Predicated region
    $region18: #{lenet_forward.5} parent=1 // pred_check
      _
    $region19: #{lenet_forward.5} parent=1 // pred_check_branch
      %3124 = sbr.rel (0) target = $region21
    $region20: #{lenet_forward.5} parent=1 // pred_region
      %3125 = dma.done [#allocation3], 128
    $region21: #{lenet_forward.5} parent=1 // pred_fallthru
      _
    %3126 = vsyncpa [#allocation3], 1

</llo_original>
